<compile_context>
chip_gen: v7x
topology: tpu7x:2x2x1
jax: 0.10.0
libtpu: 0.0.40
codegen_flags: <defaults>
</compile_context>

<pallas_src>
import jax
import jax.numpy as jnp
from jax import lax
from jax.experimental import pallas as pl
from jax.experimental.pallas import tpu as pltpu


# ----------------------------------------------------------------------------
# Helpers
# ----------------------------------------------------------------------------
def _round_up(x: int, m: int) -> int:
    return ((x + m - 1) // m) * m


def _round_down(x: int, m: int) -> int:
    return (x // m) * m


def _generation_params():
    """Per-TPU-generation block size / VMEM budget / multi-TC flag."""
    try:
        kind = jax.devices()[0].device_kind.lower()
    except Exception:  # pragma: no cover - defensive
        kind = ""
    if "v7" in kind or "7x" in kind:
        # 3.2 TB/s HBM: big blocks to amortize the ~0.35 us/step overhead; 64 MiB VMEM.
        return {"block_bytes": 8 << 20, "vmem_limit_bytes": 48 << 20, "multi_tc": True}
    if "v6" in kind:
        return {"block_bytes": 6 << 20, "vmem_limit_bytes": 40 << 20, "multi_tc": False}
    if "v5" in kind:
        # Stay comfortably inside v5e's smaller scoped-VMEM budget.
        return {"block_bytes": 4 << 20, "vmem_limit_bytes": 28 << 20, "multi_tc": False}
    return {"block_bytes": 3 << 20, "vmem_limit_bytes": 28 << 20, "multi_tc": False}


# ----------------------------------------------------------------------------
# Primary path: lane-packed channel-last output (no post-kernel transpose)
# ----------------------------------------------------------------------------
def _make_packed_kernel(c_out: int, cls_offset: int, rows_blk: int,
                        chunk_rows: int = 32):
    """Kernel over 2D views:  inputs (rows_blk, 128), output (rows_blk, 128*c_out).

    Output lane j of row r holds (token = r*128 + j // c_out, class = j % c_out),
    which is exactly the row-major layout of channel-last (tokens, c_out).
    """
    W = 128 * c_out

    def kernel(tid_ref, lbl_ref, out_ref):
        # Lane -> class index, periodic with period c_out.  Hoisted out of the loop;
        # broadcasts over sublanes inside the compare.
        lane = lax.broadcasted_iota(jnp.int32, (1, W), 1)
        cls_of_lane = lane % c_out + cls_offset                      # (1, W)

        # Static (unrolled) chunk loop keeps the lane-spread intermediates small
        # so they never blow up VMEM, while the *block* stays multi-MiB for the DMA.
        for start in range(0, rows_blk, chunk_rows):
            ch = min(chunk_rows, rows_blk - start)
            sl = pl.ds(start, ch)
            tid = tid_ref[sl, :]                                     # (ch, 128)
            lbl = jnp.abs(lbl_ref[sl, :])                            # all_pos_label
            # Spread each token across c_out consecutive lanes (XLU relayout).
            tid_rep = jnp.broadcast_to(tid[:, :, None],
                                       (ch, 128, c_out)).reshape(ch, W)
            lbl_rep = jnp.broadcast_to(lbl[:, :, None],
                                       (ch, 128, c_out)).reshape(ch, W)
            out_ref[sl, :] = jnp.where(lbl_rep == cls_of_lane, tid_rep,
                                       jnp.int32(-1))

    return kernel


def _packed_row_block(R: int, W: int, params) -> int:
    row_bytes = W * 4
    max_rows = max(64, _round_down(params["block_bytes"] // row_bytes, 64))
    if params["multi_tc"] and R >= 128:
        # Keep >= 2 grid steps so CORE_PARALLEL can actually split tiles across TCs.
        max_rows = min(max_rows, _round_up((R + 1) // 2, 64))
    return R if R <= max_rows else max_rows


def _encode_packed(track_id, cls_label, c_out: int, cls_offset: int, params):
    B, N = track_id.shape
    T = B * N                      # total tokens; caller guarantees T % 128 == 0
    R = T // 128
    W = 128 * c_out

    rows_blk = _packed_row_block(R, W, params)
    grid0 = pl.cdiv(R, rows_blk)

    if params["multi_tc"] and grid0 >= 2 and grid0 % 2 == 0:
        sem = pltpu.CORE_PARALLEL      # v7x: split N-tiles across both TensorCores
    else:
        sem = pltpu.ARBITRARY

    # Sublane/lane-dense 2D views of the flat token axis (free reshapes of small inputs).
    tid2 = track_id.reshape(R, 128)
    lbl2 = cls_label.reshape(R, 128)

    out = pl.pallas_call(
        _make_packed_kernel(c_out, cls_offset, rows_blk),
        out_shape=jax.ShapeDtypeStruct((R, W), jnp.int32),
        grid_spec=pl.GridSpec(
            grid=(grid0,),
            in_specs=[
                pl.BlockSpec((rows_blk, 128), lambda i: (i, 0)),
                pl.BlockSpec((rows_blk, 128), lambda i: (i, 0)),
            ],
            out_specs=pl.BlockSpec((rows_blk, W), lambda i: (i, 0)),
        ),
        compiler_params=pltpu.CompilerParams(
            dimension_semantics=(sem,),
            vmem_limit_bytes=params["vmem_limit_bytes"],
        ),
    )(tid2, lbl2)

    # (R, 128*c_out) has exactly the row-major element order of (B, N, c_out):
    # this reshape is a zero-copy view, not a transpose.
    return out.reshape(B, N, c_out)


# ----------------------------------------------------------------------------
# Fallback path: channel-first kernel + XLA transpose (ragged token counts, or
# if the lane-spread relayout fails to lower on some generation).
# ----------------------------------------------------------------------------
def _make_channel_first_kernel(cls_offset: int):
    def kernel(tid_ref, lbl_ref, out_ref):
        tid = tid_ref[...]                     # (B, TILE_N)
        abs_lbl = jnp.abs(lbl_ref[...])        # all_pos_label
        cls_iota = lax.broadcasted_iota(jnp.int32, out_ref.shape, 1) + cls_offset
        hit = abs_lbl[:, None, :] == cls_iota
        out_ref[...] = jnp.where(hit, tid[:, None, :], jnp.int32(-1))

    return kernel


def _choose_tile_n(B: int, N: int, c_out: int, block_bytes: int) -> int:
    if N <= 128:
        return N
    per_token = max(1, B * c_out * 4)
    tile = _round_down(block_bytes // per_token, 128)
    return max(128, min(tile, _round_down(N, 128)))


def _encode_channel_first(track_id, cls_label, c_out: int, cls_offset: int, params):
    B, N = track_id.shape
    tile_n = _choose_tile_n(B, N, c_out, min(params["block_bytes"], 2 << 20))
    grid = (pl.cdiv(N, tile_n),)

    out_cn = pl.pallas_call(
        _make_channel_first_kernel(cls_offset),
        out_shape=jax.ShapeDtypeStruct((B, c_out, N), jnp.int32),
        grid_spec=pl.GridSpec(
            grid=grid,
            in_specs=[
                pl.BlockSpec((B, tile_n), lambda i: (0, i)),
                pl.BlockSpec((B, tile_n), lambda i: (0, i)),
            ],
            out_specs=pl.BlockSpec((B, c_out, tile_n), lambda i: (0, 0, i)),
        ),
        compiler_params=pltpu.CompilerParams(
            dimension_semantics=("arbitrary",),
            vmem_limit_bytes=params["vmem_limit_bytes"],
        ),
    )(track_id, cls_label)

    # TODO(synk): this fallback still pays a full extra HBM pass for the transpose;
    # it is only taken when (B*N) % 128 != 0 or the packed path fails to lower.
    return jnp.transpose(out_cn, (0, 2, 1))


# ----------------------------------------------------------------------------
# Public wrapper
# ----------------------------------------------------------------------------
def class_wise_track_id_encode(track_id, cls_label, num_classes: int,
                               exclude_background: bool = False):
    assert track_id.shape == cls_label.shape and track_id.ndim == 2
    B, N = track_id.shape
    c_out = num_classes - 1 if exclude_background else num_classes
    assert c_out >= 1
    cls_offset = 1 if exclude_background else 0

    track_id = track_id.astype(jnp.int32)
    cls_label = cls_label.astype(jnp.int32)
    # TODO(synk): the torch.all(-num_classes < cls_label < num_classes) assert is a
    # host-side check; out-of-range labels here simply produce all -1 rows.

    params = _generation_params()

    if (B * N) % 128 == 0 and (B * N) > 0:
        try:
            return _encode_packed(track_id, cls_label, c_out, cls_offset, params)
        except Exception:
            # e.g. Mosaic rejects the lane-spread relayout on this generation;
            # fall back to the validated channel-first kernel.
            pass
    return _encode_channel_first(track_id, cls_label, c_out, cls_offset, params)


# ----------------------------------------------------------------------------
# Pure-JAX reference (mirrors the PyTorch forward) + self-test
# ----------------------------------------------------------------------------
def _reference(track_id, cls_label, num_classes, exclude_background):
    abs_lbl = jnp.abs(cls_label)
    onehot = abs_lbl[..., None] == jnp.arange(num_classes)[None, None, :]
    enc = jnp.where(onehot, track_id[..., None].astype(jnp.int32), jnp.int32(-1))
    if exclude_background:
        enc = enc[..., 1:]
    return enc


if __name__ == "__main__":
    key = jax.random.PRNGKey(0)

    # (B, N, num_classes): first two exercise the lane-packed channel-last path
    # (B*N multiple of 128, including non-power-of-2 class counts); the last one
    # exercises the ragged-token fallback path.
    cases = [
        (2, 192, 8),
        (2, 320, 5),
        (2, 16, 8),
    ]

    for (B, N, num_classes) in cases:
        k1, k2, key = jax.random.split(key, 3)
        track_id = jax.random.randint(k1, (B, N), 0, 1000, dtype=jnp.int32)
        # cls_label must satisfy -num_classes < cls_label < num_classes
        cls_label = jax.random.randint(k2, (B, N), -(num_classes - 1),
                                       num_classes, dtype=jnp.int32)

        for exclude_background in (False, True):
            out = class_wise_track_id_encode(track_id, cls_label, num_classes,
                                             exclude_background)
            out = jax.block_until_ready(out)
            ref = _reference(track_id, cls_label, num_classes, exclude_background)
            assert out.shape == ref.shape, (out.shape, ref.shape)
            assert bool(jnp.all(out == ref)), (B, N, num_classes, exclude_background)

    print("KERNEL_OK")
</pallas_src>

<mosaic_0001>
module attributes {stable_mosaic.version = 11 : i64} {
  func.func @kernel(%arg0: i32, %arg1: memref<3x128xi32, #tpu.memory_space<vmem>>, %arg2: memref<3x128xi32, #tpu.memory_space<vmem>>, %arg3: memref<3x1024xi32, #tpu.memory_space<vmem>>) attributes {dimension_semantics = [#tpu.dimension_semantics<arbitrary>], iteration_bounds = array<i64: 1>, scalar_prefetch = 0 : i64, scratch_operands = 0 : i64, tpu.core_type = #tpu.core_type<tc>, window_params = [{transform_indices = @transform_0, window_bounds = array<i64: 3, 128>}, {transform_indices = @transform_1, window_bounds = array<i64: 3, 128>}, {transform_indices = @transform_2, window_bounds = array<i64: 3, 1024>}]} {
    %0 = tpu.iota {dimensions = array<i32: 1>} : vector<1x1024xi32>
    %c8_i32 = arith.constant 8 : i32
    %c0_i32 = arith.constant 0 : i32
    %1 = arith.cmpi eq, %c8_i32, %c0_i32 : i32
    %c1_i32 = arith.constant 1 : i32
    %2 = arith.select %1, %c1_i32, %c8_i32 : i32
    %3 = vector.broadcast %2 : i32 to vector<1x1024xi32>
    %4 = arith.remsi %0, %3 : vector<1x1024xi32>
    %c0_i32_0 = arith.constant 0 : i32
    %5 = vector.broadcast %c0_i32_0 : i32 to vector<1x1024xi32>
    %6 = arith.cmpi ne, %4, %5 : vector<1x1024xi32>
    %c0_i32_1 = arith.constant 0 : i32
    %7 = vector.broadcast %c0_i32_1 : i32 to vector<1x1024xi32>
    %8 = arith.cmpi slt, %4, %7 : vector<1x1024xi32>
    %c0_i32_2 = arith.constant 0 : i32
    %9 = arith.cmpi slt, %2, %c0_i32_2 : i32
    %10 = vector.broadcast %9 : i1 to vector<1x1024xi1>
    %11 = vector.broadcast %10 : vector<1x1024xi1> to vector<1x1024xi1>
    %12 = arith.xori %8, %11 : vector<1x1024xi1>
    %13 = arith.andi %12, %6 : vector<1x1024xi1>
    %14 = vector.broadcast %2 : i32 to vector<1x1024xi32>
    %15 = arith.addi %4, %14 : vector<1x1024xi32>
    %16 = arith.select %13, %15, %4 : vector<1x1024xi1>, vector<1x1024xi32>
    %c0_i32_3 = arith.constant 0 : i32
    %17 = vector.broadcast %c0_i32_3 : i32 to vector<1x1024xi32>
    %18 = arith.addi %16, %17 : vector<1x1024xi32>
    %c0 = arith.constant 0 : index
    %c0_4 = arith.constant 0 : index
    %19 = vector.load %arg1[%c0, %c0_4] : memref<3x128xi32, #tpu.memory_space<vmem>>, vector<3x128xi32>
    %c0_5 = arith.constant 0 : index
    %c0_6 = arith.constant 0 : index
    %20 = vector.load %arg2[%c0_5, %c0_6] : memref<3x128xi32, #tpu.memory_space<vmem>>, vector<3x128xi32>
    %21 = math.absi %20 : vector<3x128xi32>
    %22 = vector.shape_cast %19 : vector<3x128xi32> to vector<3x128x1xi32>
    %23 = vector.shape_cast %22 : vector<3x128x1xi32> to vector<3x128x1xi32>
    %24 = vector.broadcast %23 : vector<3x128x1xi32> to vector<3x128x8xi32>
    %25 = vector.shape_cast %24 : vector<3x128x8xi32> to vector<3x1024xi32>
    %26 = vector.shape_cast %21 : vector<3x128xi32> to vector<3x128x1xi32>
    %27 = vector.shape_cast %26 : vector<3x128x1xi32> to vector<3x128x1xi32>
    %28 = vector.broadcast %27 : vector<3x128x1xi32> to vector<3x128x8xi32>
    %29 = vector.shape_cast %28 : vector<3x128x8xi32> to vector<3x1024xi32>
    %30 = vector.broadcast %18 : vector<1x1024xi32> to vector<3x1024xi32>
    %31 = arith.cmpi eq, %29, %30 : vector<3x1024xi32>
    %c-1_i32 = arith.constant -1 : i32
    %32 = vector.broadcast %c-1_i32 : i32 to vector<3x1024xi32>
    %33 = arith.select %31, %25, %32 : vector<3x1024xi1>, vector<3x1024xi32>
    %c0_7 = arith.constant 0 : index
    %c0_8 = arith.constant 0 : index
    %34 = vector.load %arg3[%c0_7, %c0_8] : memref<3x1024xi32, #tpu.memory_space<vmem>>, vector<3x1024xi32>
    tpu.vector_store %arg3[%c0_7, %c0_8], %33 {strides = array<i32>} : memref<3x1024xi32, #tpu.memory_space<vmem>>, vector<3x1024xi32>,
    return
  }
  func.func @transform_0(%arg0: i32) -> (i32, i32) {
    %c0_i32 = arith.constant 0 : i32
    %c0_i32_0 = arith.constant 0 : i32
    return %arg0, %c0_i32 : i32, i32
  }
  func.func @transform_1(%arg0: i32) -> (i32, i32) {
    %c0_i32 = arith.constant 0 : i32
    %c0_i32_0 = arith.constant 0 : i32
    return %arg0, %c0_i32 : i32, i32
  }
  func.func @transform_2(%arg0: i32) -> (i32, i32) {
    %c0_i32 = arith.constant 0 : i32
    %c0_i32_0 = arith.constant 0 : i32
    return %arg0, %c0_i32 : i32, i32
  }
}

module attributes {stable_mosaic.version = 11 : i64} {
  func.func @kernel(%arg0: i32, %arg1: memref<2x128xi32, #tpu.memory_space<vmem>>, %arg2: memref<2x128xi32, #tpu.memory_space<vmem>>, %arg3: memref<2x8x128xi32, #tpu.memory_space<vmem>>) attributes {dimension_semantics = [#tpu.dimension_semantics<arbitrary>], iteration_bounds = array<i64: 2>, scalar_prefetch = 0 : i64, scratch_operands = 0 : i64, tpu.core_type = #tpu.core_type<tc>, window_params = [{transform_indices = @transform_0, window_bounds = array<i64: 2, 128>}, {transform_indices = @transform_1, window_bounds = array<i64: 2, 128>}, {transform_indices = @transform_2, window_bounds = array<i64: 2, 8, 128>}]} {
    %c0 = arith.constant 0 : index
    %c0_0 = arith.constant 0 : index
    %0 = vector.load %arg1[%c0, %c0_0] : memref<2x128xi32, #tpu.memory_space<vmem>>, vector<2x128xi32>
    %c0_1 = arith.constant 0 : index
    %c0_2 = arith.constant 0 : index
    %1 = vector.load %arg2[%c0_1, %c0_2] : memref<2x128xi32, #tpu.memory_space<vmem>>, vector<2x128xi32>
    %2 = math.absi %1 : vector<2x128xi32>
    %3 = tpu.iota {dimensions = array<i32: 1>} : vector<2x8x128xi32>
    %c0_i32 = arith.constant 0 : i32
    %4 = vector.broadcast %c0_i32 : i32 to vector<2x8x128xi32>
    %5 = arith.addi %3, %4 : vector<2x8x128xi32>
    %6 = vector.shape_cast %2 : vector<2x128xi32> to vector<2x1x128xi32>
    %7 = vector.broadcast %6 : vector<2x1x128xi32> to vector<2x8x128xi32>
    %8 = arith.cmpi eq, %7, %5 : vector<2x8x128xi32>
    %9 = vector.shape_cast %0 : vector<2x128xi32> to vector<2x1x128xi32>
    %c-1_i32 = arith.constant -1 : i32
    %10 = vector.shape_cast %9 : vector<2x1x128xi32> to vector<2x1x128xi32>
    %11 = vector.broadcast %10 : vector<2x1x128xi32> to vector<2x8x128xi32>
    %12 = vector.broadcast %c-1_i32 : i32 to vector<2x8x128xi32>
    %13 = arith.select %8, %11, %12 : vector<2x8x128xi1>, vector<2x8x128xi32>
    %c0_3 = arith.constant 0 : index
    %c0_4 = arith.constant 0 : index
    %c0_5 = arith.constant 0 : index
    %14 = vector.load %arg3[%c0_3, %c0_4, %c0_5] : memref<2x8x128xi32, #tpu.memory_space<vmem>>, vector<2x8x128xi32>
    tpu.vector_store %arg3[%c0_3, %c0_4, %c0_5], %13 {strides = array<i32>} : memref<2x8x128xi32, #tpu.memory_space<vmem>>, vector<2x8x128xi32>,
    return
  }
  func.func @transform_0(%arg0: i32) -> (i32, i32) {
    %c0_i32 = arith.constant 0 : i32
    %c0_i32_0 = arith.constant 0 : i32
    return %c0_i32, %arg0 : i32, i32
  }
  func.func @transform_1(%arg0: i32) -> (i32, i32) {
    %c0_i32 = arith.constant 0 : i32
    %c0_i32_0 = arith.constant 0 : i32
    return %c0_i32, %arg0 : i32, i32
  }
  func.func @transform_2(%arg0: i32) -> (i32, i32, i32) {
    %c0_i32 = arith.constant 0 : i32
    %c0_i32_0 = arith.constant 0 : i32
    %c0_i32_1 = arith.constant 0 : i32
    return %c0_i32, %c0_i32_0, %arg0 : i32, i32, i32
  }
}

</mosaic_0001>

<llo_original>
// kernel: tpu_custom_call.1
$region0: #{tpu_custom_call.1}
  #allocation0 [shape = 'u32[]', space=smem, size = 0x4, offset = 0x4, fixed_abs, tag = 'smem constant byte address 0x4 - core index']
  #allocation1 [shape = 'u32[144,128]{1,0:T(1,128)}', space=vmem, size = 0x12000, scoped, tag = 'internal scratch']
  %s0 = inlined_call_operand.hbm [shape: s32[3,128], index: 0, kind: input, shape index: {}]
  %s1 = inlined_call_operand.hbm [shape: s32[3,128], index: 1, kind: input, shape index: {}]
  %s2 = inlined_call_operand.hbm [shape: s32[3,1024], index: 2, kind: output, shape index: {}]
  %s3 = sld [smem:[#allocation0]]
  $region26: #{tpu_custom_call.1} parent=0
    _
  %s5 = ssub.s32 1, %s3
  %s6 = scalar_select 0, %s5, %s3
  $region1: #{tpu_custom_call.1} parent=0
    #allocation2 [shape = 'u8[2048]{0}', space=vmem, size = 0x800, scoped, tag = 'input window, operand 0, single buffered']
    #allocation3 [shape = 's32[1]{0}', space=sflag, size = 0x4, scoped, tag = 'scoped memory for tpu_custom_call.1']
    #allocation4 [shape = 's32[1]{0}', space=sflag, size = 0x4, scoped, tag = 'scoped memory for tpu_custom_call.1']
    #allocation5 [shape = 'u8[2048]{0}', space=vmem, size = 0x800, scoped, tag = 'input window, operand 1, single buffered']
    #allocation6 [shape = 's32[1]{0}', space=sflag, size = 0x4, scoped, tag = 'scoped memory for tpu_custom_call.1']
    #allocation7 [shape = 'u8[16384]{0}', space=vmem, size = 0x4000, scoped, tag = 'output window, operand 0, single buffered']
    %7 = vsyncpa [#allocation3], 0
    %8 = vsyncpa [#allocation6], 0
    %9 = vsyncpa [#allocation4], 0
    // Predicated region
    $region2: #{tpu_custom_call.1} parent=1 // pred_check
      _
    $region3: #{tpu_custom_call.1} parent=1 // pred_check_branch
      %11 = sbr.rel (0) target = $region5
    $region4: #{tpu_custom_call.1} parent=1 // pred_region
      %s13 = ssub.s32 64, 64
      %14 = vsyncadd [#allocation3], %s13
      %s16 = sshll.u32 [#allocation2], 4
      %s17 = int_to_ptr.vmem [resolvable:$true] %s16
      %19 = dma.hbm_to_vmem [thread:$0]  %s0, 64, %s17, [#allocation3]
    $region5: #{tpu_custom_call.1} parent=1 // pred_fallthru
      _
    // Predicated region
    $region6: #{tpu_custom_call.1} parent=1 // pred_check
      _
    $region7: #{tpu_custom_call.1} parent=1 // pred_check_branch
      %21 = sbr.rel (0) target = $region9
    $region8: #{tpu_custom_call.1} parent=1 // pred_region
      %s23 = ssub.s32 64, 64
      %24 = vsyncadd [#allocation6], %s23
      %s26 = sshll.u32 [#allocation5], 4
      %s27 = int_to_ptr.vmem [resolvable:$true] %s26
      %29 = dma.hbm_to_vmem [thread:$0]  %s1, 64, %s27, [#allocation6]
    $region9: #{tpu_custom_call.1} parent=1 // pred_fallthru
      _
    // Predicated region
    $region10: #{tpu_custom_call.1} parent=1 // pred_check
      _
    $region11: #{tpu_custom_call.1} parent=1 // pred_check_branch
      %31 = sbr.rel (0) target = $region13
    $region12: #{tpu_custom_call.1} parent=1 // pred_region
      %32 = dma.done [#allocation3], 64
    $region13: #{tpu_custom_call.1} parent=1 // pred_fallthru
      _
    // Predicated region
    $region14: #{tpu_custom_call.1} parent=1 // pred_check
      _
    $region15: #{tpu_custom_call.1} parent=1 // pred_check_branch
      %34 = sbr.rel (0) target = $region17
    $region16: #{tpu_custom_call.1} parent=1 // pred_region
      %35 = dma.done [#allocation6], 64
    $region17: #{tpu_custom_call.1} parent=1 // pred_fallthru
      _
    %v36 = vlaneseq
    %v37 = vand.u32 %v36, 127
    %v38 = vadd.s32 %v37, 128
    %v39 = vadd.s32 %v37, 256
    %v40 = vadd.s32 %v37, 384
    %v41 = vadd.s32 %v37, 512
    %v42 = vadd.s32 %v37, 640
    %v43 = vadd.s32 %v37, 768
    %v44 = vadd.s32 %v37, 896
    %vm45 = vcmp.lt.s32.totalorder %v37, 0
    %v46 = vsub.s32 0, %v37
    %v47 = vsel %vm45, %v46, %v37
    %v48 = vshrl.u32 %v47, 3
    %v49 = vand.u32 %v47, 7
    %v50 = vsub.s32 0, %v49
    %v51 = vsel %vm45, %v50, %v49
    %vm52 = vcmp.lt.s32.totalorder %v38, 0
    %v53 = vsub.s32 0, %v38
    %v54 = vsel %vm52, %v53, %v38
    %v55 = vshrl.u32 %v54, 3
    %v56 = vand.u32 %v54, 7
    %v57 = vsub.s32 0, %v56
    %v58 = vsel %vm52, %v57, %v56
    %vm59 = vcmp.lt.s32.totalorder %v39, 0
    %v60 = vsub.s32 0, %v39
    %v61 = vsel %vm59, %v60, %v39
    %v62 = vshrl.u32 %v61, 3
    %v63 = vand.u32 %v61, 7
    %v64 = vsub.s32 0, %v63
    %v65 = vsel %vm59, %v64, %v63
    %vm66 = vcmp.lt.s32.totalorder %v40, 0
    %v67 = vsub.s32 0, %v40
    %v68 = vsel %vm66, %v67, %v40
    %v69 = vshrl.u32 %v68, 3
    %v70 = vand.u32 %v68, 7
    %v71 = vsub.s32 0, %v70
    %v72 = vsel %vm66, %v71, %v70
    %vm73 = vcmp.lt.s32.totalorder %v41, 0
    %v74 = vsub.s32 0, %v41
    %v75 = vsel %vm73, %v74, %v41
    %v76 = vshrl.u32 %v75, 3
    %v77 = vand.u32 %v75, 7
    %v78 = vsub.s32 0, %v77
    %v79 = vsel %vm73, %v78, %v77
    %vm80 = vcmp.lt.s32.totalorder %v42, 0
    %v81 = vsub.s32 0, %v42
    %v82 = vsel %vm80, %v81, %v42
    %v83 = vshrl.u32 %v82, 3
    %v84 = vand.u32 %v82, 7
    %v85 = vsub.s32 0, %v84
    %v86 = vsel %vm80, %v85, %v84
    %vm87 = vcmp.lt.s32.totalorder %v43, 0
    %v88 = vsub.s32 0, %v43
    %v89 = vsel %vm87, %v88, %v43
    %v90 = vshrl.u32 %v89, 3
    %v91 = vand.u32 %v89, 7
    %v92 = vsub.s32 0, %v91
    %v93 = vsel %vm87, %v92, %v91
    %vm94 = vcmp.lt.s32.totalorder %v44, 0
    %v95 = vsub.s32 0, %v44
    %v96 = vsel %vm94, %v95, %v44
    %v97 = vshrl.u32 %v96, 3
    %v98 = vand.u32 %v96, 7
    %v99 = vsub.s32 0, %v98
    %v100 = vsel %vm94, %v99, %v98
    %vm101 = vcmp.ne.s32.totalorder %v51, 0
    %vm102 = vcmp.ne.s32.totalorder %v58, 0
    %vm103 = vcmp.ne.s32.totalorder %v65, 0
    %vm104 = vcmp.ne.s32.totalorder %v72, 0
    %vm105 = vcmp.ne.s32.totalorder %v79, 0
    %vm106 = vcmp.ne.s32.totalorder %v86, 0
    %vm107 = vcmp.ne.s32.totalorder %v93, 0
    %vm108 = vcmp.ne.s32.totalorder %v100, 0
    %vm109 = vcmp.lt.s32.totalorder %v51, 0
    %vm110 = vcmp.lt.s32.totalorder %v58, 0
    %vm111 = vcmp.lt.s32.totalorder %v65, 0
    %vm112 = vcmp.lt.s32.totalorder %v72, 0
    %vm113 = vcmp.lt.s32.totalorder %v79, 0
    %vm114 = vcmp.lt.s32.totalorder %v86, 0
    %vm115 = vcmp.lt.s32.totalorder %v93, 0
    %vm116 = vcmp.lt.s32.totalorder %v100, 0
    %vm117 = vmand %vm109, %vm101
    %vm118 = vmand %vm110, %vm102
    %vm119 = vmand %vm111, %vm103
    %vm120 = vmand %vm112, %vm104
    %vm121 = vmand %vm113, %vm105
    %vm122 = vmand %vm114, %vm106
    %vm123 = vmand %vm115, %vm107
    %vm124 = vmand %vm116, %vm108
    %v125 = vadd.s32 %v51, 8
    %v126 = vadd.s32 %v58, 8
    %v127 = vadd.s32 %v65, 8
    %v128 = vadd.s32 %v72, 8
    %v129 = vadd.s32 %v79, 8
    %v130 = vadd.s32 %v86, 8
    %v131 = vadd.s32 %v93, 8
    %v132 = vadd.s32 %v100, 8
    %v133 = vsel %vm117, %v125, %v51
    %v134 = vsel %vm118, %v126, %v58
    %v135 = vsel %vm119, %v127, %v65
    %v136 = vsel %vm120, %v128, %v72
    %v137 = vsel %vm121, %v129, %v79
    %v138 = vsel %vm122, %v130, %v86
    %v139 = vsel %vm123, %v131, %v93
    %v140 = vsel %vm124, %v132, %v100
    %v141 = vld [vmem:[#allocation2] sm:$0x7]
    %v142 = vld [vmem:[#allocation5] sm:$0x7]
    %vm143 = vcmp.lt.s32.totalorder %v142, 0
    %v144 = vsub.s32 0, %v142
    %v145 = vsel %vm143, %v144, %v142
    %v146 = vlaneseq
    %v147 = vshrl.u32 %v146, 7
    %v148 = vsub.s32 0, %v147
    %v149 = vrot.slane %v141, %v148
    %151 = vbcast.lane.b32.xlu0 %v149, 256
    %v152 = vpop.permute.xlu0 %151
    %s154 = sor.u32 256, 8
    %155 = vbcast.lane.b32.xlu0 %v149, %s154
    %v156 = vpop.permute.xlu0 %155
    %s158 = sor.u32 256, 16
    %159 = vbcast.lane.b32.xlu0 %v149, %s158
    %v160 = vpop.permute.xlu0 %159
    %s162 = sor.u32 256, 24
    %163 = vbcast.lane.b32.xlu0 %v149, %s162
    %v164 = vpop.permute.xlu0 %163
    %s166 = sor.u32 256, 32
    %167 = vbcast.lane.b32.xlu0 %v149, %s166
    %v168 = vpop.permute.xlu0 %167
    %s170 = sor.u32 256, 40
    %171 = vbcast.lane.b32.xlu0 %v149, %s170
    %v172 = vpop.permute.xlu0 %171
    %s174 = sor.u32 256, 48
    %175 = vbcast.lane.b32.xlu0 %v149, %s174
    %v176 = vpop.permute.xlu0 %175
    %s178 = sor.u32 256, 56
    %179 = vbcast.lane.b32.xlu0 %v149, %s178
    %v180 = vpop.permute.xlu0 %179
    %s182 = sor.u32 256, 64
    %183 = vbcast.lane.b32.xlu0 %v149, %s182
    %v184 = vpop.permute.xlu0 %183
    %s186 = sor.u32 256, 72
    %187 = vbcast.lane.b32.xlu0 %v149, %s186
    %v188 = vpop.permute.xlu0 %187
    %s190 = sor.u32 256, 80
    %191 = vbcast.lane.b32.xlu0 %v149, %s190
    %v192 = vpop.permute.xlu0 %191
    %s194 = sor.u32 256, 88
    %195 = vbcast.lane.b32.xlu0 %v149, %s194
    %v196 = vpop.permute.xlu0 %195
    %s198 = sor.u32 256, 96
    %199 = vbcast.lane.b32.xlu0 %v149, %s198
    %v200 = vpop.permute.xlu0 %199
    %s202 = sor.u32 256, 104
    %203 = vbcast.lane.b32.xlu0 %v149, %s202
    %v204 = vpop.permute.xlu0 %203
    %s206 = sor.u32 256, 112
    %207 = vbcast.lane.b32.xlu0 %v149, %s206
    %v208 = vpop.permute.xlu0 %207
    %s210 = sor.u32 256, 120
    %211 = vbcast.lane.b32.xlu0 %v149, %s210
    %v212 = vpop.permute.xlu0 %211
    %v213 = vlaneseq
    %v214 = vshrl.u32 %v213, 7
    %v215 = vsub.s32 1, %v214
    %v216 = vrot.slane %v141, %v215
    %218 = vbcast.lane.b32.xlu0 %v216, 256
    %v219 = vpop.permute.xlu0 %218
    %s221 = sor.u32 256, 8
    %222 = vbcast.lane.b32.xlu0 %v216, %s221
    %v223 = vpop.permute.xlu0 %222
    %s225 = sor.u32 256, 16
    %226 = vbcast.lane.b32.xlu0 %v216, %s225
    %v227 = vpop.permute.xlu0 %226
    %s229 = sor.u32 256, 24
    %230 = vbcast.lane.b32.xlu0 %v216, %s229
    %v231 = vpop.permute.xlu0 %230
    %s233 = sor.u32 256, 32
    %234 = vbcast.lane.b32.xlu0 %v216, %s233
    %v235 = vpop.permute.xlu0 %234
    %s237 = sor.u32 256, 40
    %238 = vbcast.lane.b32.xlu0 %v216, %s237
    %v239 = vpop.permute.xlu0 %238
    %s241 = sor.u32 256, 48
    %242 = vbcast.lane.b32.xlu0 %v216, %s241
    %v243 = vpop.permute.xlu0 %242
    %s245 = sor.u32 256, 56
    %246 = vbcast.lane.b32.xlu0 %v216, %s245
    %v247 = vpop.permute.xlu0 %246
    %s249 = sor.u32 256, 64
    %250 = vbcast.lane.b32.xlu0 %v216, %s249
    %v251 = vpop.permute.xlu0 %250
    %s253 = sor.u32 256, 72
    %254 = vbcast.lane.b32.xlu0 %v216, %s253
    %v255 = vpop.permute.xlu0 %254
    %s257 = sor.u32 256, 80
    %258 = vbcast.lane.b32.xlu0 %v216, %s257
    %v259 = vpop.permute.xlu0 %258
    %s261 = sor.u32 256, 88
    %262 = vbcast.lane.b32.xlu0 %v216, %s261
    %v263 = vpop.permute.xlu0 %262
    %s265 = sor.u32 256, 96
    %266 = vbcast.lane.b32.xlu0 %v216, %s265
    %v267 = vpop.permute.xlu0 %266
    %s269 = sor.u32 256, 104
    %270 = vbcast.lane.b32.xlu0 %v216, %s269
    %v271 = vpop.permute.xlu0 %270
    %s273 = sor.u32 256, 112
    %274 = vbcast.lane.b32.xlu0 %v216, %s273
    %v275 = vpop.permute.xlu0 %274
    %s277 = sor.u32 256, 120
    %278 = vbcast.lane.b32.xlu0 %v216, %s277
    %v279 = vpop.permute.xlu0 %278
    %v280 = vlaneseq
    %v281 = vshrl.u32 %v280, 7
    %v282 = vsub.s32 2, %v281
    %v283 = vrot.slane %v141, %v282
    %285 = vbcast.lane.b32.xlu0 %v283, 256
    %v286 = vpop.permute.xlu0 %285
    %s288 = sor.u32 256, 8
    %289 = vbcast.lane.b32.xlu0 %v283, %s288
    %v290 = vpop.permute.xlu0 %289
    %s292 = sor.u32 256, 16
    %293 = vbcast.lane.b32.xlu0 %v283, %s292
    %v294 = vpop.permute.xlu0 %293
    %s296 = sor.u32 256, 24
    %297 = vbcast.lane.b32.xlu0 %v283, %s296
    %v298 = vpop.permute.xlu0 %297
    %s300 = sor.u32 256, 32
    %301 = vbcast.lane.b32.xlu0 %v283, %s300
    %v302 = vpop.permute.xlu0 %301
    %s304 = sor.u32 256, 40
    %305 = vbcast.lane.b32.xlu0 %v283, %s304
    %v306 = vpop.permute.xlu0 %305
    %s308 = sor.u32 256, 48
    %309 = vbcast.lane.b32.xlu0 %v283, %s308
    %v310 = vpop.permute.xlu0 %309
    %s312 = sor.u32 256, 56
    %313 = vbcast.lane.b32.xlu0 %v283, %s312
    %v314 = vpop.permute.xlu0 %313
    %s316 = sor.u32 256, 64
    %317 = vbcast.lane.b32.xlu0 %v283, %s316
    %v318 = vpop.permute.xlu0 %317
    %s320 = sor.u32 256, 72
    %321 = vbcast.lane.b32.xlu0 %v283, %s320
    %v322 = vpop.permute.xlu0 %321
    %s324 = sor.u32 256, 80
    %325 = vbcast.lane.b32.xlu0 %v283, %s324
    %v326 = vpop.permute.xlu0 %325
    %s328 = sor.u32 256, 88
    %329 = vbcast.lane.b32.xlu0 %v283, %s328
    %v330 = vpop.permute.xlu0 %329
    %s332 = sor.u32 256, 96
    %333 = vbcast.lane.b32.xlu0 %v283, %s332
    %v334 = vpop.permute.xlu0 %333
    %s336 = sor.u32 256, 104
    %337 = vbcast.lane.b32.xlu0 %v283, %s336
    %v338 = vpop.permute.xlu0 %337
    %s340 = sor.u32 256, 112
    %341 = vbcast.lane.b32.xlu0 %v283, %s340
    %v342 = vpop.permute.xlu0 %341
    %s344 = sor.u32 256, 120
    %345 = vbcast.lane.b32.xlu0 %v283, %s344
    %v346 = vpop.permute.xlu0 %345
    %v347 = vcombine.low %v152, %v286
    %v348 = vcombine.high %v152, %v286
    %v350 = vunpack.c.l.s4 1983009808
    %v351 = vunpack.c.0.s8 %v350
    %v352 = vlaneseq
    %v353 = vshrl.u32 %v352, 7
    %v354 = vsub.s32 %v351, %v353
    %v355 = vrot.slane %v347, %v354
    %v357 = vunpack.c.l.s4 1983009808
    %v358 = vunpack.c.0.s8 %v357
    %v359 = vlaneseq
    %v360 = vshrl.u32 %v359, 7
    %v361 = vsub.s32 %v358, %v360
    %v362 = vrot.slane %v348, %v361
    %v363 = vcombine.high %v219, 0
    %v365 = vunpack.c.l.s4 1983009808
    %v366 = vunpack.c.0.s8 %v365
    %v367 = vlaneseq
    %v368 = vshrl.u32 %v367, 7
    %v369 = vsub.s32 %v366, %v368
    %v370 = vrot.slane %v219, %v369
    %v372 = vunpack.c.l.s4 1983009808
    %v373 = vunpack.c.0.s8 %v372
    %v374 = vlaneseq
    %v375 = vshrl.u32 %v374, 7
    %v376 = vsub.s32 %v373, %v375
    %v377 = vrot.slane %v363, %v376
    %v378 = vcombine.low %v355, %v370
    %v379 = vcombine.high %v355, %v370
    %v381 = vunpack.c.l.s4 1934713408
    %v382 = vunpack.c.0.s8 %v381
    %v383 = vlaneseq
    %v384 = vshrl.u32 %v383, 7
    %v385 = vsub.s32 %v382, %v384
    %v386 = vrot.slane %v378, %v385
    %v388 = vunpack.c.l.s4 1934713408
    %v389 = vunpack.c.0.s8 %v388
    %v390 = vlaneseq
    %v391 = vshrl.u32 %v390, 7
    %v392 = vsub.s32 %v389, %v391
    %v393 = vrot.slane %v379, %v392
    %v394 = vcombine.low %v362, %v377
    %v395 = vcombine.high %v362, %v377
    %v397 = vunpack.c.l.s4 1934713408
    %v398 = vunpack.c.0.s8 %v397
    %v399 = vlaneseq
    %v400 = vshrl.u32 %v399, 7
    %v401 = vsub.s32 %v398, %v400
    %v402 = vrot.slane %v394, %v401
    %v404 = vunpack.c.l.s4 1934713408
    %v405 = vunpack.c.0.s8 %v404
    %v406 = vlaneseq
    %v407 = vshrl.u32 %v406, 7
    %v408 = vsub.s32 %v405, %v407
    %v409 = vrot.slane %v395, %v408
    %v410 = vcombine.high %v386, 0
    %v411 = vcombine.high %v393, 0
    %v412 = vcombine.high %v402, 0
    %v413 = vcombine.high %v409, 0
    %v414 = vcombine.low %v156, %v290
    %v415 = vcombine.high %v156, %v290
    %v417 = vunpack.c.l.s4 1983009808
    %v418 = vunpack.c.0.s8 %v417
    %v419 = vlaneseq
    %v420 = vshrl.u32 %v419, 7
    %v421 = vsub.s32 %v418, %v420
    %v422 = vrot.slane %v414, %v421
    %v424 = vunpack.c.l.s4 1983009808
    %v425 = vunpack.c.0.s8 %v424
    %v426 = vlaneseq
    %v427 = vshrl.u32 %v426, 7
    %v428 = vsub.s32 %v425, %v427
    %v429 = vrot.slane %v415, %v428
    %v430 = vcombine.high %v223, 0
    %v432 = vunpack.c.l.s4 1983009808
    %v433 = vunpack.c.0.s8 %v432
    %v434 = vlaneseq
    %v435 = vshrl.u32 %v434, 7
    %v436 = vsub.s32 %v433, %v435
    %v437 = vrot.slane %v223, %v436
    %v439 = vunpack.c.l.s4 1983009808
    %v440 = vunpack.c.0.s8 %v439
    %v441 = vlaneseq
    %v442 = vshrl.u32 %v441, 7
    %v443 = vsub.s32 %v440, %v442
    %v444 = vrot.slane %v430, %v443
    %v445 = vcombine.low %v422, %v437
    %v446 = vcombine.high %v422, %v437
    %v448 = vunpack.c.l.s4 1934713408
    %v449 = vunpack.c.0.s8 %v448
    %v450 = vlaneseq
    %v451 = vshrl.u32 %v450, 7
    %v452 = vsub.s32 %v449, %v451
    %v453 = vrot.slane %v445, %v452
    %v455 = vunpack.c.l.s4 1934713408
    %v456 = vunpack.c.0.s8 %v455
    %v457 = vlaneseq
    %v458 = vshrl.u32 %v457, 7
    %v459 = vsub.s32 %v456, %v458
    %v460 = vrot.slane %v446, %v459
    %v461 = vcombine.low %v429, %v444
    %v462 = vcombine.high %v429, %v444
    %v464 = vunpack.c.l.s4 1934713408
    %v465 = vunpack.c.0.s8 %v464
    %v466 = vlaneseq
    %v467 = vshrl.u32 %v466, 7
    %v468 = vsub.s32 %v465, %v467
    %v469 = vrot.slane %v461, %v468
    %v471 = vunpack.c.l.s4 1934713408
    %v472 = vunpack.c.0.s8 %v471
    %v473 = vlaneseq
    %v474 = vshrl.u32 %v473, 7
    %v475 = vsub.s32 %v472, %v474
    %v476 = vrot.slane %v462, %v475
    %v477 = vcombine.high %v453, 0
    %v478 = vcombine.high %v460, 0
    %v479 = vcombine.high %v469, 0
    %v480 = vcombine.high %v476, 0
    %v481 = vcombine.low %v160, %v294
    %v482 = vcombine.high %v160, %v294
    %v484 = vunpack.c.l.s4 1983009808
    %v485 = vunpack.c.0.s8 %v484
    %v486 = vlaneseq
    %v487 = vshrl.u32 %v486, 7
    %v488 = vsub.s32 %v485, %v487
    %v489 = vrot.slane %v481, %v488
    %v491 = vunpack.c.l.s4 1983009808
    %v492 = vunpack.c.0.s8 %v491
    %v493 = vlaneseq
    %v494 = vshrl.u32 %v493, 7
    %v495 = vsub.s32 %v492, %v494
    %v496 = vrot.slane %v482, %v495
    %v497 = vcombine.high %v227, 0
    %v499 = vunpack.c.l.s4 1983009808
    %v500 = vunpack.c.0.s8 %v499
    %v501 = vlaneseq
    %v502 = vshrl.u32 %v501, 7
    %v503 = vsub.s32 %v500, %v502
    %v504 = vrot.slane %v227, %v503
    %v506 = vunpack.c.l.s4 1983009808
    %v507 = vunpack.c.0.s8 %v506
    %v508 = vlaneseq
    %v509 = vshrl.u32 %v508, 7
    %v510 = vsub.s32 %v507, %v509
    %v511 = vrot.slane %v497, %v510
    %v512 = vcombine.low %v489, %v504
    %v513 = vcombine.high %v489, %v504
    %v515 = vunpack.c.l.s4 1934713408
    %v516 = vunpack.c.0.s8 %v515
    %v517 = vlaneseq
    %v518 = vshrl.u32 %v517, 7
    %v519 = vsub.s32 %v516, %v518
    %v520 = vrot.slane %v512, %v519
    %v522 = vunpack.c.l.s4 1934713408
    %v523 = vunpack.c.0.s8 %v522
    %v524 = vlaneseq
    %v525 = vshrl.u32 %v524, 7
    %v526 = vsub.s32 %v523, %v525
    %v527 = vrot.slane %v513, %v526
    %v528 = vcombine.low %v496, %v511
    %v529 = vcombine.high %v496, %v511
    %v531 = vunpack.c.l.s4 1934713408
    %v532 = vunpack.c.0.s8 %v531
    %v533 = vlaneseq
    %v534 = vshrl.u32 %v533, 7
    %v535 = vsub.s32 %v532, %v534
    %v536 = vrot.slane %v528, %v535
    %v538 = vunpack.c.l.s4 1934713408
    %v539 = vunpack.c.0.s8 %v538
    %v540 = vlaneseq
    %v541 = vshrl.u32 %v540, 7
    %v542 = vsub.s32 %v539, %v541
    %v543 = vrot.slane %v529, %v542
    %v544 = vcombine.high %v520, 0
    %v545 = vcombine.high %v527, 0
    %v546 = vcombine.high %v536, 0
    %v547 = vcombine.high %v543, 0
    %v548 = vcombine.low %v164, %v298
    %v549 = vcombine.high %v164, %v298
    %v551 = vunpack.c.l.s4 1983009808
    %v552 = vunpack.c.0.s8 %v551
    %v553 = vlaneseq
    %v554 = vshrl.u32 %v553, 7
    %v555 = vsub.s32 %v552, %v554
    %v556 = vrot.slane %v548, %v555
    %v558 = vunpack.c.l.s4 1983009808
    %v559 = vunpack.c.0.s8 %v558
    %v560 = vlaneseq
    %v561 = vshrl.u32 %v560, 7
    %v562 = vsub.s32 %v559, %v561
    %v563 = vrot.slane %v549, %v562
    %v564 = vcombine.high %v231, 0
    %v566 = vunpack.c.l.s4 1983009808
    %v567 = vunpack.c.0.s8 %v566
    %v568 = vlaneseq
    %v569 = vshrl.u32 %v568, 7
    %v570 = vsub.s32 %v567, %v569
    %v571 = vrot.slane %v231, %v570
    %v573 = vunpack.c.l.s4 1983009808
    %v574 = vunpack.c.0.s8 %v573
    %v575 = vlaneseq
    %v576 = vshrl.u32 %v575, 7
    %v577 = vsub.s32 %v574, %v576
    %v578 = vrot.slane %v564, %v577
    %v579 = vcombine.low %v556, %v571
    %v580 = vcombine.high %v556, %v571
    %v582 = vunpack.c.l.s4 1934713408
    %v583 = vunpack.c.0.s8 %v582
    %v584 = vlaneseq
    %v585 = vshrl.u32 %v584, 7
    %v586 = vsub.s32 %v583, %v585
    %v587 = vrot.slane %v579, %v586
    %v589 = vunpack.c.l.s4 1934713408
    %v590 = vunpack.c.0.s8 %v589
    %v591 = vlaneseq
    %v592 = vshrl.u32 %v591, 7
    %v593 = vsub.s32 %v590, %v592
    %v594 = vrot.slane %v580, %v593
    %v595 = vcombine.low %v563, %v578
    %v596 = vcombine.high %v563, %v578
    %v598 = vunpack.c.l.s4 1934713408
    %v599 = vunpack.c.0.s8 %v598
    %v600 = vlaneseq
    %v601 = vshrl.u32 %v600, 7
    %v602 = vsub.s32 %v599, %v601
    %v603 = vrot.slane %v595, %v602
    %v605 = vunpack.c.l.s4 1934713408
    %v606 = vunpack.c.0.s8 %v605
    %v607 = vlaneseq
    %v608 = vshrl.u32 %v607, 7
    %v609 = vsub.s32 %v606, %v608
    %v610 = vrot.slane %v596, %v609
    %v611 = vcombine.high %v587, 0
    %v612 = vcombine.high %v594, 0
    %v613 = vcombine.high %v603, 0
    %v614 = vcombine.high %v610, 0
    %v615 = vcombine.low %v168, %v302
    %v616 = vcombine.high %v168, %v302
    %v618 = vunpack.c.l.s4 1983009808
    %v619 = vunpack.c.0.s8 %v618
    %v620 = vlaneseq
    %v621 = vshrl.u32 %v620, 7
    %v622 = vsub.s32 %v619, %v621
    %v623 = vrot.slane %v615, %v622
    %v625 = vunpack.c.l.s4 1983009808
    %v626 = vunpack.c.0.s8 %v625
    %v627 = vlaneseq
    %v628 = vshrl.u32 %v627, 7
    %v629 = vsub.s32 %v626, %v628
    %v630 = vrot.slane %v616, %v629
    %v631 = vcombine.high %v235, 0
    %v633 = vunpack.c.l.s4 1983009808
    %v634 = vunpack.c.0.s8 %v633
    %v635 = vlaneseq
    %v636 = vshrl.u32 %v635, 7
    %v637 = vsub.s32 %v634, %v636
    %v638 = vrot.slane %v235, %v637
    %v640 = vunpack.c.l.s4 1983009808
    %v641 = vunpack.c.0.s8 %v640
    %v642 = vlaneseq
    %v643 = vshrl.u32 %v642, 7
    %v644 = vsub.s32 %v641, %v643
    %v645 = vrot.slane %v631, %v644
    %v646 = vcombine.low %v623, %v638
    %v647 = vcombine.high %v623, %v638
    %v649 = vunpack.c.l.s4 1934713408
    %v650 = vunpack.c.0.s8 %v649
    %v651 = vlaneseq
    %v652 = vshrl.u32 %v651, 7
    %v653 = vsub.s32 %v650, %v652
    %v654 = vrot.slane %v646, %v653
    %v656 = vunpack.c.l.s4 1934713408
    %v657 = vunpack.c.0.s8 %v656
    %v658 = vlaneseq
    %v659 = vshrl.u32 %v658, 7
    %v660 = vsub.s32 %v657, %v659
    %v661 = vrot.slane %v647, %v660
    %v662 = vcombine.low %v630, %v645
    %v663 = vcombine.high %v630, %v645
    %v665 = vunpack.c.l.s4 1934713408
    %v666 = vunpack.c.0.s8 %v665
    %v667 = vlaneseq
    %v668 = vshrl.u32 %v667, 7
    %v669 = vsub.s32 %v666, %v668
    %v670 = vrot.slane %v662, %v669
    %v672 = vunpack.c.l.s4 1934713408
    %v673 = vunpack.c.0.s8 %v672
    %v674 = vlaneseq
    %v675 = vshrl.u32 %v674, 7
    %v676 = vsub.s32 %v673, %v675
    %v677 = vrot.slane %v663, %v676
    %v678 = vcombine.high %v654, 0
    %v679 = vcombine.high %v661, 0
    %v680 = vcombine.high %v670, 0
    %v681 = vcombine.high %v677, 0
    %v682 = vcombine.low %v172, %v306
    %v683 = vcombine.high %v172, %v306
    %v685 = vunpack.c.l.s4 1983009808
    %v686 = vunpack.c.0.s8 %v685
    %v687 = vlaneseq
    %v688 = vshrl.u32 %v687, 7
    %v689 = vsub.s32 %v686, %v688
    %v690 = vrot.slane %v682, %v689
    %v692 = vunpack.c.l.s4 1983009808
    %v693 = vunpack.c.0.s8 %v692
    %v694 = vlaneseq
    %v695 = vshrl.u32 %v694, 7
    %v696 = vsub.s32 %v693, %v695
    %v697 = vrot.slane %v683, %v696
    %v698 = vcombine.high %v239, 0
    %v700 = vunpack.c.l.s4 1983009808
    %v701 = vunpack.c.0.s8 %v700
    %v702 = vlaneseq
    %v703 = vshrl.u32 %v702, 7
    %v704 = vsub.s32 %v701, %v703
    %v705 = vrot.slane %v239, %v704
    %v707 = vunpack.c.l.s4 1983009808
    %v708 = vunpack.c.0.s8 %v707
    %v709 = vlaneseq
    %v710 = vshrl.u32 %v709, 7
    %v711 = vsub.s32 %v708, %v710
    %v712 = vrot.slane %v698, %v711
    %v713 = vcombine.low %v690, %v705
    %v714 = vcombine.high %v690, %v705
    %v716 = vunpack.c.l.s4 1934713408
    %v717 = vunpack.c.0.s8 %v716
    %v718 = vlaneseq
    %v719 = vshrl.u32 %v718, 7
    %v720 = vsub.s32 %v717, %v719
    %v721 = vrot.slane %v713, %v720
    %v723 = vunpack.c.l.s4 1934713408
    %v724 = vunpack.c.0.s8 %v723
    %v725 = vlaneseq
    %v726 = vshrl.u32 %v725, 7
    %v727 = vsub.s32 %v724, %v726
    %v728 = vrot.slane %v714, %v727
    %v729 = vcombine.low %v697, %v712
    %v730 = vcombine.high %v697, %v712
    %v732 = vunpack.c.l.s4 1934713408
    %v733 = vunpack.c.0.s8 %v732
    %v734 = vlaneseq
    %v735 = vshrl.u32 %v734, 7
    %v736 = vsub.s32 %v733, %v735
    %v737 = vrot.slane %v729, %v736
    %v739 = vunpack.c.l.s4 1934713408
    %v740 = vunpack.c.0.s8 %v739
    %v741 = vlaneseq
    %v742 = vshrl.u32 %v741, 7
    %v743 = vsub.s32 %v740, %v742
    %v744 = vrot.slane %v730, %v743
    %v745 = vcombine.high %v721, 0
    %v746 = vcombine.high %v728, 0
    %v747 = vcombine.high %v737, 0
    %v748 = vcombine.high %v744, 0
    %v749 = vcombine.low %v176, %v310
    %v750 = vcombine.high %v176, %v310
    %v752 = vunpack.c.l.s4 1983009808
    %v753 = vunpack.c.0.s8 %v752
    %v754 = vlaneseq
    %v755 = vshrl.u32 %v754, 7
    %v756 = vsub.s32 %v753, %v755
    %v757 = vrot.slane %v749, %v756
    %v759 = vunpack.c.l.s4 1983009808
    %v760 = vunpack.c.0.s8 %v759
    %v761 = vlaneseq
    %v762 = vshrl.u32 %v761, 7
    %v763 = vsub.s32 %v760, %v762
    %v764 = vrot.slane %v750, %v763
    %v765 = vcombine.high %v243, 0
    %v767 = vunpack.c.l.s4 1983009808
    %v768 = vunpack.c.0.s8 %v767
    %v769 = vlaneseq
    %v770 = vshrl.u32 %v769, 7
    %v771 = vsub.s32 %v768, %v770
    %v772 = vrot.slane %v243, %v771
    %v774 = vunpack.c.l.s4 1983009808
    %v775 = vunpack.c.0.s8 %v774
    %v776 = vlaneseq
    %v777 = vshrl.u32 %v776, 7
    %v778 = vsub.s32 %v775, %v777
    %v779 = vrot.slane %v765, %v778
    %v780 = vcombine.low %v757, %v772
    %v781 = vcombine.high %v757, %v772
    %v783 = vunpack.c.l.s4 1934713408
    %v784 = vunpack.c.0.s8 %v783
    %v785 = vlaneseq
    %v786 = vshrl.u32 %v785, 7
    %v787 = vsub.s32 %v784, %v786
    %v788 = vrot.slane %v780, %v787
    %v790 = vunpack.c.l.s4 1934713408
    %v791 = vunpack.c.0.s8 %v790
    %v792 = vlaneseq
    %v793 = vshrl.u32 %v792, 7
    %v794 = vsub.s32 %v791, %v793
    %v795 = vrot.slane %v781, %v794
    %v796 = vcombine.low %v764, %v779
    %v797 = vcombine.high %v764, %v779
    %v799 = vunpack.c.l.s4 1934713408
    %v800 = vunpack.c.0.s8 %v799
    %v801 = vlaneseq
    %v802 = vshrl.u32 %v801, 7
    %v803 = vsub.s32 %v800, %v802
    %v804 = vrot.slane %v796, %v803
    %v806 = vunpack.c.l.s4 1934713408
    %v807 = vunpack.c.0.s8 %v806
    %v808 = vlaneseq
    %v809 = vshrl.u32 %v808, 7
    %v810 = vsub.s32 %v807, %v809
    %v811 = vrot.slane %v797, %v810
    %v812 = vcombine.high %v788, 0
    %v813 = vcombine.high %v795, 0
    %v814 = vcombine.high %v804, 0
    %v815 = vcombine.high %v811, 0
    %v816 = vcombine.low %v180, %v314
    %v817 = vcombine.high %v180, %v314
    %v819 = vunpack.c.l.s4 1983009808
    %v820 = vunpack.c.0.s8 %v819
    %v821 = vlaneseq
    %v822 = vshrl.u32 %v821, 7
    %v823 = vsub.s32 %v820, %v822
    %v824 = vrot.slane %v816, %v823
    %v826 = vunpack.c.l.s4 1983009808
    %v827 = vunpack.c.0.s8 %v826
    %v828 = vlaneseq
    %v829 = vshrl.u32 %v828, 7
    %v830 = vsub.s32 %v827, %v829
    %v831 = vrot.slane %v817, %v830
    %v832 = vcombine.high %v247, 0
    %v834 = vunpack.c.l.s4 1983009808
    %v835 = vunpack.c.0.s8 %v834
    %v836 = vlaneseq
    %v837 = vshrl.u32 %v836, 7
    %v838 = vsub.s32 %v835, %v837
    %v839 = vrot.slane %v247, %v838
    %v841 = vunpack.c.l.s4 1983009808
    %v842 = vunpack.c.0.s8 %v841
    %v843 = vlaneseq
    %v844 = vshrl.u32 %v843, 7
    %v845 = vsub.s32 %v842, %v844
    %v846 = vrot.slane %v832, %v845
    %v847 = vcombine.low %v824, %v839
    %v848 = vcombine.high %v824, %v839
    %v850 = vunpack.c.l.s4 1934713408
    %v851 = vunpack.c.0.s8 %v850
    %v852 = vlaneseq
    %v853 = vshrl.u32 %v852, 7
    %v854 = vsub.s32 %v851, %v853
    %v855 = vrot.slane %v847, %v854
    %v857 = vunpack.c.l.s4 1934713408
    %v858 = vunpack.c.0.s8 %v857
    %v859 = vlaneseq
    %v860 = vshrl.u32 %v859, 7
    %v861 = vsub.s32 %v858, %v860
    %v862 = vrot.slane %v848, %v861
    %v863 = vcombine.low %v831, %v846
    %v864 = vcombine.high %v831, %v846
    %v866 = vunpack.c.l.s4 1934713408
    %v867 = vunpack.c.0.s8 %v866
    %v868 = vlaneseq
    %v869 = vshrl.u32 %v868, 7
    %v870 = vsub.s32 %v867, %v869
    %v871 = vrot.slane %v863, %v870
    %v873 = vunpack.c.l.s4 1934713408
    %v874 = vunpack.c.0.s8 %v873
    %v875 = vlaneseq
    %v876 = vshrl.u32 %v875, 7
    %v877 = vsub.s32 %v874, %v876
    %v878 = vrot.slane %v864, %v877
    %v879 = vcombine.high %v855, 0
    %v880 = vcombine.high %v862, 0
    %v881 = vcombine.high %v871, 0
    %v882 = vcombine.high %v878, 0
    %v883 = vcombine.low %v184, %v318
    %v884 = vcombine.high %v184, %v318
    %v886 = vunpack.c.l.s4 1983009808
    %v887 = vunpack.c.0.s8 %v886
    %v888 = vlaneseq
    %v889 = vshrl.u32 %v888, 7
    %v890 = vsub.s32 %v887, %v889
    %v891 = vrot.slane %v883, %v890
    %v893 = vunpack.c.l.s4 1983009808
    %v894 = vunpack.c.0.s8 %v893
    %v895 = vlaneseq
    %v896 = vshrl.u32 %v895, 7
    %v897 = vsub.s32 %v894, %v896
    %v898 = vrot.slane %v884, %v897
    %v899 = vcombine.high %v251, 0
    %v901 = vunpack.c.l.s4 1983009808
    %v902 = vunpack.c.0.s8 %v901
    %v903 = vlaneseq
    %v904 = vshrl.u32 %v903, 7
    %v905 = vsub.s32 %v902, %v904
    %v906 = vrot.slane %v251, %v905
    %v908 = vunpack.c.l.s4 1983009808
    %v909 = vunpack.c.0.s8 %v908
    %v910 = vlaneseq
    %v911 = vshrl.u32 %v910, 7
    %v912 = vsub.s32 %v909, %v911
    %v913 = vrot.slane %v899, %v912
    %v914 = vcombine.low %v891, %v906
    %v915 = vcombine.high %v891, %v906
    %v917 = vunpack.c.l.s4 1934713408
    %v918 = vunpack.c.0.s8 %v917
    %v919 = vlaneseq
    %v920 = vshrl.u32 %v919, 7
    %v921 = vsub.s32 %v918, %v920
    %v922 = vrot.slane %v914, %v921
    %v924 = vunpack.c.l.s4 1934713408
    %v925 = vunpack.c.0.s8 %v924
    %v926 = vlaneseq
    %v927 = vshrl.u32 %v926, 7
    %v928 = vsub.s32 %v925, %v927
    %v929 = vrot.slane %v915, %v928
    %v930 = vcombine.low %v898, %v913
    %v931 = vcombine.high %v898, %v913
    %v933 = vunpack.c.l.s4 1934713408
    %v934 = vunpack.c.0.s8 %v933
    %v935 = vlaneseq
    %v936 = vshrl.u32 %v935, 7
    %v937 = vsub.s32 %v934, %v936
    %v938 = vrot.slane %v930, %v937
    %v940 = vunpack.c.l.s4 1934713408
    %v941 = vunpack.c.0.s8 %v940
    %v942 = vlaneseq
    %v943 = vshrl.u32 %v942, 7
    %v944 = vsub.s32 %v941, %v943
    %v945 = vrot.slane %v931, %v944
    %v946 = vcombine.high %v922, 0
    %v947 = vcombine.high %v929, 0
    %v948 = vcombine.high %v938, 0
    %v949 = vcombine.high %v945, 0
    %v950 = vcombine.low %v188, %v322
    %v951 = vcombine.high %v188, %v322
    %v953 = vunpack.c.l.s4 1983009808
    %v954 = vunpack.c.0.s8 %v953
    %v955 = vlaneseq
    %v956 = vshrl.u32 %v955, 7
    %v957 = vsub.s32 %v954, %v956
    %v958 = vrot.slane %v950, %v957
    %v960 = vunpack.c.l.s4 1983009808
    %v961 = vunpack.c.0.s8 %v960
    %v962 = vlaneseq
    %v963 = vshrl.u32 %v962, 7
    %v964 = vsub.s32 %v961, %v963
    %v965 = vrot.slane %v951, %v964
    %v966 = vcombine.high %v255, 0
    %v968 = vunpack.c.l.s4 1983009808
    %v969 = vunpack.c.0.s8 %v968
    %v970 = vlaneseq
    %v971 = vshrl.u32 %v970, 7
    %v972 = vsub.s32 %v969, %v971
    %v973 = vrot.slane %v255, %v972
    %v975 = vunpack.c.l.s4 1983009808
    %v976 = vunpack.c.0.s8 %v975
    %v977 = vlaneseq
    %v978 = vshrl.u32 %v977, 7
    %v979 = vsub.s32 %v976, %v978
    %v980 = vrot.slane %v966, %v979
    %v981 = vcombine.low %v958, %v973
    %v982 = vcombine.high %v958, %v973
    %v984 = vunpack.c.l.s4 1934713408
    %v985 = vunpack.c.0.s8 %v984
    %v986 = vlaneseq
    %v987 = vshrl.u32 %v986, 7
    %v988 = vsub.s32 %v985, %v987
    %v989 = vrot.slane %v981, %v988
    %v991 = vunpack.c.l.s4 1934713408
    %v992 = vunpack.c.0.s8 %v991
    %v993 = vlaneseq
    %v994 = vshrl.u32 %v993, 7
    %v995 = vsub.s32 %v992, %v994
    %v996 = vrot.slane %v982, %v995
    %v997 = vcombine.low %v965, %v980
    %v998 = vcombine.high %v965, %v980
    %v1000 = vunpack.c.l.s4 1934713408
    %v1001 = vunpack.c.0.s8 %v1000
    %v1002 = vlaneseq
    %v1003 = vshrl.u32 %v1002, 7
    %v1004 = vsub.s32 %v1001, %v1003
    %v1005 = vrot.slane %v997, %v1004
    %v1007 = vunpack.c.l.s4 1934713408
    %v1008 = vunpack.c.0.s8 %v1007
    %v1009 = vlaneseq
    %v1010 = vshrl.u32 %v1009, 7
    %v1011 = vsub.s32 %v1008, %v1010
    %v1012 = vrot.slane %v998, %v1011
    %v1013 = vcombine.high %v989, 0
    %v1014 = vcombine.high %v996, 0
    %v1015 = vcombine.high %v1005, 0
    %v1016 = vcombine.high %v1012, 0
    %v1017 = vcombine.low %v192, %v326
    %v1018 = vcombine.high %v192, %v326
    %v1020 = vunpack.c.l.s4 1983009808
    %v1021 = vunpack.c.0.s8 %v1020
    %v1022 = vlaneseq
    %v1023 = vshrl.u32 %v1022, 7
    %v1024 = vsub.s32 %v1021, %v1023
    %v1025 = vrot.slane %v1017, %v1024
    %v1027 = vunpack.c.l.s4 1983009808
    %v1028 = vunpack.c.0.s8 %v1027
    %v1029 = vlaneseq
    %v1030 = vshrl.u32 %v1029, 7
    %v1031 = vsub.s32 %v1028, %v1030
    %v1032 = vrot.slane %v1018, %v1031
    %v1033 = vcombine.high %v259, 0
    %v1035 = vunpack.c.l.s4 1983009808
    %v1036 = vunpack.c.0.s8 %v1035
    %v1037 = vlaneseq
    %v1038 = vshrl.u32 %v1037, 7
    %v1039 = vsub.s32 %v1036, %v1038
    %v1040 = vrot.slane %v259, %v1039
    %v1042 = vunpack.c.l.s4 1983009808
    %v1043 = vunpack.c.0.s8 %v1042
    %v1044 = vlaneseq
    %v1045 = vshrl.u32 %v1044, 7
    %v1046 = vsub.s32 %v1043, %v1045
    %v1047 = vrot.slane %v1033, %v1046
    %v1048 = vcombine.low %v1025, %v1040
    %v1049 = vcombine.high %v1025, %v1040
    %v1051 = vunpack.c.l.s4 1934713408
    %v1052 = vunpack.c.0.s8 %v1051
    %v1053 = vlaneseq
    %v1054 = vshrl.u32 %v1053, 7
    %v1055 = vsub.s32 %v1052, %v1054
    %v1056 = vrot.slane %v1048, %v1055
    %v1058 = vunpack.c.l.s4 1934713408
    %v1059 = vunpack.c.0.s8 %v1058
    %v1060 = vlaneseq
    %v1061 = vshrl.u32 %v1060, 7
    %v1062 = vsub.s32 %v1059, %v1061
    %v1063 = vrot.slane %v1049, %v1062
    %v1064 = vcombine.low %v1032, %v1047
    %v1065 = vcombine.high %v1032, %v1047
    %v1067 = vunpack.c.l.s4 1934713408
    %v1068 = vunpack.c.0.s8 %v1067
    %v1069 = vlaneseq
    %v1070 = vshrl.u32 %v1069, 7
    %v1071 = vsub.s32 %v1068, %v1070
    %v1072 = vrot.slane %v1064, %v1071
    %v1074 = vunpack.c.l.s4 1934713408
    %v1075 = vunpack.c.0.s8 %v1074
    %v1076 = vlaneseq
    %v1077 = vshrl.u32 %v1076, 7
    %v1078 = vsub.s32 %v1075, %v1077
    %v1079 = vrot.slane %v1065, %v1078
    %v1080 = vcombine.high %v1056, 0
    %v1081 = vcombine.high %v1063, 0
    %v1082 = vcombine.high %v1072, 0
    %v1083 = vcombine.high %v1079, 0
    %v1084 = vcombine.low %v196, %v330
    %v1085 = vcombine.high %v196, %v330
    %v1087 = vunpack.c.l.s4 1983009808
    %v1088 = vunpack.c.0.s8 %v1087
    %v1089 = vlaneseq
    %v1090 = vshrl.u32 %v1089, 7
    %v1091 = vsub.s32 %v1088, %v1090
    %v1092 = vrot.slane %v1084, %v1091
    %v1094 = vunpack.c.l.s4 1983009808
    %v1095 = vunpack.c.0.s8 %v1094
    %v1096 = vlaneseq
    %v1097 = vshrl.u32 %v1096, 7
    %v1098 = vsub.s32 %v1095, %v1097
    %v1099 = vrot.slane %v1085, %v1098
    %v1100 = vcombine.high %v263, 0
    %v1102 = vunpack.c.l.s4 1983009808
    %v1103 = vunpack.c.0.s8 %v1102
    %v1104 = vlaneseq
    %v1105 = vshrl.u32 %v1104, 7
    %v1106 = vsub.s32 %v1103, %v1105
    %v1107 = vrot.slane %v263, %v1106
    %v1109 = vunpack.c.l.s4 1983009808
    %v1110 = vunpack.c.0.s8 %v1109
    %v1111 = vlaneseq
    %v1112 = vshrl.u32 %v1111, 7
    %v1113 = vsub.s32 %v1110, %v1112
    %v1114 = vrot.slane %v1100, %v1113
    %v1115 = vcombine.low %v1092, %v1107
    %v1116 = vcombine.high %v1092, %v1107
    %v1118 = vunpack.c.l.s4 1934713408
    %v1119 = vunpack.c.0.s8 %v1118
    %v1120 = vlaneseq
    %v1121 = vshrl.u32 %v1120, 7
    %v1122 = vsub.s32 %v1119, %v1121
    %v1123 = vrot.slane %v1115, %v1122
    %v1125 = vunpack.c.l.s4 1934713408
    %v1126 = vunpack.c.0.s8 %v1125
    %v1127 = vlaneseq
    %v1128 = vshrl.u32 %v1127, 7
    %v1129 = vsub.s32 %v1126, %v1128
    %v1130 = vrot.slane %v1116, %v1129
    %v1131 = vcombine.low %v1099, %v1114
    %v1132 = vcombine.high %v1099, %v1114
    %v1134 = vunpack.c.l.s4 1934713408
    %v1135 = vunpack.c.0.s8 %v1134
    %v1136 = vlaneseq
    %v1137 = vshrl.u32 %v1136, 7
    %v1138 = vsub.s32 %v1135, %v1137
    %v1139 = vrot.slane %v1131, %v1138
    %v1141 = vunpack.c.l.s4 1934713408
    %v1142 = vunpack.c.0.s8 %v1141
    %v1143 = vlaneseq
    %v1144 = vshrl.u32 %v1143, 7
    %v1145 = vsub.s32 %v1142, %v1144
    %v1146 = vrot.slane %v1132, %v1145
    %v1147 = vcombine.high %v1123, 0
    %v1148 = vcombine.high %v1130, 0
    %v1149 = vcombine.high %v1139, 0
    %v1150 = vcombine.high %v1146, 0
    %v1151 = vcombine.low %v200, %v334
    %v1152 = vcombine.high %v200, %v334
    %v1154 = vunpack.c.l.s4 1983009808
    %v1155 = vunpack.c.0.s8 %v1154
    %v1156 = vlaneseq
    %v1157 = vshrl.u32 %v1156, 7
    %v1158 = vsub.s32 %v1155, %v1157
    %v1159 = vrot.slane %v1151, %v1158
    %v1161 = vunpack.c.l.s4 1983009808
    %v1162 = vunpack.c.0.s8 %v1161
    %v1163 = vlaneseq
    %v1164 = vshrl.u32 %v1163, 7
    %v1165 = vsub.s32 %v1162, %v1164
    %v1166 = vrot.slane %v1152, %v1165
    %v1167 = vcombine.high %v267, 0
    %v1169 = vunpack.c.l.s4 1983009808
    %v1170 = vunpack.c.0.s8 %v1169
    %v1171 = vlaneseq
    %v1172 = vshrl.u32 %v1171, 7
    %v1173 = vsub.s32 %v1170, %v1172
    %v1174 = vrot.slane %v267, %v1173
    %v1176 = vunpack.c.l.s4 1983009808
    %v1177 = vunpack.c.0.s8 %v1176
    %v1178 = vlaneseq
    %v1179 = vshrl.u32 %v1178, 7
    %v1180 = vsub.s32 %v1177, %v1179
    %v1181 = vrot.slane %v1167, %v1180
    %v1182 = vcombine.low %v1159, %v1174
    %v1183 = vcombine.high %v1159, %v1174
    %v1185 = vunpack.c.l.s4 1934713408
    %v1186 = vunpack.c.0.s8 %v1185
    %v1187 = vlaneseq
    %v1188 = vshrl.u32 %v1187, 7
    %v1189 = vsub.s32 %v1186, %v1188
    %v1190 = vrot.slane %v1182, %v1189
    %v1192 = vunpack.c.l.s4 1934713408
    %v1193 = vunpack.c.0.s8 %v1192
    %v1194 = vlaneseq
    %v1195 = vshrl.u32 %v1194, 7
    %v1196 = vsub.s32 %v1193, %v1195
    %v1197 = vrot.slane %v1183, %v1196
    %v1198 = vcombine.low %v1166, %v1181
    %v1199 = vcombine.high %v1166, %v1181
    %v1201 = vunpack.c.l.s4 1934713408
    %v1202 = vunpack.c.0.s8 %v1201
    %v1203 = vlaneseq
    %v1204 = vshrl.u32 %v1203, 7
    %v1205 = vsub.s32 %v1202, %v1204
    %v1206 = vrot.slane %v1198, %v1205
    %v1208 = vunpack.c.l.s4 1934713408
    %v1209 = vunpack.c.0.s8 %v1208
    %v1210 = vlaneseq
    %v1211 = vshrl.u32 %v1210, 7
    %v1212 = vsub.s32 %v1209, %v1211
    %v1213 = vrot.slane %v1199, %v1212
    %v1214 = vcombine.high %v1190, 0
    %v1215 = vcombine.high %v1197, 0
    %v1216 = vcombine.high %v1206, 0
    %v1217 = vcombine.high %v1213, 0
    %v1218 = vcombine.low %v204, %v338
    %v1219 = vcombine.high %v204, %v338
    %v1221 = vunpack.c.l.s4 1983009808
    %v1222 = vunpack.c.0.s8 %v1221
    %v1223 = vlaneseq
    %v1224 = vshrl.u32 %v1223, 7
    %v1225 = vsub.s32 %v1222, %v1224
    %v1226 = vrot.slane %v1218, %v1225
    %v1228 = vunpack.c.l.s4 1983009808
    %v1229 = vunpack.c.0.s8 %v1228
    %v1230 = vlaneseq
    %v1231 = vshrl.u32 %v1230, 7
    %v1232 = vsub.s32 %v1229, %v1231
    %v1233 = vrot.slane %v1219, %v1232
    %v1234 = vcombine.high %v271, 0
    %v1236 = vunpack.c.l.s4 1983009808
    %v1237 = vunpack.c.0.s8 %v1236
    %v1238 = vlaneseq
    %v1239 = vshrl.u32 %v1238, 7
    %v1240 = vsub.s32 %v1237, %v1239
    %v1241 = vrot.slane %v271, %v1240
    %v1243 = vunpack.c.l.s4 1983009808
    %v1244 = vunpack.c.0.s8 %v1243
    %v1245 = vlaneseq
    %v1246 = vshrl.u32 %v1245, 7
    %v1247 = vsub.s32 %v1244, %v1246
    %v1248 = vrot.slane %v1234, %v1247
    %v1249 = vcombine.low %v1226, %v1241
    %v1250 = vcombine.high %v1226, %v1241
    %v1252 = vunpack.c.l.s4 1934713408
    %v1253 = vunpack.c.0.s8 %v1252
    %v1254 = vlaneseq
    %v1255 = vshrl.u32 %v1254, 7
    %v1256 = vsub.s32 %v1253, %v1255
    %v1257 = vrot.slane %v1249, %v1256
    %v1259 = vunpack.c.l.s4 1934713408
    %v1260 = vunpack.c.0.s8 %v1259
    %v1261 = vlaneseq
    %v1262 = vshrl.u32 %v1261, 7
    %v1263 = vsub.s32 %v1260, %v1262
    %v1264 = vrot.slane %v1250, %v1263
    %v1265 = vcombine.low %v1233, %v1248
    %v1266 = vcombine.high %v1233, %v1248
    %v1268 = vunpack.c.l.s4 1934713408
    %v1269 = vunpack.c.0.s8 %v1268
    %v1270 = vlaneseq
    %v1271 = vshrl.u32 %v1270, 7
    %v1272 = vsub.s32 %v1269, %v1271
    %v1273 = vrot.slane %v1265, %v1272
    %v1275 = vunpack.c.l.s4 1934713408
    %v1276 = vunpack.c.0.s8 %v1275
    %v1277 = vlaneseq
    %v1278 = vshrl.u32 %v1277, 7
    %v1279 = vsub.s32 %v1276, %v1278
    %v1280 = vrot.slane %v1266, %v1279
    %v1281 = vcombine.high %v1257, 0
    %v1282 = vcombine.high %v1264, 0
    %v1283 = vcombine.high %v1273, 0
    %v1284 = vcombine.high %v1280, 0
    %v1285 = vcombine.low %v208, %v342
    %v1286 = vcombine.high %v208, %v342
    %v1288 = vunpack.c.l.s4 1983009808
    %v1289 = vunpack.c.0.s8 %v1288
    %v1290 = vlaneseq
    %v1291 = vshrl.u32 %v1290, 7
    %v1292 = vsub.s32 %v1289, %v1291
    %v1293 = vrot.slane %v1285, %v1292
    %v1295 = vunpack.c.l.s4 1983009808
    %v1296 = vunpack.c.0.s8 %v1295
    %v1297 = vlaneseq
    %v1298 = vshrl.u32 %v1297, 7
    %v1299 = vsub.s32 %v1296, %v1298
    %v1300 = vrot.slane %v1286, %v1299
    %v1301 = vcombine.high %v275, 0
    %v1303 = vunpack.c.l.s4 1983009808
    %v1304 = vunpack.c.0.s8 %v1303
    %v1305 = vlaneseq
    %v1306 = vshrl.u32 %v1305, 7
    %v1307 = vsub.s32 %v1304, %v1306
    %v1308 = vrot.slane %v275, %v1307
    %v1310 = vunpack.c.l.s4 1983009808
    %v1311 = vunpack.c.0.s8 %v1310
    %v1312 = vlaneseq
    %v1313 = vshrl.u32 %v1312, 7
    %v1314 = vsub.s32 %v1311, %v1313
    %v1315 = vrot.slane %v1301, %v1314
    %v1316 = vcombine.low %v1293, %v1308
    %v1317 = vcombine.high %v1293, %v1308
    %v1319 = vunpack.c.l.s4 1934713408
    %v1320 = vunpack.c.0.s8 %v1319
    %v1321 = vlaneseq
    %v1322 = vshrl.u32 %v1321, 7
    %v1323 = vsub.s32 %v1320, %v1322
    %v1324 = vrot.slane %v1316, %v1323
    %v1326 = vunpack.c.l.s4 1934713408
    %v1327 = vunpack.c.0.s8 %v1326
    %v1328 = vlaneseq
    %v1329 = vshrl.u32 %v1328, 7
    %v1330 = vsub.s32 %v1327, %v1329
    %v1331 = vrot.slane %v1317, %v1330
    %v1332 = vcombine.low %v1300, %v1315
    %v1333 = vcombine.high %v1300, %v1315
    %v1335 = vunpack.c.l.s4 1934713408
    %v1336 = vunpack.c.0.s8 %v1335
    %v1337 = vlaneseq
    %v1338 = vshrl.u32 %v1337, 7
    %v1339 = vsub.s32 %v1336, %v1338
    %v1340 = vrot.slane %v1332, %v1339
    %v1342 = vunpack.c.l.s4 1934713408
    %v1343 = vunpack.c.0.s8 %v1342
    %v1344 = vlaneseq
    %v1345 = vshrl.u32 %v1344, 7
    %v1346 = vsub.s32 %v1343, %v1345
    %v1347 = vrot.slane %v1333, %v1346
    %v1348 = vcombine.high %v1324, 0
    %v1349 = vcombine.high %v1331, 0
    %v1350 = vcombine.high %v1340, 0
    %v1351 = vcombine.high %v1347, 0
    %v1352 = vcombine.low %v212, %v346
    %v1353 = vcombine.high %v212, %v346
    %v1355 = vunpack.c.l.s4 1983009808
    %v1356 = vunpack.c.0.s8 %v1355
    %v1357 = vlaneseq
    %v1358 = vshrl.u32 %v1357, 7
    %v1359 = vsub.s32 %v1356, %v1358
    %v1360 = vrot.slane %v1352, %v1359
    %v1362 = vunpack.c.l.s4 1983009808
    %v1363 = vunpack.c.0.s8 %v1362
    %v1364 = vlaneseq
    %v1365 = vshrl.u32 %v1364, 7
    %v1366 = vsub.s32 %v1363, %v1365
    %v1367 = vrot.slane %v1353, %v1366
    %v1368 = vcombine.high %v279, 0
    %v1370 = vunpack.c.l.s4 1983009808
    %v1371 = vunpack.c.0.s8 %v1370
    %v1372 = vlaneseq
    %v1373 = vshrl.u32 %v1372, 7
    %v1374 = vsub.s32 %v1371, %v1373
    %v1375 = vrot.slane %v279, %v1374
    %v1377 = vunpack.c.l.s4 1983009808
    %v1378 = vunpack.c.0.s8 %v1377
    %v1379 = vlaneseq
    %v1380 = vshrl.u32 %v1379, 7
    %v1381 = vsub.s32 %v1378, %v1380
    %v1382 = vrot.slane %v1368, %v1381
    %v1383 = vcombine.low %v1360, %v1375
    %v1384 = vcombine.high %v1360, %v1375
    %v1386 = vunpack.c.l.s4 1934713408
    %v1387 = vunpack.c.0.s8 %v1386
    %v1388 = vlaneseq
    %v1389 = vshrl.u32 %v1388, 7
    %v1390 = vsub.s32 %v1387, %v1389
    %v1391 = vrot.slane %v1383, %v1390
    %v1393 = vunpack.c.l.s4 1934713408
    %v1394 = vunpack.c.0.s8 %v1393
    %v1395 = vlaneseq
    %v1396 = vshrl.u32 %v1395, 7
    %v1397 = vsub.s32 %v1394, %v1396
    %v1398 = vrot.slane %v1384, %v1397
    %v1399 = vcombine.low %v1367, %v1382
    %v1400 = vcombine.high %v1367, %v1382
    %v1402 = vunpack.c.l.s4 1934713408
    %v1403 = vunpack.c.0.s8 %v1402
    %v1404 = vlaneseq
    %v1405 = vshrl.u32 %v1404, 7
    %v1406 = vsub.s32 %v1403, %v1405
    %v1407 = vrot.slane %v1399, %v1406
    %v1409 = vunpack.c.l.s4 1934713408
    %v1410 = vunpack.c.0.s8 %v1409
    %v1411 = vlaneseq
    %v1412 = vshrl.u32 %v1411, 7
    %v1413 = vsub.s32 %v1410, %v1412
    %v1414 = vrot.slane %v1400, %v1413
    %v1415 = vcombine.high %v1391, 0
    %v1416 = vcombine.high %v1398, 0
    %v1417 = vcombine.high %v1407, 0
    %v1418 = vcombine.high %v1414, 0
    %1419 = vrot.lane.b32.xlu0 %v410, 8
    %v1420 = vpop.permute.xlu0 %1419
    %1421 = vrot.lane.b32.xlu0 %v393, 16
    %v1422 = vpop.permute.xlu0 %1421
    %1423 = vrot.lane.b32.xlu0 %v411, 24
    %v1424 = vpop.permute.xlu0 %1423
    %1425 = vrot.lane.b32.xlu0 %v402, 32
    %v1426 = vpop.permute.xlu0 %1425
    %1427 = vrot.lane.b32.xlu0 %v412, 40
    %v1428 = vpop.permute.xlu0 %1427
    %1429 = vrot.lane.b32.xlu0 %v409, 48
    %v1430 = vpop.permute.xlu0 %1429
    %1431 = vrot.lane.b32.xlu0 %v413, 56
    %v1432 = vpop.permute.xlu0 %1431
    %1433 = vrot.lane.b32.xlu0 %v453, 64
    %v1434 = vpop.permute.xlu0 %1433
    %1435 = vrot.lane.b32.xlu0 %v477, 72
    %v1436 = vpop.permute.xlu0 %1435
    %1437 = vrot.lane.b32.xlu0 %v460, 80
    %v1438 = vpop.permute.xlu0 %1437
    %1439 = vrot.lane.b32.xlu0 %v478, 88
    %v1440 = vpop.permute.xlu0 %1439
    %1441 = vrot.lane.b32.xlu0 %v469, 96
    %v1442 = vpop.permute.xlu0 %1441
    %1443 = vrot.lane.b32.xlu0 %v479, 104
    %v1444 = vpop.permute.xlu0 %1443
    %1445 = vrot.lane.b32.xlu0 %v476, 112
    %v1446 = vpop.permute.xlu0 %1445
    %1447 = vrot.lane.b32.xlu0 %v480, 120
    %v1448 = vpop.permute.xlu0 %1447
    %1449 = vrot.lane.b32.xlu0 %v544, 8
    %v1450 = vpop.permute.xlu0 %1449
    %1451 = vrot.lane.b32.xlu0 %v527, 16
    %v1452 = vpop.permute.xlu0 %1451
    %1453 = vrot.lane.b32.xlu0 %v545, 24
    %v1454 = vpop.permute.xlu0 %1453
    %1455 = vrot.lane.b32.xlu0 %v536, 32
    %v1456 = vpop.permute.xlu0 %1455
    %1457 = vrot.lane.b32.xlu0 %v546, 40
    %v1458 = vpop.permute.xlu0 %1457
    %1459 = vrot.lane.b32.xlu0 %v543, 48
    %v1460 = vpop.permute.xlu0 %1459
    %1461 = vrot.lane.b32.xlu0 %v547, 56
    %v1462 = vpop.permute.xlu0 %1461
    %1463 = vrot.lane.b32.xlu0 %v587, 64
    %v1464 = vpop.permute.xlu0 %1463
    %1465 = vrot.lane.b32.xlu0 %v611, 72
    %v1466 = vpop.permute.xlu0 %1465
    %1467 = vrot.lane.b32.xlu0 %v594, 80
    %v1468 = vpop.permute.xlu0 %1467
    %1469 = vrot.lane.b32.xlu0 %v612, 88
    %v1470 = vpop.permute.xlu0 %1469
    %1471 = vrot.lane.b32.xlu0 %v603, 96
    %v1472 = vpop.permute.xlu0 %1471
    %1473 = vrot.lane.b32.xlu0 %v613, 104
    %v1474 = vpop.permute.xlu0 %1473
    %1475 = vrot.lane.b32.xlu0 %v610, 112
    %v1476 = vpop.permute.xlu0 %1475
    %1477 = vrot.lane.b32.xlu0 %v614, 120
    %v1478 = vpop.permute.xlu0 %1477
    %1479 = vrot.lane.b32.xlu0 %v678, 8
    %v1480 = vpop.permute.xlu0 %1479
    %1481 = vrot.lane.b32.xlu0 %v661, 16
    %v1482 = vpop.permute.xlu0 %1481
    %1483 = vrot.lane.b32.xlu0 %v679, 24
    %v1484 = vpop.permute.xlu0 %1483
    %1485 = vrot.lane.b32.xlu0 %v670, 32
    %v1486 = vpop.permute.xlu0 %1485
    %1487 = vrot.lane.b32.xlu0 %v680, 40
    %v1488 = vpop.permute.xlu0 %1487
    %1489 = vrot.lane.b32.xlu0 %v677, 48
    %v1490 = vpop.permute.xlu0 %1489
    %1491 = vrot.lane.b32.xlu0 %v681, 56
    %v1492 = vpop.permute.xlu0 %1491
    %1493 = vrot.lane.b32.xlu0 %v721, 64
    %v1494 = vpop.permute.xlu0 %1493
    %1495 = vrot.lane.b32.xlu0 %v745, 72
    %v1496 = vpop.permute.xlu0 %1495
    %1497 = vrot.lane.b32.xlu0 %v728, 80
    %v1498 = vpop.permute.xlu0 %1497
    %1499 = vrot.lane.b32.xlu0 %v746, 88
    %v1500 = vpop.permute.xlu0 %1499
    %1501 = vrot.lane.b32.xlu0 %v737, 96
    %v1502 = vpop.permute.xlu0 %1501
    %1503 = vrot.lane.b32.xlu0 %v747, 104
    %v1504 = vpop.permute.xlu0 %1503
    %1505 = vrot.lane.b32.xlu0 %v744, 112
    %v1506 = vpop.permute.xlu0 %1505
    %1507 = vrot.lane.b32.xlu0 %v748, 120
    %v1508 = vpop.permute.xlu0 %1507
    %1509 = vrot.lane.b32.xlu0 %v812, 8
    %v1510 = vpop.permute.xlu0 %1509
    %1511 = vrot.lane.b32.xlu0 %v795, 16
    %v1512 = vpop.permute.xlu0 %1511
    %1513 = vrot.lane.b32.xlu0 %v813, 24
    %v1514 = vpop.permute.xlu0 %1513
    %1515 = vrot.lane.b32.xlu0 %v804, 32
    %v1516 = vpop.permute.xlu0 %1515
    %1517 = vrot.lane.b32.xlu0 %v814, 40
    %v1518 = vpop.permute.xlu0 %1517
    %1519 = vrot.lane.b32.xlu0 %v811, 48
    %v1520 = vpop.permute.xlu0 %1519
    %1521 = vrot.lane.b32.xlu0 %v815, 56
    %v1522 = vpop.permute.xlu0 %1521
    %1523 = vrot.lane.b32.xlu0 %v855, 64
    %v1524 = vpop.permute.xlu0 %1523
    %1525 = vrot.lane.b32.xlu0 %v879, 72
    %v1526 = vpop.permute.xlu0 %1525
    %1527 = vrot.lane.b32.xlu0 %v862, 80
    %v1528 = vpop.permute.xlu0 %1527
    %1529 = vrot.lane.b32.xlu0 %v880, 88
    %v1530 = vpop.permute.xlu0 %1529
    %1531 = vrot.lane.b32.xlu0 %v871, 96
    %v1532 = vpop.permute.xlu0 %1531
    %1533 = vrot.lane.b32.xlu0 %v881, 104
    %v1534 = vpop.permute.xlu0 %1533
    %1535 = vrot.lane.b32.xlu0 %v878, 112
    %v1536 = vpop.permute.xlu0 %1535
    %1537 = vrot.lane.b32.xlu0 %v882, 120
    %v1538 = vpop.permute.xlu0 %1537
    %1539 = vrot.lane.b32.xlu0 %v946, 8
    %v1540 = vpop.permute.xlu0 %1539
    %1541 = vrot.lane.b32.xlu0 %v929, 16
    %v1542 = vpop.permute.xlu0 %1541
    %1543 = vrot.lane.b32.xlu0 %v947, 24
    %v1544 = vpop.permute.xlu0 %1543
    %1545 = vrot.lane.b32.xlu0 %v938, 32
    %v1546 = vpop.permute.xlu0 %1545
    %1547 = vrot.lane.b32.xlu0 %v948, 40
    %v1548 = vpop.permute.xlu0 %1547
    %1549 = vrot.lane.b32.xlu0 %v945, 48
    %v1550 = vpop.permute.xlu0 %1549
    %1551 = vrot.lane.b32.xlu0 %v949, 56
    %v1552 = vpop.permute.xlu0 %1551
    %1553 = vrot.lane.b32.xlu0 %v989, 64
    %v1554 = vpop.permute.xlu0 %1553
    %1555 = vrot.lane.b32.xlu0 %v1013, 72
    %v1556 = vpop.permute.xlu0 %1555
    %1557 = vrot.lane.b32.xlu0 %v996, 80
    %v1558 = vpop.permute.xlu0 %1557
    %1559 = vrot.lane.b32.xlu0 %v1014, 88
    %v1560 = vpop.permute.xlu0 %1559
    %1561 = vrot.lane.b32.xlu0 %v1005, 96
    %v1562 = vpop.permute.xlu0 %1561
    %1563 = vrot.lane.b32.xlu0 %v1015, 104
    %v1564 = vpop.permute.xlu0 %1563
    %1565 = vrot.lane.b32.xlu0 %v1012, 112
    %v1566 = vpop.permute.xlu0 %1565
    %1567 = vrot.lane.b32.xlu0 %v1016, 120
    %v1568 = vpop.permute.xlu0 %1567
    %1569 = vrot.lane.b32.xlu0 %v1080, 8
    %v1570 = vpop.permute.xlu0 %1569
    %1571 = vrot.lane.b32.xlu0 %v1063, 16
    %v1572 = vpop.permute.xlu0 %1571
    %1573 = vrot.lane.b32.xlu0 %v1081, 24
    %v1574 = vpop.permute.xlu0 %1573
    %1575 = vrot.lane.b32.xlu0 %v1072, 32
    %v1576 = vpop.permute.xlu0 %1575
    %1577 = vrot.lane.b32.xlu0 %v1082, 40
    %v1578 = vpop.permute.xlu0 %1577
    %1579 = vrot.lane.b32.xlu0 %v1079, 48
    %v1580 = vpop.permute.xlu0 %1579
    %1581 = vrot.lane.b32.xlu0 %v1083, 56
    %v1582 = vpop.permute.xlu0 %1581
    %1583 = vrot.lane.b32.xlu0 %v1123, 64
    %v1584 = vpop.permute.xlu0 %1583
    %1585 = vrot.lane.b32.xlu0 %v1147, 72
    %v1586 = vpop.permute.xlu0 %1585
    %1587 = vrot.lane.b32.xlu0 %v1130, 80
    %v1588 = vpop.permute.xlu0 %1587
    %1589 = vrot.lane.b32.xlu0 %v1148, 88
    %v1590 = vpop.permute.xlu0 %1589
    %1591 = vrot.lane.b32.xlu0 %v1139, 96
    %v1592 = vpop.permute.xlu0 %1591
    %1593 = vrot.lane.b32.xlu0 %v1149, 104
    %v1594 = vpop.permute.xlu0 %1593
    %1595 = vrot.lane.b32.xlu0 %v1146, 112
    %v1596 = vpop.permute.xlu0 %1595
    %1597 = vrot.lane.b32.xlu0 %v1150, 120
    %v1598 = vpop.permute.xlu0 %1597
    %1599 = vrot.lane.b32.xlu0 %v1214, 8
    %v1600 = vpop.permute.xlu0 %1599
    %1601 = vrot.lane.b32.xlu0 %v1197, 16
    %v1602 = vpop.permute.xlu0 %1601
    %1603 = vrot.lane.b32.xlu0 %v1215, 24
    %v1604 = vpop.permute.xlu0 %1603
    %1605 = vrot.lane.b32.xlu0 %v1206, 32
    %v1606 = vpop.permute.xlu0 %1605
    %1607 = vrot.lane.b32.xlu0 %v1216, 40
    %v1608 = vpop.permute.xlu0 %1607
    %1609 = vrot.lane.b32.xlu0 %v1213, 48
    %v1610 = vpop.permute.xlu0 %1609
    %1611 = vrot.lane.b32.xlu0 %v1217, 56
    %v1612 = vpop.permute.xlu0 %1611
    %1613 = vrot.lane.b32.xlu0 %v1257, 64
    %v1614 = vpop.permute.xlu0 %1613
    %1615 = vrot.lane.b32.xlu0 %v1281, 72
    %v1616 = vpop.permute.xlu0 %1615
    %1617 = vrot.lane.b32.xlu0 %v1264, 80
    %v1618 = vpop.permute.xlu0 %1617
    %1619 = vrot.lane.b32.xlu0 %v1282, 88
    %v1620 = vpop.permute.xlu0 %1619
    %1621 = vrot.lane.b32.xlu0 %v1273, 96
    %v1622 = vpop.permute.xlu0 %1621
    %1623 = vrot.lane.b32.xlu0 %v1283, 104
    %v1624 = vpop.permute.xlu0 %1623
    %1625 = vrot.lane.b32.xlu0 %v1280, 112
    %v1626 = vpop.permute.xlu0 %1625
    %1627 = vrot.lane.b32.xlu0 %v1284, 120
    %v1628 = vpop.permute.xlu0 %1627
    %1629 = vrot.lane.b32.xlu0 %v1348, 8
    %v1630 = vpop.permute.xlu0 %1629
    %1631 = vrot.lane.b32.xlu0 %v1331, 16
    %v1632 = vpop.permute.xlu0 %1631
    %1633 = vrot.lane.b32.xlu0 %v1349, 24
    %v1634 = vpop.permute.xlu0 %1633
    %1635 = vrot.lane.b32.xlu0 %v1340, 32
    %v1636 = vpop.permute.xlu0 %1635
    %1637 = vrot.lane.b32.xlu0 %v1350, 40
    %v1638 = vpop.permute.xlu0 %1637
    %1639 = vrot.lane.b32.xlu0 %v1347, 48
    %v1640 = vpop.permute.xlu0 %1639
    %1641 = vrot.lane.b32.xlu0 %v1351, 56
    %v1642 = vpop.permute.xlu0 %1641
    %1643 = vrot.lane.b32.xlu0 %v1391, 64
    %v1644 = vpop.permute.xlu0 %1643
    %1645 = vrot.lane.b32.xlu0 %v1415, 72
    %v1646 = vpop.permute.xlu0 %1645
    %1647 = vrot.lane.b32.xlu0 %v1398, 80
    %v1648 = vpop.permute.xlu0 %1647
    %1649 = vrot.lane.b32.xlu0 %v1416, 88
    %v1650 = vpop.permute.xlu0 %1649
    %1651 = vrot.lane.b32.xlu0 %v1407, 96
    %v1652 = vpop.permute.xlu0 %1651
    %1653 = vrot.lane.b32.xlu0 %v1417, 104
    %v1654 = vpop.permute.xlu0 %1653
    %1655 = vrot.lane.b32.xlu0 %v1414, 112
    %v1656 = vpop.permute.xlu0 %1655
    %1657 = vrot.lane.b32.xlu0 %v1418, 120
    %v1658 = vpop.permute.xlu0 %1657
    %vm1659 = vcmask 64512
    %v1660 = vsel %vm1659, %v386, %v1420
    %vm1661 = vcmask 130048
    %v1662 = vsel %vm1661, %v1660, %v1422
    %vm1663 = vcmask 195584
    %v1664 = vsel %vm1663, %v1662, %v1424
    %vm1665 = vcmask 261120
    %v1666 = vsel %vm1665, %v1664, %v1426
    %vm1667 = vcmask 326656
    %v1668 = vsel %vm1667, %v1666, %v1428
    %vm1669 = vcmask 392192
    %v1670 = vsel %vm1669, %v1668, %v1430
    %vm1671 = vcmask 457728
    %v1672 = vsel %vm1671, %v1670, %v1432
    %vm1673 = vcmask 523264
    %v1674 = vsel %vm1673, %v1672, %v1434
    %vm1675 = vcmask 588800
    %v1676 = vsel %vm1675, %v1674, %v1436
    %vm1677 = vcmask 654336
    %v1678 = vsel %vm1677, %v1676, %v1438
    %vm1679 = vcmask 719872
    %v1680 = vsel %vm1679, %v1678, %v1440
    %vm1681 = vcmask 785408
    %v1682 = vsel %vm1681, %v1680, %v1442
    %vm1683 = vcmask 850944
    %v1684 = vsel %vm1683, %v1682, %v1444
    %vm1685 = vcmask 916480
    %v1686 = vsel %vm1685, %v1684, %v1446
    %vm1687 = vcmask 982016
    %v1688 = vsel %vm1687, %v1686, %v1448
    %v1689 = vsel %vm1659, %v520, %v1450
    %v1690 = vsel %vm1661, %v1689, %v1452
    %v1691 = vsel %vm1663, %v1690, %v1454
    %v1692 = vsel %vm1665, %v1691, %v1456
    %v1693 = vsel %vm1667, %v1692, %v1458
    %v1694 = vsel %vm1669, %v1693, %v1460
    %v1695 = vsel %vm1671, %v1694, %v1462
    %v1696 = vsel %vm1673, %v1695, %v1464
    %v1697 = vsel %vm1675, %v1696, %v1466
    %v1698 = vsel %vm1677, %v1697, %v1468
    %v1699 = vsel %vm1679, %v1698, %v1470
    %v1700 = vsel %vm1681, %v1699, %v1472
    %v1701 = vsel %vm1683, %v1700, %v1474
    %v1702 = vsel %vm1685, %v1701, %v1476
    %v1703 = vsel %vm1687, %v1702, %v1478
    %v1704 = vsel %vm1659, %v654, %v1480
    %v1705 = vsel %vm1661, %v1704, %v1482
    %v1706 = vsel %vm1663, %v1705, %v1484
    %v1707 = vsel %vm1665, %v1706, %v1486
    %v1708 = vsel %vm1667, %v1707, %v1488
    %v1709 = vsel %vm1669, %v1708, %v1490
    %v1710 = vsel %vm1671, %v1709, %v1492
    %v1711 = vsel %vm1673, %v1710, %v1494
    %v1712 = vsel %vm1675, %v1711, %v1496
    %v1713 = vsel %vm1677, %v1712, %v1498
    %v1714 = vsel %vm1679, %v1713, %v1500
    %v1715 = vsel %vm1681, %v1714, %v1502
    %v1716 = vsel %vm1683, %v1715, %v1504
    %v1717 = vsel %vm1685, %v1716, %v1506
    %v1718 = vsel %vm1687, %v1717, %v1508
    %v1719 = vsel %vm1659, %v788, %v1510
    %v1720 = vsel %vm1661, %v1719, %v1512
    %v1721 = vsel %vm1663, %v1720, %v1514
    %v1722 = vsel %vm1665, %v1721, %v1516
    %v1723 = vsel %vm1667, %v1722, %v1518
    %v1724 = vsel %vm1669, %v1723, %v1520
    %v1725 = vsel %vm1671, %v1724, %v1522
    %v1726 = vsel %vm1673, %v1725, %v1524
    %v1727 = vsel %vm1675, %v1726, %v1526
    %v1728 = vsel %vm1677, %v1727, %v1528
    %v1729 = vsel %vm1679, %v1728, %v1530
    %v1730 = vsel %vm1681, %v1729, %v1532
    %v1731 = vsel %vm1683, %v1730, %v1534
    %v1732 = vsel %vm1685, %v1731, %v1536
    %v1733 = vsel %vm1687, %v1732, %v1538
    %v1734 = vsel %vm1659, %v922, %v1540
    %v1735 = vsel %vm1661, %v1734, %v1542
    %v1736 = vsel %vm1663, %v1735, %v1544
    %v1737 = vsel %vm1665, %v1736, %v1546
    %v1738 = vsel %vm1667, %v1737, %v1548
    %v1739 = vsel %vm1669, %v1738, %v1550
    %v1740 = vsel %vm1671, %v1739, %v1552
    %v1741 = vsel %vm1673, %v1740, %v1554
    %v1742 = vsel %vm1675, %v1741, %v1556
    %v1743 = vsel %vm1677, %v1742, %v1558
    %v1744 = vsel %vm1679, %v1743, %v1560
    %v1745 = vsel %vm1681, %v1744, %v1562
    %v1746 = vsel %vm1683, %v1745, %v1564
    %v1747 = vsel %vm1685, %v1746, %v1566
    %v1748 = vsel %vm1687, %v1747, %v1568
    %v1749 = vsel %vm1659, %v1056, %v1570
    %v1750 = vsel %vm1661, %v1749, %v1572
    %v1751 = vsel %vm1663, %v1750, %v1574
    %v1752 = vsel %vm1665, %v1751, %v1576
    %v1753 = vsel %vm1667, %v1752, %v1578
    %v1754 = vsel %vm1669, %v1753, %v1580
    %v1755 = vsel %vm1671, %v1754, %v1582
    %v1756 = vsel %vm1673, %v1755, %v1584
    %v1757 = vsel %vm1675, %v1756, %v1586
    %v1758 = vsel %vm1677, %v1757, %v1588
    %v1759 = vsel %vm1679, %v1758, %v1590
    %v1760 = vsel %vm1681, %v1759, %v1592
    %v1761 = vsel %vm1683, %v1760, %v1594
    %v1762 = vsel %vm1685, %v1761, %v1596
    %v1763 = vsel %vm1687, %v1762, %v1598
    %v1764 = vsel %vm1659, %v1190, %v1600
    %v1765 = vsel %vm1661, %v1764, %v1602
    %v1766 = vsel %vm1663, %v1765, %v1604
    %v1767 = vsel %vm1665, %v1766, %v1606
    %v1768 = vsel %vm1667, %v1767, %v1608
    %v1769 = vsel %vm1669, %v1768, %v1610
    %v1770 = vsel %vm1671, %v1769, %v1612
    %v1771 = vsel %vm1673, %v1770, %v1614
    %v1772 = vsel %vm1675, %v1771, %v1616
    %v1773 = vsel %vm1677, %v1772, %v1618
    %v1774 = vsel %vm1679, %v1773, %v1620
    %v1775 = vsel %vm1681, %v1774, %v1622
    %v1776 = vsel %vm1683, %v1775, %v1624
    %v1777 = vsel %vm1685, %v1776, %v1626
    %v1778 = vsel %vm1687, %v1777, %v1628
    %v1779 = vsel %vm1659, %v1324, %v1630
    %v1780 = vsel %vm1661, %v1779, %v1632
    %v1781 = vsel %vm1663, %v1780, %v1634
    %v1782 = vsel %vm1665, %v1781, %v1636
    %v1783 = vsel %vm1667, %v1782, %v1638
    %v1784 = vsel %vm1669, %v1783, %v1640
    %v1785 = vsel %vm1671, %v1784, %v1642
    %v1786 = vsel %vm1673, %v1785, %v1644
    %v1787 = vsel %vm1675, %v1786, %v1646
    %v1788 = vsel %vm1677, %v1787, %v1648
    %v1789 = vsel %vm1679, %v1788, %v1650
    %v1790 = vsel %vm1681, %v1789, %v1652
    %v1791 = vsel %vm1683, %v1790, %v1654
    %v1792 = vsel %vm1685, %v1791, %v1656
    %v1793 = vsel %vm1687, %v1792, %v1658
    %v1794 = vlaneseq
    %v1795 = vshrl.u32 %v1794, 7
    %v1796 = vsub.s32 0, %v1795
    %v1797 = vrot.slane %v145, %v1796
    %1799 = vbcast.lane.b32.xlu0 %v1797, 256
    %v1800 = vpop.permute.xlu0 %1799
    %s1802 = sor.u32 256, 8
    %1803 = vbcast.lane.b32.xlu0 %v1797, %s1802
    %v1804 = vpop.permute.xlu0 %1803
    %s1806 = sor.u32 256, 16
    %1807 = vbcast.lane.b32.xlu0 %v1797, %s1806
    %v1808 = vpop.permute.xlu0 %1807
    %s1810 = sor.u32 256, 24
    %1811 = vbcast.lane.b32.xlu0 %v1797, %s1810
    %v1812 = vpop.permute.xlu0 %1811
    %s1814 = sor.u32 256, 32
    %1815 = vbcast.lane.b32.xlu0 %v1797, %s1814
    %v1816 = vpop.permute.xlu0 %1815
    %s1818 = sor.u32 256, 40
    %1819 = vbcast.lane.b32.xlu0 %v1797, %s1818
    %v1820 = vpop.permute.xlu0 %1819
    %s1822 = sor.u32 256, 48
    %1823 = vbcast.lane.b32.xlu0 %v1797, %s1822
    %v1824 = vpop.permute.xlu0 %1823
    %s1826 = sor.u32 256, 56
    %1827 = vbcast.lane.b32.xlu0 %v1797, %s1826
    %v1828 = vpop.permute.xlu0 %1827
    %s1830 = sor.u32 256, 64
    %1831 = vbcast.lane.b32.xlu0 %v1797, %s1830
    %v1832 = vpop.permute.xlu0 %1831
    %s1834 = sor.u32 256, 72
    %1835 = vbcast.lane.b32.xlu0 %v1797, %s1834
    %v1836 = vpop.permute.xlu0 %1835
    %s1838 = sor.u32 256, 80
    %1839 = vbcast.lane.b32.xlu0 %v1797, %s1838
    %v1840 = vpop.permute.xlu0 %1839
    %s1842 = sor.u32 256, 88
    %1843 = vbcast.lane.b32.xlu0 %v1797, %s1842
    %v1844 = vpop.permute.xlu0 %1843
    %s1846 = sor.u32 256, 96
    %1847 = vbcast.lane.b32.xlu0 %v1797, %s1846
    %v1848 = vpop.permute.xlu0 %1847
    %s1850 = sor.u32 256, 104
    %1851 = vbcast.lane.b32.xlu0 %v1797, %s1850
    %v1852 = vpop.permute.xlu0 %1851
    %s1854 = sor.u32 256, 112
    %1855 = vbcast.lane.b32.xlu0 %v1797, %s1854
    %v1856 = vpop.permute.xlu0 %1855
    %s1858 = sor.u32 256, 120
    %1859 = vbcast.lane.b32.xlu0 %v1797, %s1858
    %v1860 = vpop.permute.xlu0 %1859
    %v1861 = vlaneseq
    %v1862 = vshrl.u32 %v1861, 7
    %v1863 = vsub.s32 1, %v1862
    %v1864 = vrot.slane %v145, %v1863
    %1866 = vbcast.lane.b32.xlu0 %v1864, 256
    %v1867 = vpop.permute.xlu0 %1866
    %s1869 = sor.u32 256, 8
    %1870 = vbcast.lane.b32.xlu0 %v1864, %s1869
    %v1871 = vpop.permute.xlu0 %1870
    %s1873 = sor.u32 256, 16
    %1874 = vbcast.lane.b32.xlu0 %v1864, %s1873
    %v1875 = vpop.permute.xlu0 %1874
    %s1877 = sor.u32 256, 24
    %1878 = vbcast.lane.b32.xlu0 %v1864, %s1877
    %v1879 = vpop.permute.xlu0 %1878
    %s1881 = sor.u32 256, 32
    %1882 = vbcast.lane.b32.xlu0 %v1864, %s1881
    %v1883 = vpop.permute.xlu0 %1882
    %s1885 = sor.u32 256, 40
    %1886 = vbcast.lane.b32.xlu0 %v1864, %s1885
    %v1887 = vpop.permute.xlu0 %1886
    %s1889 = sor.u32 256, 48
    %1890 = vbcast.lane.b32.xlu0 %v1864, %s1889
    %v1891 = vpop.permute.xlu0 %1890
    %s1893 = sor.u32 256, 56
    %1894 = vbcast.lane.b32.xlu0 %v1864, %s1893
    %v1895 = vpop.permute.xlu0 %1894
    %s1897 = sor.u32 256, 64
    %1898 = vbcast.lane.b32.xlu0 %v1864, %s1897
    %v1899 = vpop.permute.xlu0 %1898
    %s1901 = sor.u32 256, 72
    %1902 = vbcast.lane.b32.xlu0 %v1864, %s1901
    %v1903 = vpop.permute.xlu0 %1902
    %s1905 = sor.u32 256, 80
    %1906 = vbcast.lane.b32.xlu0 %v1864, %s1905
    %v1907 = vpop.permute.xlu0 %1906
    %s1909 = sor.u32 256, 88
    %1910 = vbcast.lane.b32.xlu0 %v1864, %s1909
    %v1911 = vpop.permute.xlu0 %1910
    %s1913 = sor.u32 256, 96
    %1914 = vbcast.lane.b32.xlu0 %v1864, %s1913
    %v1915 = vpop.permute.xlu0 %1914
    %s1917 = sor.u32 256, 104
    %1918 = vbcast.lane.b32.xlu0 %v1864, %s1917
    %v1919 = vpop.permute.xlu0 %1918
    %s1921 = sor.u32 256, 112
    %1922 = vbcast.lane.b32.xlu0 %v1864, %s1921
    %v1923 = vpop.permute.xlu0 %1922
    %s1925 = sor.u32 256, 120
    %1926 = vbcast.lane.b32.xlu0 %v1864, %s1925
    %v1927 = vpop.permute.xlu0 %1926
    %v1928 = vlaneseq
    %v1929 = vshrl.u32 %v1928, 7
    %v1930 = vsub.s32 2, %v1929
    %v1931 = vrot.slane %v145, %v1930
    %1933 = vbcast.lane.b32.xlu0 %v1931, 256
    %v1934 = vpop.permute.xlu0 %1933
    %s1936 = sor.u32 256, 8
    %1937 = vbcast.lane.b32.xlu0 %v1931, %s1936
    %v1938 = vpop.permute.xlu0 %1937
    %s1940 = sor.u32 256, 16
    %1941 = vbcast.lane.b32.xlu0 %v1931, %s1940
    %v1942 = vpop.permute.xlu0 %1941
    %s1944 = sor.u32 256, 24
    %1945 = vbcast.lane.b32.xlu0 %v1931, %s1944
    %v1946 = vpop.permute.xlu0 %1945
    %s1948 = sor.u32 256, 32
    %1949 = vbcast.lane.b32.xlu0 %v1931, %s1948
    %v1950 = vpop.permute.xlu0 %1949
    %s1952 = sor.u32 256, 40
    %1953 = vbcast.lane.b32.xlu0 %v1931, %s1952
    %v1954 = vpop.permute.xlu0 %1953
    %s1956 = sor.u32 256, 48
    %1957 = vbcast.lane.b32.xlu0 %v1931, %s1956
    %v1958 = vpop.permute.xlu0 %1957
    %s1960 = sor.u32 256, 56
    %1961 = vbcast.lane.b32.xlu0 %v1931, %s1960
    %v1962 = vpop.permute.xlu0 %1961
    %s1964 = sor.u32 256, 64
    %1965 = vbcast.lane.b32.xlu0 %v1931, %s1964
    %v1966 = vpop.permute.xlu0 %1965
    %s1968 = sor.u32 256, 72
    %1969 = vbcast.lane.b32.xlu0 %v1931, %s1968
    %v1970 = vpop.permute.xlu0 %1969
    %s1972 = sor.u32 256, 80
    %1973 = vbcast.lane.b32.xlu0 %v1931, %s1972
    %v1974 = vpop.permute.xlu0 %1973
    %s1976 = sor.u32 256, 88
    %1977 = vbcast.lane.b32.xlu0 %v1931, %s1976
    %v1978 = vpop.permute.xlu0 %1977
    %s1980 = sor.u32 256, 96
    %1981 = vbcast.lane.b32.xlu0 %v1931, %s1980
    %v1982 = vpop.permute.xlu0 %1981
    %s1984 = sor.u32 256, 104
    %1985 = vbcast.lane.b32.xlu0 %v1931, %s1984
    %v1986 = vpop.permute.xlu0 %1985
    %s1988 = sor.u32 256, 112
    %1989 = vbcast.lane.b32.xlu0 %v1931, %s1988
    %v1990 = vpop.permute.xlu0 %1989
    %s1992 = sor.u32 256, 120
    %1993 = vbcast.lane.b32.xlu0 %v1931, %s1992
    %v1994 = vpop.permute.xlu0 %1993
    %v1995 = vcombine.low %v1800, %v1934
    %v1996 = vcombine.high %v1800, %v1934
    %v1998 = vunpack.c.l.s4 1983009808
    %v1999 = vunpack.c.0.s8 %v1998
    %v2000 = vlaneseq
    %v2001 = vshrl.u32 %v2000, 7
    %v2002 = vsub.s32 %v1999, %v2001
    %v2003 = vrot.slane %v1995, %v2002
    %v2005 = vunpack.c.l.s4 1983009808
    %v2006 = vunpack.c.0.s8 %v2005
    %v2007 = vlaneseq
    %v2008 = vshrl.u32 %v2007, 7
    %v2009 = vsub.s32 %v2006, %v2008
    %v2010 = vrot.slane %v1996, %v2009
    %v2011 = vcombine.high %v1867, 0
    %v2013 = vunpack.c.l.s4 1983009808
    %v2014 = vunpack.c.0.s8 %v2013
    %v2015 = vlaneseq
    %v2016 = vshrl.u32 %v2015, 7
    %v2017 = vsub.s32 %v2014, %v2016
    %v2018 = vrot.slane %v1867, %v2017
    %v2020 = vunpack.c.l.s4 1983009808
    %v2021 = vunpack.c.0.s8 %v2020
    %v2022 = vlaneseq
    %v2023 = vshrl.u32 %v2022, 7
    %v2024 = vsub.s32 %v2021, %v2023
    %v2025 = vrot.slane %v2011, %v2024
    %v2026 = vcombine.low %v2003, %v2018
    %v2027 = vcombine.high %v2003, %v2018
    %v2029 = vunpack.c.l.s4 1934713408
    %v2030 = vunpack.c.0.s8 %v2029
    %v2031 = vlaneseq
    %v2032 = vshrl.u32 %v2031, 7
    %v2033 = vsub.s32 %v2030, %v2032
    %v2034 = vrot.slane %v2026, %v2033
    %v2036 = vunpack.c.l.s4 1934713408
    %v2037 = vunpack.c.0.s8 %v2036
    %v2038 = vlaneseq
    %v2039 = vshrl.u32 %v2038, 7
    %v2040 = vsub.s32 %v2037, %v2039
    %v2041 = vrot.slane %v2027, %v2040
    %v2042 = vcombine.low %v2010, %v2025
    %v2043 = vcombine.high %v2010, %v2025
    %v2045 = vunpack.c.l.s4 1934713408
    %v2046 = vunpack.c.0.s8 %v2045
    %v2047 = vlaneseq
    %v2048 = vshrl.u32 %v2047, 7
    %v2049 = vsub.s32 %v2046, %v2048
    %v2050 = vrot.slane %v2042, %v2049
    %v2052 = vunpack.c.l.s4 1934713408
    %v2053 = vunpack.c.0.s8 %v2052
    %v2054 = vlaneseq
    %v2055 = vshrl.u32 %v2054, 7
    %v2056 = vsub.s32 %v2053, %v2055
    %v2057 = vrot.slane %v2043, %v2056
    %v2058 = vcombine.high %v2034, 0
    %v2059 = vcombine.high %v2041, 0
    %v2060 = vcombine.high %v2050, 0
    %v2061 = vcombine.high %v2057, 0
    %v2062 = vcombine.low %v1804, %v1938
    %v2063 = vcombine.high %v1804, %v1938
    %v2065 = vunpack.c.l.s4 1983009808
    %v2066 = vunpack.c.0.s8 %v2065
    %v2067 = vlaneseq
    %v2068 = vshrl.u32 %v2067, 7
    %v2069 = vsub.s32 %v2066, %v2068
    %v2070 = vrot.slane %v2062, %v2069
    %v2072 = vunpack.c.l.s4 1983009808
    %v2073 = vunpack.c.0.s8 %v2072
    %v2074 = vlaneseq
    %v2075 = vshrl.u32 %v2074, 7
    %v2076 = vsub.s32 %v2073, %v2075
    %v2077 = vrot.slane %v2063, %v2076
    %v2078 = vcombine.high %v1871, 0
    %v2080 = vunpack.c.l.s4 1983009808
    %v2081 = vunpack.c.0.s8 %v2080
    %v2082 = vlaneseq
    %v2083 = vshrl.u32 %v2082, 7
    %v2084 = vsub.s32 %v2081, %v2083
    %v2085 = vrot.slane %v1871, %v2084
    %v2087 = vunpack.c.l.s4 1983009808
    %v2088 = vunpack.c.0.s8 %v2087
    %v2089 = vlaneseq
    %v2090 = vshrl.u32 %v2089, 7
    %v2091 = vsub.s32 %v2088, %v2090
    %v2092 = vrot.slane %v2078, %v2091
    %v2093 = vcombine.low %v2070, %v2085
    %v2094 = vcombine.high %v2070, %v2085
    %v2096 = vunpack.c.l.s4 1934713408
    %v2097 = vunpack.c.0.s8 %v2096
    %v2098 = vlaneseq
    %v2099 = vshrl.u32 %v2098, 7
    %v2100 = vsub.s32 %v2097, %v2099
    %v2101 = vrot.slane %v2093, %v2100
    %v2103 = vunpack.c.l.s4 1934713408
    %v2104 = vunpack.c.0.s8 %v2103
    %v2105 = vlaneseq
    %v2106 = vshrl.u32 %v2105, 7
    %v2107 = vsub.s32 %v2104, %v2106
    %v2108 = vrot.slane %v2094, %v2107
    %v2109 = vcombine.low %v2077, %v2092
    %v2110 = vcombine.high %v2077, %v2092
    %v2112 = vunpack.c.l.s4 1934713408
    %v2113 = vunpack.c.0.s8 %v2112
    %v2114 = vlaneseq
    %v2115 = vshrl.u32 %v2114, 7
    %v2116 = vsub.s32 %v2113, %v2115
    %v2117 = vrot.slane %v2109, %v2116
    %v2119 = vunpack.c.l.s4 1934713408
    %v2120 = vunpack.c.0.s8 %v2119
    %v2121 = vlaneseq
    %v2122 = vshrl.u32 %v2121, 7
    %v2123 = vsub.s32 %v2120, %v2122
    %v2124 = vrot.slane %v2110, %v2123
    %v2125 = vcombine.high %v2101, 0
    %v2126 = vcombine.high %v2108, 0
    %v2127 = vcombine.high %v2117, 0
    %v2128 = vcombine.high %v2124, 0
    %v2129 = vcombine.low %v1808, %v1942
    %v2130 = vcombine.high %v1808, %v1942
    %v2132 = vunpack.c.l.s4 1983009808
    %v2133 = vunpack.c.0.s8 %v2132
    %v2134 = vlaneseq
    %v2135 = vshrl.u32 %v2134, 7
    %v2136 = vsub.s32 %v2133, %v2135
    %v2137 = vrot.slane %v2129, %v2136
    %v2139 = vunpack.c.l.s4 1983009808
    %v2140 = vunpack.c.0.s8 %v2139
    %v2141 = vlaneseq
    %v2142 = vshrl.u32 %v2141, 7
    %v2143 = vsub.s32 %v2140, %v2142
    %v2144 = vrot.slane %v2130, %v2143
    %v2145 = vcombine.high %v1875, 0
    %v2147 = vunpack.c.l.s4 1983009808
    %v2148 = vunpack.c.0.s8 %v2147
    %v2149 = vlaneseq
    %v2150 = vshrl.u32 %v2149, 7
    %v2151 = vsub.s32 %v2148, %v2150
    %v2152 = vrot.slane %v1875, %v2151
    %v2154 = vunpack.c.l.s4 1983009808
    %v2155 = vunpack.c.0.s8 %v2154
    %v2156 = vlaneseq
    %v2157 = vshrl.u32 %v2156, 7
    %v2158 = vsub.s32 %v2155, %v2157
    %v2159 = vrot.slane %v2145, %v2158
    %v2160 = vcombine.low %v2137, %v2152
    %v2161 = vcombine.high %v2137, %v2152
    %v2163 = vunpack.c.l.s4 1934713408
    %v2164 = vunpack.c.0.s8 %v2163
    %v2165 = vlaneseq
    %v2166 = vshrl.u32 %v2165, 7
    %v2167 = vsub.s32 %v2164, %v2166
    %v2168 = vrot.slane %v2160, %v2167
    %v2170 = vunpack.c.l.s4 1934713408
    %v2171 = vunpack.c.0.s8 %v2170
    %v2172 = vlaneseq
    %v2173 = vshrl.u32 %v2172, 7
    %v2174 = vsub.s32 %v2171, %v2173
    %v2175 = vrot.slane %v2161, %v2174
    %v2176 = vcombine.low %v2144, %v2159
    %v2177 = vcombine.high %v2144, %v2159
    %v2179 = vunpack.c.l.s4 1934713408
    %v2180 = vunpack.c.0.s8 %v2179
    %v2181 = vlaneseq
    %v2182 = vshrl.u32 %v2181, 7
    %v2183 = vsub.s32 %v2180, %v2182
    %v2184 = vrot.slane %v2176, %v2183
    %v2186 = vunpack.c.l.s4 1934713408
    %v2187 = vunpack.c.0.s8 %v2186
    %v2188 = vlaneseq
    %v2189 = vshrl.u32 %v2188, 7
    %v2190 = vsub.s32 %v2187, %v2189
    %v2191 = vrot.slane %v2177, %v2190
    %v2192 = vcombine.high %v2168, 0
    %v2193 = vcombine.high %v2175, 0
    %v2194 = vcombine.high %v2184, 0
    %v2195 = vcombine.high %v2191, 0
    %v2196 = vcombine.low %v1812, %v1946
    %v2197 = vcombine.high %v1812, %v1946
    %v2199 = vunpack.c.l.s4 1983009808
    %v2200 = vunpack.c.0.s8 %v2199
    %v2201 = vlaneseq
    %v2202 = vshrl.u32 %v2201, 7
    %v2203 = vsub.s32 %v2200, %v2202
    %v2204 = vrot.slane %v2196, %v2203
    %v2206 = vunpack.c.l.s4 1983009808
    %v2207 = vunpack.c.0.s8 %v2206
    %v2208 = vlaneseq
    %v2209 = vshrl.u32 %v2208, 7
    %v2210 = vsub.s32 %v2207, %v2209
    %v2211 = vrot.slane %v2197, %v2210
    %v2212 = vcombine.high %v1879, 0
    %v2214 = vunpack.c.l.s4 1983009808
    %v2215 = vunpack.c.0.s8 %v2214
    %v2216 = vlaneseq
    %v2217 = vshrl.u32 %v2216, 7
    %v2218 = vsub.s32 %v2215, %v2217
    %v2219 = vrot.slane %v1879, %v2218
    %v2221 = vunpack.c.l.s4 1983009808
    %v2222 = vunpack.c.0.s8 %v2221
    %v2223 = vlaneseq
    %v2224 = vshrl.u32 %v2223, 7
    %v2225 = vsub.s32 %v2222, %v2224
    %v2226 = vrot.slane %v2212, %v2225
    %v2227 = vcombine.low %v2204, %v2219
    %v2228 = vcombine.high %v2204, %v2219
    %v2230 = vunpack.c.l.s4 1934713408
    %v2231 = vunpack.c.0.s8 %v2230
    %v2232 = vlaneseq
    %v2233 = vshrl.u32 %v2232, 7
    %v2234 = vsub.s32 %v2231, %v2233
    %v2235 = vrot.slane %v2227, %v2234
    %v2237 = vunpack.c.l.s4 1934713408
    %v2238 = vunpack.c.0.s8 %v2237
    %v2239 = vlaneseq
    %v2240 = vshrl.u32 %v2239, 7
    %v2241 = vsub.s32 %v2238, %v2240
    %v2242 = vrot.slane %v2228, %v2241
    %v2243 = vcombine.low %v2211, %v2226
    %v2244 = vcombine.high %v2211, %v2226
    %v2246 = vunpack.c.l.s4 1934713408
    %v2247 = vunpack.c.0.s8 %v2246
    %v2248 = vlaneseq
    %v2249 = vshrl.u32 %v2248, 7
    %v2250 = vsub.s32 %v2247, %v2249
    %v2251 = vrot.slane %v2243, %v2250
    %v2253 = vunpack.c.l.s4 1934713408
    %v2254 = vunpack.c.0.s8 %v2253
    %v2255 = vlaneseq
    %v2256 = vshrl.u32 %v2255, 7
    %v2257 = vsub.s32 %v2254, %v2256
    %v2258 = vrot.slane %v2244, %v2257
    %v2259 = vcombine.high %v2235, 0
    %v2260 = vcombine.high %v2242, 0
    %v2261 = vcombine.high %v2251, 0
    %v2262 = vcombine.high %v2258, 0
    %v2263 = vcombine.low %v1816, %v1950
    %v2264 = vcombine.high %v1816, %v1950
    %v2266 = vunpack.c.l.s4 1983009808
    %v2267 = vunpack.c.0.s8 %v2266
    %v2268 = vlaneseq
    %v2269 = vshrl.u32 %v2268, 7
    %v2270 = vsub.s32 %v2267, %v2269
    %v2271 = vrot.slane %v2263, %v2270
    %v2273 = vunpack.c.l.s4 1983009808
    %v2274 = vunpack.c.0.s8 %v2273
    %v2275 = vlaneseq
    %v2276 = vshrl.u32 %v2275, 7
    %v2277 = vsub.s32 %v2274, %v2276
    %v2278 = vrot.slane %v2264, %v2277
    %v2279 = vcombine.high %v1883, 0
    %v2281 = vunpack.c.l.s4 1983009808
    %v2282 = vunpack.c.0.s8 %v2281
    %v2283 = vlaneseq
    %v2284 = vshrl.u32 %v2283, 7
    %v2285 = vsub.s32 %v2282, %v2284
    %v2286 = vrot.slane %v1883, %v2285
    %v2288 = vunpack.c.l.s4 1983009808
    %v2289 = vunpack.c.0.s8 %v2288
    %v2290 = vlaneseq
    %v2291 = vshrl.u32 %v2290, 7
    %v2292 = vsub.s32 %v2289, %v2291
    %v2293 = vrot.slane %v2279, %v2292
    %v2294 = vcombine.low %v2271, %v2286
    %v2295 = vcombine.high %v2271, %v2286
    %v2297 = vunpack.c.l.s4 1934713408
    %v2298 = vunpack.c.0.s8 %v2297
    %v2299 = vlaneseq
    %v2300 = vshrl.u32 %v2299, 7
    %v2301 = vsub.s32 %v2298, %v2300
    %v2302 = vrot.slane %v2294, %v2301
    %v2304 = vunpack.c.l.s4 1934713408
    %v2305 = vunpack.c.0.s8 %v2304
    %v2306 = vlaneseq
    %v2307 = vshrl.u32 %v2306, 7
    %v2308 = vsub.s32 %v2305, %v2307
    %v2309 = vrot.slane %v2295, %v2308
    %v2310 = vcombine.low %v2278, %v2293
    %v2311 = vcombine.high %v2278, %v2293
    %v2313 = vunpack.c.l.s4 1934713408
    %v2314 = vunpack.c.0.s8 %v2313
    %v2315 = vlaneseq
    %v2316 = vshrl.u32 %v2315, 7
    %v2317 = vsub.s32 %v2314, %v2316
    %v2318 = vrot.slane %v2310, %v2317
    %v2320 = vunpack.c.l.s4 1934713408
    %v2321 = vunpack.c.0.s8 %v2320
    %v2322 = vlaneseq
    %v2323 = vshrl.u32 %v2322, 7
    %v2324 = vsub.s32 %v2321, %v2323
    %v2325 = vrot.slane %v2311, %v2324
    %v2326 = vcombine.high %v2302, 0
    %v2327 = vcombine.high %v2309, 0
    %v2328 = vcombine.high %v2318, 0
    %v2329 = vcombine.high %v2325, 0
    %v2330 = vcombine.low %v1820, %v1954
    %v2331 = vcombine.high %v1820, %v1954
    %v2333 = vunpack.c.l.s4 1983009808
    %v2334 = vunpack.c.0.s8 %v2333
    %v2335 = vlaneseq
    %v2336 = vshrl.u32 %v2335, 7
    %v2337 = vsub.s32 %v2334, %v2336
    %v2338 = vrot.slane %v2330, %v2337
    %v2340 = vunpack.c.l.s4 1983009808
    %v2341 = vunpack.c.0.s8 %v2340
    %v2342 = vlaneseq
    %v2343 = vshrl.u32 %v2342, 7
    %v2344 = vsub.s32 %v2341, %v2343
    %v2345 = vrot.slane %v2331, %v2344
    %v2346 = vcombine.high %v1887, 0
    %v2348 = vunpack.c.l.s4 1983009808
    %v2349 = vunpack.c.0.s8 %v2348
    %v2350 = vlaneseq
    %v2351 = vshrl.u32 %v2350, 7
    %v2352 = vsub.s32 %v2349, %v2351
    %v2353 = vrot.slane %v1887, %v2352
    %v2355 = vunpack.c.l.s4 1983009808
    %v2356 = vunpack.c.0.s8 %v2355
    %v2357 = vlaneseq
    %v2358 = vshrl.u32 %v2357, 7
    %v2359 = vsub.s32 %v2356, %v2358
    %v2360 = vrot.slane %v2346, %v2359
    %v2361 = vcombine.low %v2338, %v2353
    %v2362 = vcombine.high %v2338, %v2353
    %v2364 = vunpack.c.l.s4 1934713408
    %v2365 = vunpack.c.0.s8 %v2364
    %v2366 = vlaneseq
    %v2367 = vshrl.u32 %v2366, 7
    %v2368 = vsub.s32 %v2365, %v2367
    %v2369 = vrot.slane %v2361, %v2368
    %v2371 = vunpack.c.l.s4 1934713408
    %v2372 = vunpack.c.0.s8 %v2371
    %v2373 = vlaneseq
    %v2374 = vshrl.u32 %v2373, 7
    %v2375 = vsub.s32 %v2372, %v2374
    %v2376 = vrot.slane %v2362, %v2375
    %v2377 = vcombine.low %v2345, %v2360
    %v2378 = vcombine.high %v2345, %v2360
    %v2380 = vunpack.c.l.s4 1934713408
    %v2381 = vunpack.c.0.s8 %v2380
    %v2382 = vlaneseq
    %v2383 = vshrl.u32 %v2382, 7
    %v2384 = vsub.s32 %v2381, %v2383
    %v2385 = vrot.slane %v2377, %v2384
    %v2387 = vunpack.c.l.s4 1934713408
    %v2388 = vunpack.c.0.s8 %v2387
    %v2389 = vlaneseq
    %v2390 = vshrl.u32 %v2389, 7
    %v2391 = vsub.s32 %v2388, %v2390
    %v2392 = vrot.slane %v2378, %v2391
    %v2393 = vcombine.high %v2369, 0
    %v2394 = vcombine.high %v2376, 0
    %v2395 = vcombine.high %v2385, 0
    %v2396 = vcombine.high %v2392, 0
    %v2397 = vcombine.low %v1824, %v1958
    %v2398 = vcombine.high %v1824, %v1958
    %v2400 = vunpack.c.l.s4 1983009808
    %v2401 = vunpack.c.0.s8 %v2400
    %v2402 = vlaneseq
    %v2403 = vshrl.u32 %v2402, 7
    %v2404 = vsub.s32 %v2401, %v2403
    %v2405 = vrot.slane %v2397, %v2404
    %v2407 = vunpack.c.l.s4 1983009808
    %v2408 = vunpack.c.0.s8 %v2407
    %v2409 = vlaneseq
    %v2410 = vshrl.u32 %v2409, 7
    %v2411 = vsub.s32 %v2408, %v2410
    %v2412 = vrot.slane %v2398, %v2411
    %v2413 = vcombine.high %v1891, 0
    %v2415 = vunpack.c.l.s4 1983009808
    %v2416 = vunpack.c.0.s8 %v2415
    %v2417 = vlaneseq
    %v2418 = vshrl.u32 %v2417, 7
    %v2419 = vsub.s32 %v2416, %v2418
    %v2420 = vrot.slane %v1891, %v2419
    %v2422 = vunpack.c.l.s4 1983009808
    %v2423 = vunpack.c.0.s8 %v2422
    %v2424 = vlaneseq
    %v2425 = vshrl.u32 %v2424, 7
    %v2426 = vsub.s32 %v2423, %v2425
    %v2427 = vrot.slane %v2413, %v2426
    %v2428 = vcombine.low %v2405, %v2420
    %v2429 = vcombine.high %v2405, %v2420
    %v2431 = vunpack.c.l.s4 1934713408
    %v2432 = vunpack.c.0.s8 %v2431
    %v2433 = vlaneseq
    %v2434 = vshrl.u32 %v2433, 7
    %v2435 = vsub.s32 %v2432, %v2434
    %v2436 = vrot.slane %v2428, %v2435
    %v2438 = vunpack.c.l.s4 1934713408
    %v2439 = vunpack.c.0.s8 %v2438
    %v2440 = vlaneseq
    %v2441 = vshrl.u32 %v2440, 7
    %v2442 = vsub.s32 %v2439, %v2441
    %v2443 = vrot.slane %v2429, %v2442
    %v2444 = vcombine.low %v2412, %v2427
    %v2445 = vcombine.high %v2412, %v2427
    %v2447 = vunpack.c.l.s4 1934713408
    %v2448 = vunpack.c.0.s8 %v2447
    %v2449 = vlaneseq
    %v2450 = vshrl.u32 %v2449, 7
    %v2451 = vsub.s32 %v2448, %v2450
    %v2452 = vrot.slane %v2444, %v2451
    %v2454 = vunpack.c.l.s4 1934713408
    %v2455 = vunpack.c.0.s8 %v2454
    %v2456 = vlaneseq
    %v2457 = vshrl.u32 %v2456, 7
    %v2458 = vsub.s32 %v2455, %v2457
    %v2459 = vrot.slane %v2445, %v2458
    %v2460 = vcombine.high %v2436, 0
    %v2461 = vcombine.high %v2443, 0
    %v2462 = vcombine.high %v2452, 0
    %v2463 = vcombine.high %v2459, 0
    %v2464 = vcombine.low %v1828, %v1962
    %v2465 = vcombine.high %v1828, %v1962
    %v2467 = vunpack.c.l.s4 1983009808
    %v2468 = vunpack.c.0.s8 %v2467
    %v2469 = vlaneseq
    %v2470 = vshrl.u32 %v2469, 7
    %v2471 = vsub.s32 %v2468, %v2470
    %v2472 = vrot.slane %v2464, %v2471
    %v2474 = vunpack.c.l.s4 1983009808
    %v2475 = vunpack.c.0.s8 %v2474
    %v2476 = vlaneseq
    %v2477 = vshrl.u32 %v2476, 7
    %v2478 = vsub.s32 %v2475, %v2477
    %v2479 = vrot.slane %v2465, %v2478
    %v2480 = vcombine.high %v1895, 0
    %v2482 = vunpack.c.l.s4 1983009808
    %v2483 = vunpack.c.0.s8 %v2482
    %v2484 = vlaneseq
    %v2485 = vshrl.u32 %v2484, 7
    %v2486 = vsub.s32 %v2483, %v2485
    %v2487 = vrot.slane %v1895, %v2486
    %v2489 = vunpack.c.l.s4 1983009808
    %v2490 = vunpack.c.0.s8 %v2489
    %v2491 = vlaneseq
    %v2492 = vshrl.u32 %v2491, 7
    %v2493 = vsub.s32 %v2490, %v2492
    %v2494 = vrot.slane %v2480, %v2493
    %v2495 = vcombine.low %v2472, %v2487
    %v2496 = vcombine.high %v2472, %v2487
    %v2498 = vunpack.c.l.s4 1934713408
    %v2499 = vunpack.c.0.s8 %v2498
    %v2500 = vlaneseq
    %v2501 = vshrl.u32 %v2500, 7
    %v2502 = vsub.s32 %v2499, %v2501
    %v2503 = vrot.slane %v2495, %v2502
    %v2505 = vunpack.c.l.s4 1934713408
    %v2506 = vunpack.c.0.s8 %v2505
    %v2507 = vlaneseq
    %v2508 = vshrl.u32 %v2507, 7
    %v2509 = vsub.s32 %v2506, %v2508
    %v2510 = vrot.slane %v2496, %v2509
    %v2511 = vcombine.low %v2479, %v2494
    %v2512 = vcombine.high %v2479, %v2494
    %v2514 = vunpack.c.l.s4 1934713408
    %v2515 = vunpack.c.0.s8 %v2514
    %v2516 = vlaneseq
    %v2517 = vshrl.u32 %v2516, 7
    %v2518 = vsub.s32 %v2515, %v2517
    %v2519 = vrot.slane %v2511, %v2518
    %v2521 = vunpack.c.l.s4 1934713408
    %v2522 = vunpack.c.0.s8 %v2521
    %v2523 = vlaneseq
    %v2524 = vshrl.u32 %v2523, 7
    %v2525 = vsub.s32 %v2522, %v2524
    %v2526 = vrot.slane %v2512, %v2525
    %v2527 = vcombine.high %v2503, 0
    %v2528 = vcombine.high %v2510, 0
    %v2529 = vcombine.high %v2519, 0
    %v2530 = vcombine.high %v2526, 0
    %v2531 = vcombine.low %v1832, %v1966
    %v2532 = vcombine.high %v1832, %v1966
    %v2534 = vunpack.c.l.s4 1983009808
    %v2535 = vunpack.c.0.s8 %v2534
    %v2536 = vlaneseq
    %v2537 = vshrl.u32 %v2536, 7
    %v2538 = vsub.s32 %v2535, %v2537
    %v2539 = vrot.slane %v2531, %v2538
    %v2541 = vunpack.c.l.s4 1983009808
    %v2542 = vunpack.c.0.s8 %v2541
    %v2543 = vlaneseq
    %v2544 = vshrl.u32 %v2543, 7
    %v2545 = vsub.s32 %v2542, %v2544
    %v2546 = vrot.slane %v2532, %v2545
    %v2547 = vcombine.high %v1899, 0
    %v2549 = vunpack.c.l.s4 1983009808
    %v2550 = vunpack.c.0.s8 %v2549
    %v2551 = vlaneseq
    %v2552 = vshrl.u32 %v2551, 7
    %v2553 = vsub.s32 %v2550, %v2552
    %v2554 = vrot.slane %v1899, %v2553
    %v2556 = vunpack.c.l.s4 1983009808
    %v2557 = vunpack.c.0.s8 %v2556
    %v2558 = vlaneseq
    %v2559 = vshrl.u32 %v2558, 7
    %v2560 = vsub.s32 %v2557, %v2559
    %v2561 = vrot.slane %v2547, %v2560
    %v2562 = vcombine.low %v2539, %v2554
    %v2563 = vcombine.high %v2539, %v2554
    %v2565 = vunpack.c.l.s4 1934713408
    %v2566 = vunpack.c.0.s8 %v2565
    %v2567 = vlaneseq
    %v2568 = vshrl.u32 %v2567, 7
    %v2569 = vsub.s32 %v2566, %v2568
    %v2570 = vrot.slane %v2562, %v2569
    %v2572 = vunpack.c.l.s4 1934713408
    %v2573 = vunpack.c.0.s8 %v2572
    %v2574 = vlaneseq
    %v2575 = vshrl.u32 %v2574, 7
    %v2576 = vsub.s32 %v2573, %v2575
    %v2577 = vrot.slane %v2563, %v2576
    %v2578 = vcombine.low %v2546, %v2561
    %v2579 = vcombine.high %v2546, %v2561
    %v2581 = vunpack.c.l.s4 1934713408
    %v2582 = vunpack.c.0.s8 %v2581
    %v2583 = vlaneseq
    %v2584 = vshrl.u32 %v2583, 7
    %v2585 = vsub.s32 %v2582, %v2584
    %v2586 = vrot.slane %v2578, %v2585
    %v2588 = vunpack.c.l.s4 1934713408
    %v2589 = vunpack.c.0.s8 %v2588
    %v2590 = vlaneseq
    %v2591 = vshrl.u32 %v2590, 7
    %v2592 = vsub.s32 %v2589, %v2591
    %v2593 = vrot.slane %v2579, %v2592
    %v2594 = vcombine.high %v2570, 0
    %v2595 = vcombine.high %v2577, 0
    %v2596 = vcombine.high %v2586, 0
    %v2597 = vcombine.high %v2593, 0
    %v2598 = vcombine.low %v1836, %v1970
    %v2599 = vcombine.high %v1836, %v1970
    %v2601 = vunpack.c.l.s4 1983009808
    %v2602 = vunpack.c.0.s8 %v2601
    %v2603 = vlaneseq
    %v2604 = vshrl.u32 %v2603, 7
    %v2605 = vsub.s32 %v2602, %v2604
    %v2606 = vrot.slane %v2598, %v2605
    %v2608 = vunpack.c.l.s4 1983009808
    %v2609 = vunpack.c.0.s8 %v2608
    %v2610 = vlaneseq
    %v2611 = vshrl.u32 %v2610, 7
    %v2612 = vsub.s32 %v2609, %v2611
    %v2613 = vrot.slane %v2599, %v2612
    %v2614 = vcombine.high %v1903, 0
    %v2616 = vunpack.c.l.s4 1983009808
    %v2617 = vunpack.c.0.s8 %v2616
    %v2618 = vlaneseq
    %v2619 = vshrl.u32 %v2618, 7
    %v2620 = vsub.s32 %v2617, %v2619
    %v2621 = vrot.slane %v1903, %v2620
    %v2623 = vunpack.c.l.s4 1983009808
    %v2624 = vunpack.c.0.s8 %v2623
    %v2625 = vlaneseq
    %v2626 = vshrl.u32 %v2625, 7
    %v2627 = vsub.s32 %v2624, %v2626
    %v2628 = vrot.slane %v2614, %v2627
    %v2629 = vcombine.low %v2606, %v2621
    %v2630 = vcombine.high %v2606, %v2621
    %v2632 = vunpack.c.l.s4 1934713408
    %v2633 = vunpack.c.0.s8 %v2632
    %v2634 = vlaneseq
    %v2635 = vshrl.u32 %v2634, 7
    %v2636 = vsub.s32 %v2633, %v2635
    %v2637 = vrot.slane %v2629, %v2636
    %v2639 = vunpack.c.l.s4 1934713408
    %v2640 = vunpack.c.0.s8 %v2639
    %v2641 = vlaneseq
    %v2642 = vshrl.u32 %v2641, 7
    %v2643 = vsub.s32 %v2640, %v2642
    %v2644 = vrot.slane %v2630, %v2643
    %v2645 = vcombine.low %v2613, %v2628
    %v2646 = vcombine.high %v2613, %v2628
    %v2648 = vunpack.c.l.s4 1934713408
    %v2649 = vunpack.c.0.s8 %v2648
    %v2650 = vlaneseq
    %v2651 = vshrl.u32 %v2650, 7
    %v2652 = vsub.s32 %v2649, %v2651
    %v2653 = vrot.slane %v2645, %v2652
    %v2655 = vunpack.c.l.s4 1934713408
    %v2656 = vunpack.c.0.s8 %v2655
    %v2657 = vlaneseq
    %v2658 = vshrl.u32 %v2657, 7
    %v2659 = vsub.s32 %v2656, %v2658
    %v2660 = vrot.slane %v2646, %v2659
    %v2661 = vcombine.high %v2637, 0
    %v2662 = vcombine.high %v2644, 0
    %v2663 = vcombine.high %v2653, 0
    %v2664 = vcombine.high %v2660, 0
    %v2665 = vcombine.low %v1840, %v1974
    %v2666 = vcombine.high %v1840, %v1974
    %v2668 = vunpack.c.l.s4 1983009808
    %v2669 = vunpack.c.0.s8 %v2668
    %v2670 = vlaneseq
    %v2671 = vshrl.u32 %v2670, 7
    %v2672 = vsub.s32 %v2669, %v2671
    %v2673 = vrot.slane %v2665, %v2672
    %v2675 = vunpack.c.l.s4 1983009808
    %v2676 = vunpack.c.0.s8 %v2675
    %v2677 = vlaneseq
    %v2678 = vshrl.u32 %v2677, 7
    %v2679 = vsub.s32 %v2676, %v2678
    %v2680 = vrot.slane %v2666, %v2679
    %v2681 = vcombine.high %v1907, 0
    %v2683 = vunpack.c.l.s4 1983009808
    %v2684 = vunpack.c.0.s8 %v2683
    %v2685 = vlaneseq
    %v2686 = vshrl.u32 %v2685, 7
    %v2687 = vsub.s32 %v2684, %v2686
    %v2688 = vrot.slane %v1907, %v2687
    %v2690 = vunpack.c.l.s4 1983009808
    %v2691 = vunpack.c.0.s8 %v2690
    %v2692 = vlaneseq
    %v2693 = vshrl.u32 %v2692, 7
    %v2694 = vsub.s32 %v2691, %v2693
    %v2695 = vrot.slane %v2681, %v2694
    %v2696 = vcombine.low %v2673, %v2688
    %v2697 = vcombine.high %v2673, %v2688
    %v2699 = vunpack.c.l.s4 1934713408
    %v2700 = vunpack.c.0.s8 %v2699
    %v2701 = vlaneseq
    %v2702 = vshrl.u32 %v2701, 7
    %v2703 = vsub.s32 %v2700, %v2702
    %v2704 = vrot.slane %v2696, %v2703
    %v2706 = vunpack.c.l.s4 1934713408
    %v2707 = vunpack.c.0.s8 %v2706
    %v2708 = vlaneseq
    %v2709 = vshrl.u32 %v2708, 7
    %v2710 = vsub.s32 %v2707, %v2709
    %v2711 = vrot.slane %v2697, %v2710
    %v2712 = vcombine.low %v2680, %v2695
    %v2713 = vcombine.high %v2680, %v2695
    %v2715 = vunpack.c.l.s4 1934713408
    %v2716 = vunpack.c.0.s8 %v2715
    %v2717 = vlaneseq
    %v2718 = vshrl.u32 %v2717, 7
    %v2719 = vsub.s32 %v2716, %v2718
    %v2720 = vrot.slane %v2712, %v2719
    %v2722 = vunpack.c.l.s4 1934713408
    %v2723 = vunpack.c.0.s8 %v2722
    %v2724 = vlaneseq
    %v2725 = vshrl.u32 %v2724, 7
    %v2726 = vsub.s32 %v2723, %v2725
    %v2727 = vrot.slane %v2713, %v2726
    %v2728 = vcombine.high %v2704, 0
    %v2729 = vcombine.high %v2711, 0
    %v2730 = vcombine.high %v2720, 0
    %v2731 = vcombine.high %v2727, 0
    %v2732 = vcombine.low %v1844, %v1978
    %v2733 = vcombine.high %v1844, %v1978
    %v2735 = vunpack.c.l.s4 1983009808
    %v2736 = vunpack.c.0.s8 %v2735
    %v2737 = vlaneseq
    %v2738 = vshrl.u32 %v2737, 7
    %v2739 = vsub.s32 %v2736, %v2738
    %v2740 = vrot.slane %v2732, %v2739
    %v2742 = vunpack.c.l.s4 1983009808
    %v2743 = vunpack.c.0.s8 %v2742
    %v2744 = vlaneseq
    %v2745 = vshrl.u32 %v2744, 7
    %v2746 = vsub.s32 %v2743, %v2745
    %v2747 = vrot.slane %v2733, %v2746
    %v2748 = vcombine.high %v1911, 0
    %v2750 = vunpack.c.l.s4 1983009808
    %v2751 = vunpack.c.0.s8 %v2750
    %v2752 = vlaneseq
    %v2753 = vshrl.u32 %v2752, 7
    %v2754 = vsub.s32 %v2751, %v2753
    %v2755 = vrot.slane %v1911, %v2754
    %v2757 = vunpack.c.l.s4 1983009808
    %v2758 = vunpack.c.0.s8 %v2757
    %v2759 = vlaneseq
    %v2760 = vshrl.u32 %v2759, 7
    %v2761 = vsub.s32 %v2758, %v2760
    %v2762 = vrot.slane %v2748, %v2761
    %v2763 = vcombine.low %v2740, %v2755
    %v2764 = vcombine.high %v2740, %v2755
    %v2766 = vunpack.c.l.s4 1934713408
    %v2767 = vunpack.c.0.s8 %v2766
    %v2768 = vlaneseq
    %v2769 = vshrl.u32 %v2768, 7
    %v2770 = vsub.s32 %v2767, %v2769
    %v2771 = vrot.slane %v2763, %v2770
    %v2773 = vunpack.c.l.s4 1934713408
    %v2774 = vunpack.c.0.s8 %v2773
    %v2775 = vlaneseq
    %v2776 = vshrl.u32 %v2775, 7
    %v2777 = vsub.s32 %v2774, %v2776
    %v2778 = vrot.slane %v2764, %v2777
    %v2779 = vcombine.low %v2747, %v2762
    %v2780 = vcombine.high %v2747, %v2762
    %v2782 = vunpack.c.l.s4 1934713408
    %v2783 = vunpack.c.0.s8 %v2782
    %v2784 = vlaneseq
    %v2785 = vshrl.u32 %v2784, 7
    %v2786 = vsub.s32 %v2783, %v2785
    %v2787 = vrot.slane %v2779, %v2786
    %v2789 = vunpack.c.l.s4 1934713408
    %v2790 = vunpack.c.0.s8 %v2789
    %v2791 = vlaneseq
    %v2792 = vshrl.u32 %v2791, 7
    %v2793 = vsub.s32 %v2790, %v2792
    %v2794 = vrot.slane %v2780, %v2793
    %v2795 = vcombine.high %v2771, 0
    %v2796 = vcombine.high %v2778, 0
    %v2797 = vcombine.high %v2787, 0
    %v2798 = vcombine.high %v2794, 0
    %v2799 = vcombine.low %v1848, %v1982
    %v2800 = vcombine.high %v1848, %v1982
    %v2802 = vunpack.c.l.s4 1983009808
    %v2803 = vunpack.c.0.s8 %v2802
    %v2804 = vlaneseq
    %v2805 = vshrl.u32 %v2804, 7
    %v2806 = vsub.s32 %v2803, %v2805
    %v2807 = vrot.slane %v2799, %v2806
    %v2809 = vunpack.c.l.s4 1983009808
    %v2810 = vunpack.c.0.s8 %v2809
    %v2811 = vlaneseq
    %v2812 = vshrl.u32 %v2811, 7
    %v2813 = vsub.s32 %v2810, %v2812
    %v2814 = vrot.slane %v2800, %v2813
    %v2815 = vcombine.high %v1915, 0
    %v2817 = vunpack.c.l.s4 1983009808
    %v2818 = vunpack.c.0.s8 %v2817
    %v2819 = vlaneseq
    %v2820 = vshrl.u32 %v2819, 7
    %v2821 = vsub.s32 %v2818, %v2820
    %v2822 = vrot.slane %v1915, %v2821
    %v2824 = vunpack.c.l.s4 1983009808
    %v2825 = vunpack.c.0.s8 %v2824
    %v2826 = vlaneseq
    %v2827 = vshrl.u32 %v2826, 7
    %v2828 = vsub.s32 %v2825, %v2827
    %v2829 = vrot.slane %v2815, %v2828
    %v2830 = vcombine.low %v2807, %v2822
    %v2831 = vcombine.high %v2807, %v2822
    %v2833 = vunpack.c.l.s4 1934713408
    %v2834 = vunpack.c.0.s8 %v2833
    %v2835 = vlaneseq
    %v2836 = vshrl.u32 %v2835, 7
    %v2837 = vsub.s32 %v2834, %v2836
    %v2838 = vrot.slane %v2830, %v2837
    %v2840 = vunpack.c.l.s4 1934713408
    %v2841 = vunpack.c.0.s8 %v2840
    %v2842 = vlaneseq
    %v2843 = vshrl.u32 %v2842, 7
    %v2844 = vsub.s32 %v2841, %v2843
    %v2845 = vrot.slane %v2831, %v2844
    %v2846 = vcombine.low %v2814, %v2829
    %v2847 = vcombine.high %v2814, %v2829
    %v2849 = vunpack.c.l.s4 1934713408
    %v2850 = vunpack.c.0.s8 %v2849
    %v2851 = vlaneseq
    %v2852 = vshrl.u32 %v2851, 7
    %v2853 = vsub.s32 %v2850, %v2852
    %v2854 = vrot.slane %v2846, %v2853
    %v2856 = vunpack.c.l.s4 1934713408
    %v2857 = vunpack.c.0.s8 %v2856
    %v2858 = vlaneseq
    %v2859 = vshrl.u32 %v2858, 7
    %v2860 = vsub.s32 %v2857, %v2859
    %v2861 = vrot.slane %v2847, %v2860
    %v2862 = vcombine.high %v2838, 0
    %v2863 = vcombine.high %v2845, 0
    %v2864 = vcombine.high %v2854, 0
    %v2865 = vcombine.high %v2861, 0
    %v2866 = vcombine.low %v1852, %v1986
    %v2867 = vcombine.high %v1852, %v1986
    %v2869 = vunpack.c.l.s4 1983009808
    %v2870 = vunpack.c.0.s8 %v2869
    %v2871 = vlaneseq
    %v2872 = vshrl.u32 %v2871, 7
    %v2873 = vsub.s32 %v2870, %v2872
    %v2874 = vrot.slane %v2866, %v2873
    %v2876 = vunpack.c.l.s4 1983009808
    %v2877 = vunpack.c.0.s8 %v2876
    %v2878 = vlaneseq
    %v2879 = vshrl.u32 %v2878, 7
    %v2880 = vsub.s32 %v2877, %v2879
    %v2881 = vrot.slane %v2867, %v2880
    %v2882 = vcombine.high %v1919, 0
    %v2884 = vunpack.c.l.s4 1983009808
    %v2885 = vunpack.c.0.s8 %v2884
    %v2886 = vlaneseq
    %v2887 = vshrl.u32 %v2886, 7
    %v2888 = vsub.s32 %v2885, %v2887
    %v2889 = vrot.slane %v1919, %v2888
    %v2891 = vunpack.c.l.s4 1983009808
    %v2892 = vunpack.c.0.s8 %v2891
    %v2893 = vlaneseq
    %v2894 = vshrl.u32 %v2893, 7
    %v2895 = vsub.s32 %v2892, %v2894
    %v2896 = vrot.slane %v2882, %v2895
    %v2897 = vcombine.low %v2874, %v2889
    %v2898 = vcombine.high %v2874, %v2889
    %v2900 = vunpack.c.l.s4 1934713408
    %v2901 = vunpack.c.0.s8 %v2900
    %v2902 = vlaneseq
    %v2903 = vshrl.u32 %v2902, 7
    %v2904 = vsub.s32 %v2901, %v2903
    %v2905 = vrot.slane %v2897, %v2904
    %v2907 = vunpack.c.l.s4 1934713408
    %v2908 = vunpack.c.0.s8 %v2907
    %v2909 = vlaneseq
    %v2910 = vshrl.u32 %v2909, 7
    %v2911 = vsub.s32 %v2908, %v2910
    %v2912 = vrot.slane %v2898, %v2911
    %v2913 = vcombine.low %v2881, %v2896
    %v2914 = vcombine.high %v2881, %v2896
    %v2916 = vunpack.c.l.s4 1934713408
    %v2917 = vunpack.c.0.s8 %v2916
    %v2918 = vlaneseq
    %v2919 = vshrl.u32 %v2918, 7
    %v2920 = vsub.s32 %v2917, %v2919
    %v2921 = vrot.slane %v2913, %v2920
    %v2923 = vunpack.c.l.s4 1934713408
    %v2924 = vunpack.c.0.s8 %v2923
    %v2925 = vlaneseq
    %v2926 = vshrl.u32 %v2925, 7
    %v2927 = vsub.s32 %v2924, %v2926
    %v2928 = vrot.slane %v2914, %v2927
    %v2929 = vcombine.high %v2905, 0
    %v2930 = vcombine.high %v2912, 0
    %v2931 = vcombine.high %v2921, 0
    %v2932 = vcombine.high %v2928, 0
    %v2933 = vcombine.low %v1856, %v1990
    %v2934 = vcombine.high %v1856, %v1990
    %v2936 = vunpack.c.l.s4 1983009808
    %v2937 = vunpack.c.0.s8 %v2936
    %v2938 = vlaneseq
    %v2939 = vshrl.u32 %v2938, 7
    %v2940 = vsub.s32 %v2937, %v2939
    %v2941 = vrot.slane %v2933, %v2940
    %v2943 = vunpack.c.l.s4 1983009808
    %v2944 = vunpack.c.0.s8 %v2943
    %v2945 = vlaneseq
    %v2946 = vshrl.u32 %v2945, 7
    %v2947 = vsub.s32 %v2944, %v2946
    %v2948 = vrot.slane %v2934, %v2947
    %v2949 = vcombine.high %v1923, 0
    %v2951 = vunpack.c.l.s4 1983009808
    %v2952 = vunpack.c.0.s8 %v2951
    %v2953 = vlaneseq
    %v2954 = vshrl.u32 %v2953, 7
    %v2955 = vsub.s32 %v2952, %v2954
    %v2956 = vrot.slane %v1923, %v2955
    %v2958 = vunpack.c.l.s4 1983009808
    %v2959 = vunpack.c.0.s8 %v2958
    %v2960 = vlaneseq
    %v2961 = vshrl.u32 %v2960, 7
    %v2962 = vsub.s32 %v2959, %v2961
    %v2963 = vrot.slane %v2949, %v2962
    %v2964 = vcombine.low %v2941, %v2956
    %v2965 = vcombine.high %v2941, %v2956
    %v2967 = vunpack.c.l.s4 1934713408
    %v2968 = vunpack.c.0.s8 %v2967
    %v2969 = vlaneseq
    %v2970 = vshrl.u32 %v2969, 7
    %v2971 = vsub.s32 %v2968, %v2970
    %v2972 = vrot.slane %v2964, %v2971
    %v2974 = vunpack.c.l.s4 1934713408
    %v2975 = vunpack.c.0.s8 %v2974
    %v2976 = vlaneseq
    %v2977 = vshrl.u32 %v2976, 7
    %v2978 = vsub.s32 %v2975, %v2977
    %v2979 = vrot.slane %v2965, %v2978
    %v2980 = vcombine.low %v2948, %v2963
    %v2981 = vcombine.high %v2948, %v2963
    %v2983 = vunpack.c.l.s4 1934713408
    %v2984 = vunpack.c.0.s8 %v2983
    %v2985 = vlaneseq
    %v2986 = vshrl.u32 %v2985, 7
    %v2987 = vsub.s32 %v2984, %v2986
    %v2988 = vrot.slane %v2980, %v2987
    %v2990 = vunpack.c.l.s4 1934713408
    %v2991 = vunpack.c.0.s8 %v2990
    %v2992 = vlaneseq
    %v2993 = vshrl.u32 %v2992, 7
    %v2994 = vsub.s32 %v2991, %v2993
    %v2995 = vrot.slane %v2981, %v2994
    %v2996 = vcombine.high %v2972, 0
    %v2997 = vcombine.high %v2979, 0
    %v2998 = vcombine.high %v2988, 0
    %v2999 = vcombine.high %v2995, 0
    %v3000 = vcombine.low %v1860, %v1994
    %v3001 = vcombine.high %v1860, %v1994
    %v3003 = vunpack.c.l.s4 1983009808
    %v3004 = vunpack.c.0.s8 %v3003
    %v3005 = vlaneseq
    %v3006 = vshrl.u32 %v3005, 7
    %v3007 = vsub.s32 %v3004, %v3006
    %v3008 = vrot.slane %v3000, %v3007
    %v3010 = vunpack.c.l.s4 1983009808
    %v3011 = vunpack.c.0.s8 %v3010
    %v3012 = vlaneseq
    %v3013 = vshrl.u32 %v3012, 7
    %v3014 = vsub.s32 %v3011, %v3013
    %v3015 = vrot.slane %v3001, %v3014
    %v3016 = vcombine.high %v1927, 0
    %v3018 = vunpack.c.l.s4 1983009808
    %v3019 = vunpack.c.0.s8 %v3018
    %v3020 = vlaneseq
    %v3021 = vshrl.u32 %v3020, 7
    %v3022 = vsub.s32 %v3019, %v3021
    %v3023 = vrot.slane %v1927, %v3022
    %v3025 = vunpack.c.l.s4 1983009808
    %v3026 = vunpack.c.0.s8 %v3025
    %v3027 = vlaneseq
    %v3028 = vshrl.u32 %v3027, 7
    %v3029 = vsub.s32 %v3026, %v3028
    %v3030 = vrot.slane %v3016, %v3029
    %v3031 = vcombine.low %v3008, %v3023
    %v3032 = vcombine.high %v3008, %v3023
    %v3034 = vunpack.c.l.s4 1934713408
    %v3035 = vunpack.c.0.s8 %v3034
    %v3036 = vlaneseq
    %v3037 = vshrl.u32 %v3036, 7
    %v3038 = vsub.s32 %v3035, %v3037
    %v3039 = vrot.slane %v3031, %v3038
    %v3041 = vunpack.c.l.s4 1934713408
    %v3042 = vunpack.c.0.s8 %v3041
    %v3043 = vlaneseq
    %v3044 = vshrl.u32 %v3043, 7
    %v3045 = vsub.s32 %v3042, %v3044
    %v3046 = vrot.slane %v3032, %v3045
    %v3047 = vcombine.low %v3015, %v3030
    %v3048 = vcombine.high %v3015, %v3030
    %v3050 = vunpack.c.l.s4 1934713408
    %v3051 = vunpack.c.0.s8 %v3050
    %v3052 = vlaneseq
    %v3053 = vshrl.u32 %v3052, 7
    %v3054 = vsub.s32 %v3051, %v3053
    %v3055 = vrot.slane %v3047, %v3054
    %v3057 = vunpack.c.l.s4 1934713408
    %v3058 = vunpack.c.0.s8 %v3057
    %v3059 = vlaneseq
    %v3060 = vshrl.u32 %v3059, 7
    %v3061 = vsub.s32 %v3058, %v3060
    %v3062 = vrot.slane %v3048, %v3061
    %v3063 = vcombine.high %v3039, 0
    %v3064 = vcombine.high %v3046, 0
    %v3065 = vcombine.high %v3055, 0
    %v3066 = vcombine.high %v3062, 0
    %3067 = vrot.lane.b32.xlu0 %v2058, 8
    %v3068 = vpop.permute.xlu0 %3067
    %3069 = vrot.lane.b32.xlu0 %v2041, 16
    %v3070 = vpop.permute.xlu0 %3069
    %3071 = vrot.lane.b32.xlu0 %v2059, 24
    %v3072 = vpop.permute.xlu0 %3071
    %3073 = vrot.lane.b32.xlu0 %v2050, 32
    %v3074 = vpop.permute.xlu0 %3073
    %3075 = vrot.lane.b32.xlu0 %v2060, 40
    %v3076 = vpop.permute.xlu0 %3075
    %3077 = vrot.lane.b32.xlu0 %v2057, 48
    %v3078 = vpop.permute.xlu0 %3077
    %3079 = vrot.lane.b32.xlu0 %v2061, 56
    %v3080 = vpop.permute.xlu0 %3079
    %3081 = vrot.lane.b32.xlu0 %v2101, 64
    %v3082 = vpop.permute.xlu0 %3081
    %3083 = vrot.lane.b32.xlu0 %v2125, 72
    %v3084 = vpop.permute.xlu0 %3083
    %3085 = vrot.lane.b32.xlu0 %v2108, 80
    %v3086 = vpop.permute.xlu0 %3085
    %3087 = vrot.lane.b32.xlu0 %v2126, 88
    %v3088 = vpop.permute.xlu0 %3087
    %3089 = vrot.lane.b32.xlu0 %v2117, 96
    %v3090 = vpop.permute.xlu0 %3089
    %3091 = vrot.lane.b32.xlu0 %v2127, 104
    %v3092 = vpop.permute.xlu0 %3091
    %3093 = vrot.lane.b32.xlu0 %v2124, 112
    %v3094 = vpop.permute.xlu0 %3093
    %3095 = vrot.lane.b32.xlu0 %v2128, 120
    %v3096 = vpop.permute.xlu0 %3095
    %3097 = vrot.lane.b32.xlu0 %v2192, 8
    %v3098 = vpop.permute.xlu0 %3097
    %3099 = vrot.lane.b32.xlu0 %v2175, 16
    %v3100 = vpop.permute.xlu0 %3099
    %3101 = vrot.lane.b32.xlu0 %v2193, 24
    %v3102 = vpop.permute.xlu0 %3101
    %3103 = vrot.lane.b32.xlu0 %v2184, 32
    %v3104 = vpop.permute.xlu0 %3103
    %3105 = vrot.lane.b32.xlu0 %v2194, 40
    %v3106 = vpop.permute.xlu0 %3105
    %3107 = vrot.lane.b32.xlu0 %v2191, 48
    %v3108 = vpop.permute.xlu0 %3107
    %3109 = vrot.lane.b32.xlu0 %v2195, 56
    %v3110 = vpop.permute.xlu0 %3109
    %3111 = vrot.lane.b32.xlu0 %v2235, 64
    %v3112 = vpop.permute.xlu0 %3111
    %3113 = vrot.lane.b32.xlu0 %v2259, 72
    %v3114 = vpop.permute.xlu0 %3113
    %3115 = vrot.lane.b32.xlu0 %v2242, 80
    %v3116 = vpop.permute.xlu0 %3115
    %3117 = vrot.lane.b32.xlu0 %v2260, 88
    %v3118 = vpop.permute.xlu0 %3117
    %3119 = vrot.lane.b32.xlu0 %v2251, 96
    %v3120 = vpop.permute.xlu0 %3119
    %3121 = vrot.lane.b32.xlu0 %v2261, 104
    %v3122 = vpop.permute.xlu0 %3121
    %3123 = vrot.lane.b32.xlu0 %v2258, 112
    %v3124 = vpop.permute.xlu0 %3123
    %3125 = vrot.lane.b32.xlu0 %v2262, 120
    %v3126 = vpop.permute.xlu0 %3125
    %3127 = vrot.lane.b32.xlu0 %v2326, 8
    %v3128 = vpop.permute.xlu0 %3127
    %3129 = vrot.lane.b32.xlu0 %v2309, 16
    %v3130 = vpop.permute.xlu0 %3129
    %3131 = vrot.lane.b32.xlu0 %v2327, 24
    %v3132 = vpop.permute.xlu0 %3131
    %3133 = vrot.lane.b32.xlu0 %v2318, 32
    %v3134 = vpop.permute.xlu0 %3133
    %3135 = vrot.lane.b32.xlu0 %v2328, 40
    %v3136 = vpop.permute.xlu0 %3135
    %3137 = vrot.lane.b32.xlu0 %v2325, 48
    %v3138 = vpop.permute.xlu0 %3137
    %3139 = vrot.lane.b32.xlu0 %v2329, 56
    %v3140 = vpop.permute.xlu0 %3139
    %3141 = vrot.lane.b32.xlu0 %v2369, 64
    %v3142 = vpop.permute.xlu0 %3141
    %3143 = vrot.lane.b32.xlu0 %v2393, 72
    %v3144 = vpop.permute.xlu0 %3143
    %3145 = vrot.lane.b32.xlu0 %v2376, 80
    %v3146 = vpop.permute.xlu0 %3145
    %3147 = vrot.lane.b32.xlu0 %v2394, 88
    %v3148 = vpop.permute.xlu0 %3147
    %3149 = vrot.lane.b32.xlu0 %v2385, 96
    %v3150 = vpop.permute.xlu0 %3149
    %3151 = vrot.lane.b32.xlu0 %v2395, 104
    %v3152 = vpop.permute.xlu0 %3151
    %3153 = vrot.lane.b32.xlu0 %v2392, 112
    %v3154 = vpop.permute.xlu0 %3153
    %3155 = vrot.lane.b32.xlu0 %v2396, 120
    %v3156 = vpop.permute.xlu0 %3155
    %3157 = vrot.lane.b32.xlu0 %v2460, 8
    %v3158 = vpop.permute.xlu0 %3157
    %3159 = vrot.lane.b32.xlu0 %v2443, 16
    %v3160 = vpop.permute.xlu0 %3159
    %3161 = vrot.lane.b32.xlu0 %v2461, 24
    %v3162 = vpop.permute.xlu0 %3161
    %3163 = vrot.lane.b32.xlu0 %v2452, 32
    %v3164 = vpop.permute.xlu0 %3163
    %3165 = vrot.lane.b32.xlu0 %v2462, 40
    %v3166 = vpop.permute.xlu0 %3165
    %3167 = vrot.lane.b32.xlu0 %v2459, 48
    %v3168 = vpop.permute.xlu0 %3167
    %3169 = vrot.lane.b32.xlu0 %v2463, 56
    %v3170 = vpop.permute.xlu0 %3169
    %3171 = vrot.lane.b32.xlu0 %v2503, 64
    %v3172 = vpop.permute.xlu0 %3171
    %3173 = vrot.lane.b32.xlu0 %v2527, 72
    %v3174 = vpop.permute.xlu0 %3173
    %3175 = vrot.lane.b32.xlu0 %v2510, 80
    %v3176 = vpop.permute.xlu0 %3175
    %3177 = vrot.lane.b32.xlu0 %v2528, 88
    %v3178 = vpop.permute.xlu0 %3177
    %3179 = vrot.lane.b32.xlu0 %v2519, 96
    %v3180 = vpop.permute.xlu0 %3179
    %3181 = vrot.lane.b32.xlu0 %v2529, 104
    %v3182 = vpop.permute.xlu0 %3181
    %3183 = vrot.lane.b32.xlu0 %v2526, 112
    %v3184 = vpop.permute.xlu0 %3183
    %3185 = vrot.lane.b32.xlu0 %v2530, 120
    %v3186 = vpop.permute.xlu0 %3185
    %3187 = vrot.lane.b32.xlu0 %v2594, 8
    %v3188 = vpop.permute.xlu0 %3187
    %3189 = vrot.lane.b32.xlu0 %v2577, 16
    %v3190 = vpop.permute.xlu0 %3189
    %3191 = vrot.lane.b32.xlu0 %v2595, 24
    %v3192 = vpop.permute.xlu0 %3191
    %3193 = vrot.lane.b32.xlu0 %v2586, 32
    %v3194 = vpop.permute.xlu0 %3193
    %3195 = vrot.lane.b32.xlu0 %v2596, 40
    %v3196 = vpop.permute.xlu0 %3195
    %3197 = vrot.lane.b32.xlu0 %v2593, 48
    %v3198 = vpop.permute.xlu0 %3197
    %3199 = vrot.lane.b32.xlu0 %v2597, 56
    %v3200 = vpop.permute.xlu0 %3199
    %3201 = vrot.lane.b32.xlu0 %v2637, 64
    %v3202 = vpop.permute.xlu0 %3201
    %3203 = vrot.lane.b32.xlu0 %v2661, 72
    %v3204 = vpop.permute.xlu0 %3203
    %3205 = vrot.lane.b32.xlu0 %v2644, 80
    %v3206 = vpop.permute.xlu0 %3205
    %3207 = vrot.lane.b32.xlu0 %v2662, 88
    %v3208 = vpop.permute.xlu0 %3207
    %3209 = vrot.lane.b32.xlu0 %v2653, 96
    %v3210 = vpop.permute.xlu0 %3209
    %3211 = vrot.lane.b32.xlu0 %v2663, 104
    %v3212 = vpop.permute.xlu0 %3211
    %3213 = vrot.lane.b32.xlu0 %v2660, 112
    %v3214 = vpop.permute.xlu0 %3213
    %3215 = vrot.lane.b32.xlu0 %v2664, 120
    %v3216 = vpop.permute.xlu0 %3215
    %3217 = vrot.lane.b32.xlu0 %v2728, 8
    %v3218 = vpop.permute.xlu0 %3217
    %3219 = vrot.lane.b32.xlu0 %v2711, 16
    %v3220 = vpop.permute.xlu0 %3219
    %3221 = vrot.lane.b32.xlu0 %v2729, 24
    %v3222 = vpop.permute.xlu0 %3221
    %3223 = vrot.lane.b32.xlu0 %v2720, 32
    %v3224 = vpop.permute.xlu0 %3223
    %3225 = vrot.lane.b32.xlu0 %v2730, 40
    %v3226 = vpop.permute.xlu0 %3225
    %3227 = vrot.lane.b32.xlu0 %v2727, 48
    %v3228 = vpop.permute.xlu0 %3227
    %3229 = vrot.lane.b32.xlu0 %v2731, 56
    %v3230 = vpop.permute.xlu0 %3229
    %3231 = vrot.lane.b32.xlu0 %v2771, 64
    %v3232 = vpop.permute.xlu0 %3231
    %3233 = vrot.lane.b32.xlu0 %v2795, 72
    %v3234 = vpop.permute.xlu0 %3233
    %3235 = vrot.lane.b32.xlu0 %v2778, 80
    %v3236 = vpop.permute.xlu0 %3235
    %3237 = vrot.lane.b32.xlu0 %v2796, 88
    %v3238 = vpop.permute.xlu0 %3237
    %3239 = vrot.lane.b32.xlu0 %v2787, 96
    %v3240 = vpop.permute.xlu0 %3239
    %3241 = vrot.lane.b32.xlu0 %v2797, 104
    %v3242 = vpop.permute.xlu0 %3241
    %3243 = vrot.lane.b32.xlu0 %v2794, 112
    %v3244 = vpop.permute.xlu0 %3243
    %3245 = vrot.lane.b32.xlu0 %v2798, 120
    %v3246 = vpop.permute.xlu0 %3245
    %3247 = vrot.lane.b32.xlu0 %v2862, 8
    %v3248 = vpop.permute.xlu0 %3247
    %3249 = vrot.lane.b32.xlu0 %v2845, 16
    %v3250 = vpop.permute.xlu0 %3249
    %3251 = vrot.lane.b32.xlu0 %v2863, 24
    %v3252 = vpop.permute.xlu0 %3251
    %3253 = vrot.lane.b32.xlu0 %v2854, 32
    %v3254 = vpop.permute.xlu0 %3253
    %3255 = vrot.lane.b32.xlu0 %v2864, 40
    %v3256 = vpop.permute.xlu0 %3255
    %3257 = vrot.lane.b32.xlu0 %v2861, 48
    %v3258 = vpop.permute.xlu0 %3257
    %3259 = vrot.lane.b32.xlu0 %v2865, 56
    %v3260 = vpop.permute.xlu0 %3259
    %3261 = vrot.lane.b32.xlu0 %v2905, 64
    %v3262 = vpop.permute.xlu0 %3261
    %3263 = vrot.lane.b32.xlu0 %v2929, 72
    %v3264 = vpop.permute.xlu0 %3263
    %3265 = vrot.lane.b32.xlu0 %v2912, 80
    %v3266 = vpop.permute.xlu0 %3265
    %3267 = vrot.lane.b32.xlu0 %v2930, 88
    %v3268 = vpop.permute.xlu0 %3267
    %3269 = vrot.lane.b32.xlu0 %v2921, 96
    %v3270 = vpop.permute.xlu0 %3269
    %3271 = vrot.lane.b32.xlu0 %v2931, 104
    %v3272 = vpop.permute.xlu0 %3271
    %3273 = vrot.lane.b32.xlu0 %v2928, 112
    %v3274 = vpop.permute.xlu0 %3273
    %3275 = vrot.lane.b32.xlu0 %v2932, 120
    %v3276 = vpop.permute.xlu0 %3275
    %3277 = vrot.lane.b32.xlu0 %v2996, 8
    %v3278 = vpop.permute.xlu0 %3277
    %3279 = vrot.lane.b32.xlu0 %v2979, 16
    %v3280 = vpop.permute.xlu0 %3279
    %3281 = vrot.lane.b32.xlu0 %v2997, 24
    %v3282 = vpop.permute.xlu0 %3281
    %3283 = vrot.lane.b32.xlu0 %v2988, 32
    %v3284 = vpop.permute.xlu0 %3283
    %3285 = vrot.lane.b32.xlu0 %v2998, 40
    %v3286 = vpop.permute.xlu0 %3285
    %3287 = vrot.lane.b32.xlu0 %v2995, 48
    %v3288 = vpop.permute.xlu0 %3287
    %3289 = vrot.lane.b32.xlu0 %v2999, 56
    %v3290 = vpop.permute.xlu0 %3289
    %3291 = vrot.lane.b32.xlu0 %v3039, 64
    %v3292 = vpop.permute.xlu0 %3291
    %3293 = vrot.lane.b32.xlu0 %v3063, 72
    %v3294 = vpop.permute.xlu0 %3293
    %3295 = vrot.lane.b32.xlu0 %v3046, 80
    %v3296 = vpop.permute.xlu0 %3295
    %3297 = vrot.lane.b32.xlu0 %v3064, 88
    %v3298 = vpop.permute.xlu0 %3297
    %3299 = vrot.lane.b32.xlu0 %v3055, 96
    %v3300 = vpop.permute.xlu0 %3299
    %3301 = vrot.lane.b32.xlu0 %v3065, 104
    %v3302 = vpop.permute.xlu0 %3301
    %3303 = vrot.lane.b32.xlu0 %v3062, 112
    %v3304 = vpop.permute.xlu0 %3303
    %3305 = vrot.lane.b32.xlu0 %v3066, 120
    %v3306 = vpop.permute.xlu0 %3305
    %v3307 = vsel %vm1659, %v2034, %v3068
    %v3308 = vsel %vm1661, %v3307, %v3070
    %v3309 = vsel %vm1663, %v3308, %v3072
    %v3310 = vsel %vm1665, %v3309, %v3074
    %v3311 = vsel %vm1667, %v3310, %v3076
    %v3312 = vsel %vm1669, %v3311, %v3078
    %v3313 = vsel %vm1671, %v3312, %v3080
    %v3314 = vsel %vm1673, %v3313, %v3082
    %v3315 = vsel %vm1675, %v3314, %v3084
    %v3316 = vsel %vm1677, %v3315, %v3086
    %v3317 = vsel %vm1679, %v3316, %v3088
    %v3318 = vsel %vm1681, %v3317, %v3090
    %v3319 = vsel %vm1683, %v3318, %v3092
    %v3320 = vsel %vm1685, %v3319, %v3094
    %v3321 = vsel %vm1687, %v3320, %v3096
    %v3322 = vsel %vm1659, %v2168, %v3098
    %v3323 = vsel %vm1661, %v3322, %v3100
    %v3324 = vsel %vm1663, %v3323, %v3102
    %v3325 = vsel %vm1665, %v3324, %v3104
    %v3326 = vsel %vm1667, %v3325, %v3106
    %v3327 = vsel %vm1669, %v3326, %v3108
    %v3328 = vsel %vm1671, %v3327, %v3110
    %v3329 = vsel %vm1673, %v3328, %v3112
    %v3330 = vsel %vm1675, %v3329, %v3114
    %v3331 = vsel %vm1677, %v3330, %v3116
    %v3332 = vsel %vm1679, %v3331, %v3118
    %v3333 = vsel %vm1681, %v3332, %v3120
    %v3334 = vsel %vm1683, %v3333, %v3122
    %v3335 = vsel %vm1685, %v3334, %v3124
    %v3336 = vsel %vm1687, %v3335, %v3126
    %v3337 = vsel %vm1659, %v2302, %v3128
    %v3338 = vsel %vm1661, %v3337, %v3130
    %v3339 = vsel %vm1663, %v3338, %v3132
    %v3340 = vsel %vm1665, %v3339, %v3134
    %v3341 = vsel %vm1667, %v3340, %v3136
    %v3342 = vsel %vm1669, %v3341, %v3138
    %v3343 = vsel %vm1671, %v3342, %v3140
    %v3344 = vsel %vm1673, %v3343, %v3142
    %v3345 = vsel %vm1675, %v3344, %v3144
    %v3346 = vsel %vm1677, %v3345, %v3146
    %v3347 = vsel %vm1679, %v3346, %v3148
    %v3348 = vsel %vm1681, %v3347, %v3150
    %v3349 = vsel %vm1683, %v3348, %v3152
    %v3350 = vsel %vm1685, %v3349, %v3154
    %v3351 = vsel %vm1687, %v3350, %v3156
    %v3352 = vsel %vm1659, %v2436, %v3158
    %v3353 = vsel %vm1661, %v3352, %v3160
    %v3354 = vsel %vm1663, %v3353, %v3162
    %v3355 = vsel %vm1665, %v3354, %v3164
    %v3356 = vsel %vm1667, %v3355, %v3166
    %v3357 = vsel %vm1669, %v3356, %v3168
    %v3358 = vsel %vm1671, %v3357, %v3170
    %v3359 = vsel %vm1673, %v3358, %v3172
    %v3360 = vsel %vm1675, %v3359, %v3174
    %v3361 = vsel %vm1677, %v3360, %v3176
    %v3362 = vsel %vm1679, %v3361, %v3178
    %v3363 = vsel %vm1681, %v3362, %v3180
    %v3364 = vsel %vm1683, %v3363, %v3182
    %v3365 = vsel %vm1685, %v3364, %v3184
    %v3366 = vsel %vm1687, %v3365, %v3186
    %v3367 = vsel %vm1659, %v2570, %v3188
    %v3368 = vsel %vm1661, %v3367, %v3190
    %v3369 = vsel %vm1663, %v3368, %v3192
    %v3370 = vsel %vm1665, %v3369, %v3194
    %v3371 = vsel %vm1667, %v3370, %v3196
    %v3372 = vsel %vm1669, %v3371, %v3198
    %v3373 = vsel %vm1671, %v3372, %v3200
    %v3374 = vsel %vm1673, %v3373, %v3202
    %v3375 = vsel %vm1675, %v3374, %v3204
    %v3376 = vsel %vm1677, %v3375, %v3206
    %v3377 = vsel %vm1679, %v3376, %v3208
    %v3378 = vsel %vm1681, %v3377, %v3210
    %v3379 = vsel %vm1683, %v3378, %v3212
    %v3380 = vsel %vm1685, %v3379, %v3214
    %v3381 = vsel %vm1687, %v3380, %v3216
    %v3382 = vsel %vm1659, %v2704, %v3218
    %v3383 = vsel %vm1661, %v3382, %v3220
    %v3384 = vsel %vm1663, %v3383, %v3222
    %v3385 = vsel %vm1665, %v3384, %v3224
    %v3386 = vsel %vm1667, %v3385, %v3226
    %v3387 = vsel %vm1669, %v3386, %v3228
    %v3388 = vsel %vm1671, %v3387, %v3230
    %v3389 = vsel %vm1673, %v3388, %v3232
    %v3390 = vsel %vm1675, %v3389, %v3234
    %v3391 = vsel %vm1677, %v3390, %v3236
    %v3392 = vsel %vm1679, %v3391, %v3238
    %v3393 = vsel %vm1681, %v3392, %v3240
    %v3394 = vsel %vm1683, %v3393, %v3242
    %v3395 = vsel %vm1685, %v3394, %v3244
    %v3396 = vsel %vm1687, %v3395, %v3246
    %v3397 = vsel %vm1659, %v2838, %v3248
    %v3398 = vsel %vm1661, %v3397, %v3250
    %v3399 = vsel %vm1663, %v3398, %v3252
    %v3400 = vsel %vm1665, %v3399, %v3254
    %v3401 = vsel %vm1667, %v3400, %v3256
    %v3402 = vsel %vm1669, %v3401, %v3258
    %v3403 = vsel %vm1671, %v3402, %v3260
    %v3404 = vsel %vm1673, %v3403, %v3262
    %v3405 = vsel %vm1675, %v3404, %v3264
    %v3406 = vsel %vm1677, %v3405, %v3266
    %v3407 = vsel %vm1679, %v3406, %v3268
    %v3408 = vsel %vm1681, %v3407, %v3270
    %v3409 = vsel %vm1683, %v3408, %v3272
    %v3410 = vsel %vm1685, %v3409, %v3274
    %v3411 = vsel %vm1687, %v3410, %v3276
    %v3412 = vsel %vm1659, %v2972, %v3278
    %v3413 = vsel %vm1661, %v3412, %v3280
    %v3414 = vsel %vm1663, %v3413, %v3282
    %v3415 = vsel %vm1665, %v3414, %v3284
    %v3416 = vsel %vm1667, %v3415, %v3286
    %v3417 = vsel %vm1669, %v3416, %v3288
    %v3418 = vsel %vm1671, %v3417, %v3290
    %v3419 = vsel %vm1673, %v3418, %v3292
    %v3420 = vsel %vm1675, %v3419, %v3294
    %v3421 = vsel %vm1677, %v3420, %v3296
    %v3422 = vsel %vm1679, %v3421, %v3298
    %v3423 = vsel %vm1681, %v3422, %v3300
    %v3424 = vsel %vm1683, %v3423, %v3302
    %v3425 = vsel %vm1685, %v3424, %v3304
    %v3426 = vsel %vm1687, %v3425, %v3306
    %vm3427 = vcmp.eq.s32.totalorder %v3321, %v133
    %vm3428 = vcmp.eq.s32.totalorder %v3336, %v134
    %vm3429 = vcmp.eq.s32.totalorder %v3351, %v135
    %vm3430 = vcmp.eq.s32.totalorder %v3366, %v136
    %vm3431 = vcmp.eq.s32.totalorder %v3381, %v137
    %vm3432 = vcmp.eq.s32.totalorder %v3396, %v138
    %vm3433 = vcmp.eq.s32.totalorder %v3411, %v139
    %vm3434 = vcmp.eq.s32.totalorder %v3426, %v140
    %v3435 = vsel %vm3427, %v1688, 4294967295
    %v3436 = vsel %vm3428, %v1703, 4294967295
    %v3437 = vsel %vm3429, %v1718, 4294967295
    %v3438 = vsel %vm3430, %v1733, 4294967295
    %v3439 = vsel %vm3431, %v1748, 4294967295
    %v3440 = vsel %vm3432, %v1763, 4294967295
    %v3441 = vsel %vm3433, %v1778, 4294967295
    %v3442 = vsel %vm3434, %v1793, 4294967295
    %v3443 = vcombine.low %v3435, %v3436
    %v3444 = vcombine.low %v3437, %v3438
    %v3445 = vcombine.low %v3439, %v3440
    %v3446 = vcombine.low %v3441, %v3442
    %3447 = vst [vmem:[#allocation7] sm:$0x77] %v3443
    %3448 = vst [vmem:[#allocation7 + $0x8] sm:$0x77] %v3444
    %3449 = vst [vmem:[#allocation7 + $0x10] sm:$0x77] %v3445
    %3450 = vst [vmem:[#allocation7 + $0x18] sm:$0x77] %v3446
    // Predicated region
    $region18: #{tpu_custom_call.1} parent=1 // pred_check
      _
    $region19: #{tpu_custom_call.1} parent=1 // pred_check_branch
      %3452 = sbr.rel (0) target = $region21
    $region20: #{tpu_custom_call.1} parent=1 // pred_region
      %s3454 = ssub.s32 512, 512
      %3455 = vsyncadd [#allocation4], %s3454
      %s3457 = sshll.u32 [#allocation7], 4
      %s3458 = int_to_ptr.vmem [resolvable:$true] %s3457
      %3460 = dma.vmem_to_hbm [thread:$0]  %s3458, 512, %s2, [#allocation4]
    $region21: #{tpu_custom_call.1} parent=1 // pred_fallthru
      _
    // Predicated region
    $region22: #{tpu_custom_call.1} parent=1 // pred_check
      _
    $region23: #{tpu_custom_call.1} parent=1 // pred_check_branch
      %3462 = sbr.rel (0) target = $region25
    $region24: #{tpu_custom_call.1} parent=1 // pred_region
      %3463 = dma.done [#allocation4], 512
    $region25: #{tpu_custom_call.1} parent=1 // pred_fallthru
      _
    %3464 = vsyncpa [#allocation3], 1
    %3465 = vsyncpa [#allocation6], 1
    %3466 = vsyncpa [#allocation4], 1

// kernel: tpu_custom_call.1
$region0: #{tpu_custom_call.1}
  #allocation0 [shape = 'u32[]', space=smem, size = 0x4, offset = 0x4, fixed_abs, tag = 'smem constant byte address 0x4 - core index']
  #allocation1 [shape = 'u32[144,128]{1,0:T(1,128)}', space=vmem, size = 0x12000, scoped, tag = 'internal scratch']
  %s0 = inlined_call_operand.hbm [shape: s32[2,192], index: 0, kind: input, shape index: {}]
  %s1 = inlined_call_operand.hbm [shape: s32[2,192], index: 1, kind: input, shape index: {}]
  %s2 = inlined_call_operand.hbm [shape: s32[2,8,192], index: 2, kind: output, shape index: {}]
  %s3 = sld [smem:[#allocation0]]
  $region49: #{tpu_custom_call.1} parent=0
    _
  %s5 = ssub.s32 1, %s3
  %s6 = scalar_select 0, %s5, %s3
  $region1: #{tpu_custom_call.1} parent=0
    #allocation2 [shape = 'u8[2048]{0}', space=vmem, size = 0x800, scoped, tag = 'input window, operand 0']
    #allocation3 [shape = 's32[2]{0}', space=sflag, size = 0x8, scoped, tag = 'scoped memory for tpu_custom_call.1']
    #allocation4 [shape = 's32[2]{0}', space=sflag, size = 0x8, scoped, tag = 'scoped memory for tpu_custom_call.1']
    #allocation5 [shape = 'u8[2048]{0}', space=vmem, size = 0x800, scoped, tag = 'input window, operand 1']
    #allocation6 [shape = 's32[2]{0}', space=sflag, size = 0x8, scoped, tag = 'scoped memory for tpu_custom_call.1']
    #allocation7 [shape = 'u8[16384]{0}', space=vmem, size = 0x4000, scoped, tag = 'output window, operand 0']
    %7 = vsyncpa [#allocation3], 0
    %s8 = scalar_lea.sflag [#allocation3], 1
    %9 = vsyncpa %s8, 0
    %10 = vsyncpa [#allocation6], 0
    %s11 = scalar_lea.sflag [#allocation6], 1
    %12 = vsyncpa %s11, 0
    %13 = vsyncpa [#allocation4], 0
    %s14 = scalar_lea.sflag [#allocation4], 1
    %15 = vsyncpa %s14, 0
    loop: start=0, step=1, limit=4
    $region2: #{tpu_custom_call.1} parent=1 // loop_pre_header
      _
    $region3: #{tpu_custom_call.1} parent=1 // loop_header
      %s17 = sphi 0, %s21
      %p18 = scmp.ge.s32.totalorder %s17, 4
      %s27 = sphi 0, %s29
      %s30 = sphi 0, %s27
      %s31 = sphi 0, %s30
      %s47 = sphi 0, %s31
      %s53 = sphi 0, %s55
      %s56 = sphi 0, %s53
      %s57 = sphi 0, %s56
      %s73 = sphi 0, %s57
      %s79 = sphi 0, %s81
      %s82 = sphi 0, %s79
      %s83 = sphi 0, %s82
      %s99 = sphi 0, %s83
    $region4: #{tpu_custom_call.1} parent=1 // loop_header_branch
      %20 = sbr.rel (%p18) target = $region8
    $region5: #{tpu_custom_call.1} parent=1 // loop_body
      %s22 = ssub.s32 %s17, 1
      %s23 = ssub.s32 %s17, 2
      %s24 = sadd.s32 %s17, 1
      %s25 = ssub.s32 %s17, %s24
      %p26 = scmp.eq.s32.totalorder %s25, 0
      %s28 = sadd.s32 %s27, 1
      %s29 = scalar_select %p26, %s27, %s28
      %p32 = pneg %p26
      %p33 = scmp.eq.s32.totalorder %s17, 1
      %p34 = por %p32, %p33
      %p35 = scmp.ne.s32.totalorder %s27, %s30
      %p36 = scmp.eq.s32.totalorder %s17, 0
      %p37 = por %p35, %p36
      %p38 = scmp.ne.s32.totalorder %s27, %s30
      %p39 = scmp.eq.s32.totalorder %s22, 1
      %p40 = por %p38, %p39
      %p41 = scmp.ne.s32.totalorder %s30, %s31
      %p42 = scmp.eq.s32.totalorder %s22, 0
      %p43 = por %p41, %p42
      %p44 = scmp.ne.s32.totalorder %s30, %s31
      %p45 = scmp.eq.s32.totalorder %s23, 1
      %p46 = por %p44, %p45
      %p48 = scmp.ne.s32.totalorder %s31, %s47
      %p49 = scmp.eq.s32.totalorder %s23, 0
      %p50 = por %p48, %p49
      %s51 = ssub.s32 %s17, %s24
      %p52 = scmp.eq.s32.totalorder %s51, 0
      %s54 = sadd.s32 %s53, 1
      %s55 = scalar_select %p52, %s53, %s54
      %p58 = pneg %p52
      %p59 = scmp.eq.s32.totalorder %s17, 1
      %p60 = por %p58, %p59
      %p61 = scmp.ne.s32.totalorder %s53, %s56
      %p62 = scmp.eq.s32.totalorder %s17, 0
      %p63 = por %p61, %p62
      %p64 = scmp.ne.s32.totalorder %s53, %s56
      %p65 = scmp.eq.s32.totalorder %s22, 1
      %p66 = por %p64, %p65
      %p67 = scmp.ne.s32.totalorder %s56, %s57
      %p68 = scmp.eq.s32.totalorder %s22, 0
      %p69 = por %p67, %p68
      %p70 = scmp.ne.s32.totalorder %s56, %s57
      %p71 = scmp.eq.s32.totalorder %s23, 1
      %p72 = por %p70, %p71
      %p74 = scmp.ne.s32.totalorder %s57, %s73
      %p75 = scmp.eq.s32.totalorder %s23, 0
      %p76 = por %p74, %p75
      %s77 = ssub.s32 %s17, %s24
      %p78 = scmp.eq.s32.totalorder %s77, 0
      %s80 = sadd.s32 %s79, 1
      %s81 = scalar_select %p78, %s79, %s80
      %p84 = pneg %p78
      %p85 = scmp.eq.s32.totalorder %s17, 1
      %p86 = por %p84, %p85
      %p87 = scmp.ne.s32.totalorder %s79, %s82
      %p88 = scmp.eq.s32.totalorder %s17, 0
      %p89 = por %p87, %p88
      %p90 = scmp.ne.s32.totalorder %s79, %s82
      %p91 = scmp.eq.s32.totalorder %s22, 1
      %p92 = por %p90, %p91
      %p93 = scmp.ne.s32.totalorder %s82, %s83
      %p94 = scmp.eq.s32.totalorder %s22, 0
      %p95 = por %p93, %p94
      %p96 = scmp.ne.s32.totalorder %s82, %s83
      %p97 = scmp.eq.s32.totalorder %s23, 1
      %p98 = por %p96, %p97
      %p100 = scmp.ne.s32.totalorder %s83, %s99
      %p101 = scmp.eq.s32.totalorder %s23, 0
      %p102 = por %p100, %p101
      %p103 = scmp.le.s32.totalorder 1, %s17
      %p104 = scmp.lt.s32.totalorder %s17, 3
      %p105 = pnand %p103, %p104
      %p106 = pneg %p105
      // Predicated region
      $region9: #{tpu_custom_call.1} parent=5 // pred_check
        _
      $region10: #{tpu_custom_call.1} parent=5 // pred_check_branch
        %108 = sbr.rel (%p105) target = $region12
      $region11: #{tpu_custom_call.1} parent=5 // pred_region
        %s109 = ssub.s32 %s17, 1
      $region12: #{tpu_custom_call.1} parent=5 // pred_fallthru
        _
      %p110 = scmp.lt.s32.totalorder %s17, 2
      // Predicated region
      $region13: #{tpu_custom_call.1} parent=5 // pred_check
        %p111 = pneg %p110
      $region14: #{tpu_custom_call.1} parent=5 // pred_check_branch
        %113 = sbr.rel (%p111) target = $region16
      $region15: #{tpu_custom_call.1} parent=5 // pred_region
        // Predicated region
        $region17: #{tpu_custom_call.1} parent=15 // pred_check
          %p114 = pneg %p37
        $region18: #{tpu_custom_call.1} parent=15 // pred_check_branch
          %116 = sbr.rel (%p114) target = $region20
        $region19: #{tpu_custom_call.1} parent=15 // pred_region
          %s117 = sand.u32 %s27, 1
          %s118 = scalar_lea.sflag [#allocation3], %s117
          %s119 = sand.u32 %s27, 1
          %s120 = smul.addr %s119, 2
          %s121 = scalar_lea.vmem [#allocation2], %s120
          %s123 = ssub.s32 32, 32
          %124 = vsyncadd %s118, %s123
          %s125 = smul.addr %s17, 32
          %s126 = scalar_lea.hbm %s0, %s125
          %s128 = sshll.u32 %s121, 4
          %s129 = int_to_ptr.vmem [resolvable:$true] %s128
          %131 = dma.hbm_to_vmem [thread:$0]  %s126, 32, %s129, %s118
        $region20: #{tpu_custom_call.1} parent=15 // pred_fallthru
          _
        // Predicated region
        $region21: #{tpu_custom_call.1} parent=15 // pred_check
          %p132 = pneg %p63
        $region22: #{tpu_custom_call.1} parent=15 // pred_check_branch
          %134 = sbr.rel (%p132) target = $region24
        $region23: #{tpu_custom_call.1} parent=15 // pred_region
          %s135 = sand.u32 %s53, 1
          %s136 = scalar_lea.sflag [#allocation6], %s135
          %s137 = sand.u32 %s53, 1
          %s138 = smul.addr %s137, 2
          %s139 = scalar_lea.vmem [#allocation5], %s138
          %s141 = ssub.s32 32, 32
          %142 = vsyncadd %s136, %s141
          %s143 = smul.addr %s17, 32
          %s144 = scalar_lea.hbm %s1, %s143
          %s146 = sshll.u32 %s139, 4
          %s147 = int_to_ptr.vmem [resolvable:$true] %s146
          %149 = dma.hbm_to_vmem [thread:$0]  %s144, 32, %s147, %s136
        $region24: #{tpu_custom_call.1} parent=15 // pred_fallthru
          _
      $region16: #{tpu_custom_call.1} parent=5 // pred_fallthru
        _
      %p150 = scmp.le.s32.totalorder 1, %s17
      %p151 = scmp.lt.s32.totalorder %s17, 3
      %p152 = pnand %p150, %p151
      %p153 = pneg %p152
      // Predicated region
      $region25: #{tpu_custom_call.1} parent=5 // pred_check
        _
      $region26: #{tpu_custom_call.1} parent=5 // pred_check_branch
        %155 = sbr.rel (%p152) target = $region28
      $region27: #{tpu_custom_call.1} parent=5 // pred_region
        %s156 = ssub.s32 %s17, 1
        %s157 = sand.u32 %s30, 1
        %s158 = scalar_lea.sflag [#allocation3], %s157
        %s159 = sand.u32 %s30, 1
        %s160 = smul.addr %s159, 2
        %s161 = scalar_lea.vmem [#allocation2], %s160
        // Predicated region
        $region29: #{tpu_custom_call.1} parent=27 // pred_check
          %p162 = pneg %p43
        $region30: #{tpu_custom_call.1} parent=27 // pred_check_branch
          %164 = sbr.rel (%p162) target = $region32
        $region31: #{tpu_custom_call.1} parent=27 // pred_region
          %165 = dma.done %s158, 32
        $region32: #{tpu_custom_call.1} parent=27 // pred_fallthru
          _
        %s166 = sand.u32 %s56, 1
        %s167 = scalar_lea.sflag [#allocation6], %s166
        %s168 = sand.u32 %s56, 1
        %s169 = smul.addr %s168, 2
        %s170 = scalar_lea.vmem [#allocation5], %s169
        // Predicated region
        $region33: #{tpu_custom_call.1} parent=27 // pred_check
          %p171 = pneg %p69
        $region34: #{tpu_custom_call.1} parent=27 // pred_check_branch
          %173 = sbr.rel (%p171) target = $region36
        $region35: #{tpu_custom_call.1} parent=27 // pred_region
          %174 = dma.done %s167, 32
        $region36: #{tpu_custom_call.1} parent=27 // pred_fallthru
          _
        %s175 = sand.u32 %s30, 1
        %s176 = scalar_lea.sflag [#allocation3], %s175
        %s177 = sand.u32 %s30, 1
        %s178 = smul.addr %s177, 2
        %s179 = scalar_lea.vmem [#allocation2], %s178
        %p180 = pneg %p43
        %p181 = pneg %p40
        %s182 = sand.u32 %s56, 1
        %s183 = scalar_lea.sflag [#allocation6], %s182
        %s184 = sand.u32 %s56, 1
        %s185 = smul.addr %s184, 2
        %s186 = scalar_lea.vmem [#allocation5], %s185
        %p187 = pneg %p69
        %p188 = pneg %p66
        %p189 = pneg %p95
        %p190 = pneg %p92
        %s191 = sand.u32 %s82, 1
        %s192 = scalar_lea.sflag [#allocation4], %s191
        %s193 = sand.u32 %s82, 1
        %s194 = smul.addr %s193, 16
        %s195 = scalar_lea.vmem [#allocation7], %s194
        %v196 = vld [vmem:[%s161] sm:$0x3]
        %v197 = vld [vmem:[%s170] sm:$0x3]
        %vm198 = vcmp.lt.s32.totalorder %v197, 0
        %v199 = vsub.s32 0, %v197
        %v200 = vsel %vm198, %v199, %v197
        %v201 = vlaneseq
        %v202 = vshrl.u32 %v201, 7
        %v204 = vunpack.c.l.s4 1966171168
        %v205 = vunpack.c.0.s8 %v204
        %v206 = vlaneseq
        %v207 = vshrl.u32 %v206, 7
        %v208 = vsub.s32 %v205, %v207
        %v209 = vrot.slane %v200, %v208
        %v210 = vcombine.high %v209, %v209
        %v212 = vunpack.c.l.s4 1966171168
        %v213 = vunpack.c.0.s8 %v212
        %v214 = vlaneseq
        %v215 = vshrl.u32 %v214, 7
        %v216 = vsub.s32 %v213, %v215
        %v217 = vrot.slane %v209, %v216
        %v219 = vunpack.c.l.s4 1966171168
        %v220 = vunpack.c.0.s8 %v219
        %v221 = vlaneseq
        %v222 = vshrl.u32 %v221, 7
        %v223 = vsub.s32 %v220, %v222
        %v224 = vrot.slane %v210, %v223
        %v225 = vlaneseq
        %v226 = vshrl.u32 %v225, 7
        %v227 = vsub.s32 0, %v226
        %v228 = vrot.slane %v217, %v227
        %v229 = vlaneseq
        %v230 = vshrl.u32 %v229, 7
        %v231 = vsub.s32 0, %v230
        %v232 = vrot.slane %v224, %v231
        %vm233 = vcmp.eq.s32.totalorder %v228, %v202
        %vm234 = vcmp.eq.s32.totalorder %v232, %v202
        %v236 = vunpack.c.l.s4 1966171168
        %v237 = vunpack.c.0.s8 %v236
        %v238 = vlaneseq
        %v239 = vshrl.u32 %v238, 7
        %v240 = vsub.s32 %v237, %v239
        %v241 = vrot.slane %v196, %v240
        %v242 = vcombine.high %v241, %v241
        %v244 = vunpack.c.l.s4 1966171168
        %v245 = vunpack.c.0.s8 %v244
        %v246 = vlaneseq
        %v247 = vshrl.u32 %v246, 7
        %v248 = vsub.s32 %v245, %v247
        %v249 = vrot.slane %v241, %v248
        %v251 = vunpack.c.l.s4 1966171168
        %v252 = vunpack.c.0.s8 %v251
        %v253 = vlaneseq
        %v254 = vshrl.u32 %v253, 7
        %v255 = vsub.s32 %v252, %v254
        %v256 = vrot.slane %v242, %v255
        %v257 = vlaneseq
        %v258 = vshrl.u32 %v257, 7
        %v259 = vsub.s32 0, %v258
        %v260 = vrot.slane %v249, %v259
        %v261 = vlaneseq
        %v262 = vshrl.u32 %v261, 7
        %v263 = vsub.s32 0, %v262
        %v264 = vrot.slane %v256, %v263
        %v265 = vsel %vm233, %v260, 4294967295
        %v266 = vsel %vm234, %v264, 4294967295
        %267 = vst [vmem:[%s195] sm:$0xff] %v265
        %268 = vst [vmem:[%s195 + $0x8] sm:$0xff] %v266
        %s269 = sand.u32 %s82, 1
        %s270 = scalar_lea.sflag [#allocation4], %s269
        %s271 = sand.u32 %s82, 1
        %s272 = smul.addr %s271, 16
        %s273 = scalar_lea.vmem [#allocation7], %s272
        // Predicated region
        $region37: #{tpu_custom_call.1} parent=27 // pred_check
          %p274 = pneg %p92
        $region38: #{tpu_custom_call.1} parent=27 // pred_check_branch
          %276 = sbr.rel (%p274) target = $region40
        $region39: #{tpu_custom_call.1} parent=27 // pred_region
          %s278 = ssub.s32 256, 256
          %279 = vsyncadd %s270, %s278
          %s280 = smul.addr %s22, 128
          %s281 = scalar_lea.hbm %s2, %s280
          %s282 = sshll.u32 %s273, 4
          %s283 = int_to_ptr.vmem [resolvable:$true] %s282
          %288 = dma.vmem_to_hbm [thread:$0]  %s283, 256, %s281, %s270, 128, 256, 8
        $region40: #{tpu_custom_call.1} parent=27 // pred_fallthru
          _
      $region28: #{tpu_custom_call.1} parent=5 // pred_fallthru
        _
      %p289 = scmp.le.s32.totalorder 2, %s17
      // Predicated region
      $region41: #{tpu_custom_call.1} parent=5 // pred_check
        %p290 = pneg %p289
      $region42: #{tpu_custom_call.1} parent=5 // pred_check_branch
        %292 = sbr.rel (%p290) target = $region44
      $region43: #{tpu_custom_call.1} parent=5 // pred_region
        %s293 = ssub.s32 %s17, 2
        // Predicated region
        $region45: #{tpu_custom_call.1} parent=43 // pred_check
          %p294 = pneg %p98
        $region46: #{tpu_custom_call.1} parent=43 // pred_check_branch
          %296 = sbr.rel (%p294) target = $region48
        $region47: #{tpu_custom_call.1} parent=43 // pred_region
          %s297 = sand.u32 %s83, 1
          %s298 = scalar_lea.sflag [#allocation4], %s297
          %s299 = sand.u32 %s83, 1
          %s300 = smul.addr %s299, 16
          %s301 = scalar_lea.vmem [#allocation7], %s300
          %302 = dma.done %s298, 256
        $region48: #{tpu_custom_call.1} parent=43 // pred_fallthru
          _
      $region44: #{tpu_custom_call.1} parent=5 // pred_fallthru
        _
    $region6: #{tpu_custom_call.1} parent=1 // loop_footer
      %s21 = sadd.s32 1, %s17
    $region7: #{tpu_custom_call.1} parent=1 // loop_footer_branch
      %16 = sbr.rel target = $region3
    $region8: #{tpu_custom_call.1} parent=1 // loop_exit
      _
    %303 = vsyncpa [#allocation3], 1
    %s304 = scalar_lea.sflag [#allocation3], 1
    %305 = vsyncpa %s304, 1
    %306 = vsyncpa [#allocation6], 1
    %s307 = scalar_lea.sflag [#allocation6], 1
    %308 = vsyncpa %s307, 1
    %309 = vsyncpa [#allocation4], 1
    %s310 = scalar_lea.sflag [#allocation4], 1
    %311 = vsyncpa %s310, 1

</llo_original>
